<compile_context>
chip_gen: v7x
topology: tpu7x:2x2x1
jax: 0.10.0
libtpu: 0.0.40
codegen_flags: <defaults>
</compile_context>

<pallas_src>
import functools

import jax
import jax.numpy as jnp
import numpy as np
from jax import lax
from jax.experimental import pallas as pl
from jax.experimental.pallas import tpu as pltpu

ALPHA = 0.2          # Generator.alpha (blend factor)
LRELU_SLOPE = 0.2    # LeakyReLU slope inside synthesis blocks
EPS = 1e-5           # InstanceNorm2d eps
BASE_RES = 4         # starting 4x4 constant; synthesis goes 4 -> 8 -> 16
OUT_PAD = 8          # out-channels padded to 8 for full-sublane (unmasked) stores

R0, R1, R2 = BASE_RES, 2 * BASE_RES, 4 * BASE_RES
HW0, HW1, HW2 = R0 * R0, R1 * R1, R2 * R2


# ------------------------------ fused generator kernel ------------------------------
def _generator_kernel(z_ref, noise_ref,
                      w1_ref, w2_ref, w3_ref, sbd_ref, mbias_ref,
                      const_ref, op0_ref, op1_ref, op2_ref,
                      wbig0_ref, wbig1_ref, wbig2_ref,
                      cnvec_ref, timg_w_ref, timg_b_ref, up_ref,
                      *out_and_scratch, emit_intermediate):
    if emit_intermediate:
        interp_ref, small_ref, big_ref, z0_ref, z1_ref, z2_ref = out_and_scratch
    else:
        interp_ref, z0_ref, z1_ref, z2_ref = out_and_scratch

    def dot(a, b):
        return jnp.dot(a, b, preferred_element_type=jnp.float32)

    BC = cnvec_ref.shape[1]                    # batch * hidden_chan

    # ---- mapping MLP + all AdaIN styles, block-diagonal over the batch (column form) ----
    mb = mbias_ref[...]                                                # (.., 1) fused biases
    n1, n2, n3 = w1_ref.shape[0], w2_ref.shape[0], w3_ref.shape[0]
    h = jnp.maximum(dot(w1_ref[...], z_ref[...]) + mb[0:n1], 0.0)
    h = jnp.maximum(dot(w2_ref[...], h) + mb[n1:n1 + n2], 0.0)
    wlat = dot(w3_ref[...], h) + mb[n1 + n2:n1 + n2 + n3]              # (B*w_dim, 1)
    styles = dot(sbd_ref[...], wlat) + mb[n1 + n2 + n3:]               # (6*BC, 1)

    def blk_style(j):
        return (styles[(2 * j) * BC:(2 * j + 1) * BC],                 # scale, (BC, 1)
                styles[(2 * j + 1) * BC:(2 * j + 2) * BC])             # shift, (BC, 1)

    def style_block(x, op_ref, zbuf_ref, wbig_ref, cb, nw, nfull, scale, shift):
        # x: (B*Cin, HW_in).  op_ref: (9, HW_in, HW_out) shift (upsample-folded) operators.
        ncin = x.shape[0]
        for t in range(9):                       # stage 9 taps -> one K = 9*B*Cin matmul
            zbuf_ref[t * ncin:(t + 1) * ncin, :] = dot(x, op_ref[t])
        y = dot(wbig_ref[...], zbuf_ref[...]) + cb                     # fused conv3x3 + bias
        y = y + nw * nfull                                             # InjectNoise
        y = jnp.where(y > 0, y, LRELU_SLOPE * y)                       # LeakyReLU(0.2)
        mean = jnp.mean(y, axis=1, keepdims=True)                      # InstanceNorm2d (biased var)
        var = jnp.mean((y - mean) ** 2, axis=1, keepdims=True)
        y = (y - mean) * lax.rsqrt(var + EPS)
        return scale * y + shift                                       # AdaIN

    sc0, sh0 = blk_style(0)
    sc1, sh1 = blk_style(1)
    sc2, sh2 = blk_style(2)

    x0 = style_block(const_ref[...], op0_ref, z0_ref, wbig0_ref,
                     cnvec_ref[0], cnvec_ref[1], noise_ref[0][:, :HW0], sc0, sh0)   # (BC, 16)
    x1 = style_block(x0, op1_ref, z1_ref, wbig1_ref,
                     cnvec_ref[2], cnvec_ref[3], noise_ref[1][:, :HW1], sc1, sh1)   # (BC, 64)
    x2 = style_block(x1, op2_ref, z2_ref, wbig2_ref,
                     cnvec_ref[4], cnvec_ref[5], noise_ref[2][:, :HW2], sc2, sh2)   # (BC, 256)

    # to-image 1x1 convs (alpha / (1-alpha) already folded into weights+biases at pack time)
    img_small = dot(timg_w_ref[0], x1) + timg_b_ref[0]      # (B*OUT_PAD, 64), (1-alpha)-scaled
    img_small_up = dot(img_small, up_ref[...])              # bilinear up 8x8 -> 16x16
    img_big = dot(timg_w_ref[1], x2) + timg_b_ref[1]        # (B*OUT_PAD, 256), alpha-scaled
    interp_ref[...] = img_big + img_small_up

    if emit_intermediate:
        small_ref[...] = img_small_up * (1.0 / (1.0 - ALPHA))   # unscale folded blend factors
        big_ref[...] = img_big * (1.0 / ALPHA)


# ------------------------------ host-side constant operators ------------------------------
def _bilinear_resize_matrix_1d(n_in, n_out):
    # R (n_out, n_in) such that R @ x == jax.image.resize(x, (n_out,), 'bilinear').
    eye = jnp.eye(n_in, dtype=jnp.float32)
    return np.asarray(jax.image.resize(eye, (n_out, n_in), method="bilinear"))


def _upsample2x_matrix(n_in):
    # Flattened separable 2x bilinear operator: x_up(C, 4*HW) = x(C, HW) @ M.
    # TODO(synk): matches jax.image.resize('bilinear'); F.interpolate(align_corners=False)
    # may differ by epsilon at borders.
    r = _bilinear_resize_matrix_1d(n_in, 2 * n_in)            # (2n, n)
    return np.kron(r, r).T.astype(np.float32)                 # (n^2, 4n^2)


def _shift_operators(h, w):
    # (9, HW, HW) one-hot operators: (x_flat @ op[t]) == tap (dy, dx) of x with zero padding,
    # tap order (dy, dx) row-major, matching the 3x3 kernel's (ky, kx) row-major order.
    hw = h * w
    ops = np.zeros((9, hw, hw), np.float32)
    t = 0
    for dy in (-1, 0, 1):
        for dx in (-1, 0, 1):
            for i in range(h):
                for j in range(w):
                    si, sj = i + dy, j + dx
                    if 0 <= si < h and 0 <= sj < w:
                        ops[t, si * w + sj, i * w + j] = 1.0
            t += 1
    return ops


# ------------------------------ parameters ------------------------------
def init_params(key, z_dim, map_hidden_dim, w_dim, in_chan, out_chan, kernel_size, hidden_chan):
    assert kernel_size == 3
    keys = list(jax.random.split(key, 64))
    it = iter(keys)

    def nrm(shape, scale=0.1):
        return scale * jax.random.normal(next(it), shape, jnp.float32)

    def block(cin, cout):
        return {
            "conv_w": nrm((cout, cin, 3, 3)),
            "conv_b": jnp.zeros((1, cout), jnp.float32),
            "noise_w": nrm((1, cout)),
            "style_scale_w": nrm((w_dim, cout)),
            "style_scale_b": jnp.ones((1, cout), jnp.float32),
            "style_shift_w": nrm((w_dim, cout)),
            "style_shift_b": jnp.zeros((1, cout), jnp.float32),
        }

    return {
        "map": {
            "w1": nrm((z_dim, map_hidden_dim)),
            "b1": jnp.zeros((1, map_hidden_dim), jnp.float32),
            "w2": nrm((map_hidden_dim, map_hidden_dim)),
            "b2": jnp.zeros((1, map_hidden_dim), jnp.float32),
            "w3": nrm((map_hidden_dim, w_dim)),
            "b3": jnp.zeros((1, w_dim), jnp.float32),
        },
        "const": nrm((1, in_chan, BASE_RES, BASE_RES), 1.0),
        "block0": block(in_chan, hidden_chan),
        "block1": block(hidden_chan, hidden_chan),
        "block2": block(hidden_chan, hidden_chan),
        "to_img1": {"w": nrm((hidden_chan, out_chan)), "b": jnp.zeros((1, out_chan), jnp.float32)},
        "to_img2": {"w": nrm((hidden_chan, out_chan)), "b": jnp.zeros((1, out_chan), jnp.float32)},
    }


def pack_params(p, batch):
    """Convert PyTorch-layout params into kernel-ready fused / block-diagonal arrays.

    Done once per (params, batch-size): the batch is folded onto the sublane axis,
    so per-sample structure is baked into block-diagonal weight matrices here.
    """
    B = batch
    cw0 = np.asarray(p["block0"]["conv_w"])
    hidden, in_chan = cw0.shape[0], cw0.shape[1]
    z_dim, mh = np.asarray(p["map"]["w1"]).shape
    w_dim = np.asarray(p["map"]["w3"]).shape[1]
    out_chan = np.asarray(p["to_img1"]["w"]).shape[1]
    assert out_chan <= OUT_PAD
    BC = B * hidden

    def bd(w):                                   # block-diag over batch of w^T (column form)
        return np.kron(np.eye(B, dtype=np.float32), np.asarray(w, np.float32).T)

    def tile_col(b):                             # (1, n) bias -> (B*n, 1) column
        return np.tile(np.asarray(b, np.float32).reshape(-1, 1), (B, 1))

    # ---- mapping MLP + AdaIN style affines, block-diagonal, column orientation ----
    w1bd, w2bd, w3bd = bd(p["map"]["w1"]), bd(p["map"]["w2"]), bd(p["map"]["w3"])
    blocks = [p["block0"], p["block1"], p["block2"]]
    sbd = np.zeros((6 * BC, B * w_dim), np.float32)
    sb_col = np.zeros((6 * BC, 1), np.float32)
    for j, blk in enumerate(blocks):
        for s, (wn, bn) in enumerate((("style_scale_w", "style_scale_b"),
                                      ("style_shift_w", "style_shift_b"))):
            wjs = np.asarray(blk[wn], np.float32)                   # (w_dim, hidden)
            bjs = np.asarray(blk[bn], np.float32).reshape(-1)
            for b in range(B):
                r0 = (2 * j + s) * BC + b * hidden
                sbd[r0:r0 + hidden, b * w_dim:(b + 1) * w_dim] = wjs.T
                sb_col[r0:r0 + hidden, 0] = bjs
    mbias = np.concatenate([tile_col(p["map"]["b1"]), tile_col(p["map"]["b2"]),
                            tile_col(p["map"]["b3"]), sb_col], axis=0)

    # ---- conv blocks: upsample folded into shift taps + fused 9-tap weight matrices ----
    s4, s8, s16 = _shift_operators(R0, R0), _shift_operators(R1, R1), _shift_operators(R2, R2)
    up48, up816 = _upsample2x_matrix(R0), _upsample2x_matrix(R1)   # (16,64), (64,256)
    op0 = s4                                                       # (9, 16, 16)
    op1 = np.einsum("ij,tjk->tik", up48, s8).astype(np.float32)    # (9, 16, 64)
    op2 = np.einsum("ij,tjk->tik", up816, s16).astype(np.float32)  # (9, 64, 256)

    def conv_wbig(blk, cin):
        cw = np.asarray(blk["conv_w"], np.float32)                 # (hidden, cin, 3, 3)
        W = np.zeros((BC, 9 * B * cin), np.float32)
        for t in range(9):
            ky, kx = t // 3, t % 3
            for b in range(B):
                c0 = t * B * cin + b * cin
                W[b * hidden:(b + 1) * hidden, c0:c0 + cin] = cw[:, :, ky, kx]
        return W

    wbig0 = conv_wbig(p["block0"], in_chan)
    wbig1 = conv_wbig(p["block1"], hidden)
    wbig2 = conv_wbig(p["block2"], hidden)

    cnvec = np.stack([tile_col(p["block0"]["conv_b"]), tile_col(p["block0"]["noise_w"]),
                      tile_col(p["block1"]["conv_b"]), tile_col(p["block1"]["noise_w"]),
                      tile_col(p["block2"]["conv_b"]), tile_col(p["block2"]["noise_w"])])

    # ---- to-image 1x1 convs: alpha blend folded in, padded to OUT_PAD channels ----
    def to_img_bd(ti, scale):
        W = np.zeros((B * OUT_PAD, BC), np.float32)
        bcol = np.zeros((B * OUT_PAD, 1), np.float32)
        wt = np.asarray(ti["w"], np.float32).T * scale             # (out_chan, hidden)
        bb = np.asarray(ti["b"], np.float32).reshape(-1) * scale
        for b in range(B):
            W[b * OUT_PAD:b * OUT_PAD + out_chan, b * hidden:(b + 1) * hidden] = wt
            bcol[b * OUT_PAD:b * OUT_PAD + out_chan, 0] = bb
        return W, bcol

    t1w, t1b = to_img_bd(p["to_img1"], 1.0 - ALPHA)
    t2w, t2b = to_img_bd(p["to_img2"], ALPHA)

    const = np.tile(np.asarray(p["const"], np.float32).reshape(in_chan, HW0), (B, 1))

    asj = lambda a: jnp.asarray(a, jnp.float32)
    return {
        "w1bd": asj(w1bd), "w2bd": asj(w2bd), "w3bd": asj(w3bd),
        "sbd": asj(sbd), "mbias": asj(mbias),
        "const": asj(const),
        "op0": asj(op0), "op1": asj(op1), "op2": asj(op2),
        "wbig0": asj(wbig0), "wbig1": asj(wbig1), "wbig2": asj(wbig2),
        "cnvec": asj(cnvec),
        "timg_w": asj(np.stack([t1w, t2w])), "timg_b": asj(np.stack([t1b, t2b])),
        "up816": asj(up816),
    }


# ------------------------------ full generator forward ------------------------------
def generator_forward(packed, z, noise_key, out_chan, return_intermediate=False):
    B = z.shape[0]
    BC = packed["cnvec"].shape[1]
    hidden = BC // B
    z_col = z.reshape(B * z.shape[1], 1)            # row-major flatten matches block-diag layout

    # Per-sample noise, shared across channels (InjectNoise semantics), expanded to the
    # (B*C, HW) row layout and padded on lanes so all three maps ride in one input slab.
    keys = jax.random.split(noise_key, 3)
    noise = []
    for k, hw in zip(keys, (HW0, HW1, HW2)):
        n = jax.random.normal(k, (B, hw), jnp.float32)
        n = jnp.repeat(n, hidden, axis=0)
        noise.append(jnp.pad(n, ((0, 0), (0, HW2 - hw))))
    noise = jnp.stack(noise)                        # (3, B*hidden, 256)

    args = (z_col, noise,
            packed["w1bd"], packed["w2bd"], packed["w3bd"], packed["sbd"], packed["mbias"],
            packed["const"], packed["op0"], packed["op1"], packed["op2"],
            packed["wbig0"], packed["wbig1"], packed["wbig2"],
            packed["cnvec"], packed["timg_w"], packed["timg_b"], packed["up816"])

    vmem = pl.BlockSpec(memory_space=pltpu.MemorySpace.VMEM)
    img_shape = jax.ShapeDtypeStruct((B * OUT_PAD, HW2), jnp.float32)
    if return_intermediate:
        out_shape, out_specs = (img_shape,) * 3, (vmem,) * 3
    else:
        out_shape, out_specs = img_shape, vmem

    cin0_rows = packed["const"].shape[0]            # B * in_chan
    outs = pl.pallas_call(
        functools.partial(_generator_kernel, emit_intermediate=return_intermediate),
        out_shape=out_shape,
        in_specs=[vmem] * len(args),
        out_specs=out_specs,
        scratch_shapes=[pltpu.VMEM((9 * cin0_rows, HW0), jnp.float32),
                        pltpu.VMEM((9 * BC, HW1), jnp.float32),
                        pltpu.VMEM((9 * BC, HW2), jnp.float32)],
    )(*args)

    def to_nchw(img):
        return img.reshape(B, OUT_PAD, R2, R2)[:, :out_chan]    # free reshape + channel unpad

    if return_intermediate:
        return to_nchw(outs[0]), to_nchw(outs[1]), to_nchw(outs[2])
    return to_nchw(outs)


if __name__ == "__main__":
    z_dim, map_hidden_dim, w_dim = 32, 32, 32
    in_chan, out_chan, kernel_size, hidden_chan = 8, 3, 3, 8
    batch = 2

    root = jax.random.PRNGKey(0)
    pkey, zkey, nkey = jax.random.split(root, 3)
    params = init_params(pkey, z_dim, map_hidden_dim, w_dim,
                         in_chan, out_chan, kernel_size, hidden_chan)
    packed = pack_params(params, batch)
    z = jax.random.normal(zkey, (batch, z_dim), jnp.float32)

    fwd = jax.jit(generator_forward, static_argnames=("out_chan", "return_intermediate"))
    out = fwd(packed, z, nkey, out_chan=out_chan)
    out = jax.block_until_ready(out)
    assert out.shape == (batch, out_chan, 16, 16), out.shape
    assert bool(jnp.all(jnp.isfinite(out)))
    print("KERNEL_OK")
</pallas_src>

<mosaic_0001>
module attributes {stable_mosaic.version = 11 : i64} {
  func.func @_generator_kernel(%arg0: memref<64x1xf32, #tpu.memory_space<vmem>>, %arg1: memref<3x16x256xf32, #tpu.memory_space<vmem>>, %arg2: memref<64x64xf32, #tpu.memory_space<vmem>>, %arg3: memref<64x64xf32, #tpu.memory_space<vmem>>, %arg4: memref<64x64xf32, #tpu.memory_space<vmem>>, %arg5: memref<96x64xf32, #tpu.memory_space<vmem>>, %arg6: memref<288x1xf32, #tpu.memory_space<vmem>>, %arg7: memref<16x16xf32, #tpu.memory_space<vmem>>, %arg8: memref<9x16x16xf32, #tpu.memory_space<vmem>>, %arg9: memref<9x16x64xf32, #tpu.memory_space<vmem>>, %arg10: memref<9x64x256xf32, #tpu.memory_space<vmem>>, %arg11: memref<16x144xf32, #tpu.memory_space<vmem>>, %arg12: memref<16x144xf32, #tpu.memory_space<vmem>>, %arg13: memref<16x144xf32, #tpu.memory_space<vmem>>, %arg14: memref<6x16x1xf32, #tpu.memory_space<vmem>>, %arg15: memref<2x16x16xf32, #tpu.memory_space<vmem>>, %arg16: memref<2x16x1xf32, #tpu.memory_space<vmem>>, %arg17: memref<64x256xf32, #tpu.memory_space<vmem>>, %arg18: memref<16x256xf32, #tpu.memory_space<vmem>>, %arg19: memref<144x16xf32, #tpu.memory_space<vmem>>, %arg20: memref<144x64xf32, #tpu.memory_space<vmem>>, %arg21: memref<144x256xf32, #tpu.memory_space<vmem>>) attributes {dimension_semantics = [], scalar_prefetch = 0 : i64, scratch_operands = 3 : i64, tpu.core_type = #tpu.core_type<tc>} {
    %c0 = arith.constant 0 : index
    %c0_0 = arith.constant 0 : index
    %0 = vector.load %arg6[%c0, %c0_0] : memref<288x1xf32, #tpu.memory_space<vmem>>, vector<288x1xf32>
    %c0_1 = arith.constant 0 : index
    %c0_2 = arith.constant 0 : index
    %1 = vector.load %arg2[%c0_1, %c0_2] : memref<64x64xf32, #tpu.memory_space<vmem>>, vector<64x64xf32>
    %c0_3 = arith.constant 0 : index
    %c0_4 = arith.constant 0 : index
    %2 = vector.load %arg0[%c0_3, %c0_4] : memref<64x1xf32, #tpu.memory_space<vmem>>, vector<64x1xf32>
    %cst = arith.constant dense<0.000000e+00> : vector<64x1xf32>
    %3 = tpu.matmul %1, %2, %cst {dimension_numbers = #tpu.dot_dimension_numbers<[1], [0], [0], [1], [0, 0, 1, 1], [], []>} : vector<64x64xf32>, vector<64x1xf32>, vector<64x1xf32> -> vector<64x1xf32>
    %4 = vector.extract_strided_slice %0 {offsets = [0, 0], sizes = [64, 1], strides = [1, 1]} : vector<288x1xf32> to vector<64x1xf32>
    %5 = arith.addf %3, %4 : vector<64x1xf32>
    %cst_5 = arith.constant 0.000000e+00 : f32
    %6 = vector.broadcast %cst_5 : f32 to vector<64x1xf32>
    %7 = arith.maximumf %5, %6 : vector<64x1xf32>
    %c0_6 = arith.constant 0 : index
    %c0_7 = arith.constant 0 : index
    %8 = vector.load %arg3[%c0_6, %c0_7] : memref<64x64xf32, #tpu.memory_space<vmem>>, vector<64x64xf32>
    %cst_8 = arith.constant dense<0.000000e+00> : vector<64x1xf32>
    %9 = tpu.matmul %8, %7, %cst_8 {dimension_numbers = #tpu.dot_dimension_numbers<[1], [0], [0], [1], [0, 0, 1, 1], [], []>} : vector<64x64xf32>, vector<64x1xf32>, vector<64x1xf32> -> vector<64x1xf32>
    %10 = vector.extract_strided_slice %0 {offsets = [64, 0], sizes = [64, 1], strides = [1, 1]} : vector<288x1xf32> to vector<64x1xf32>
    %11 = arith.addf %9, %10 : vector<64x1xf32>
    %cst_9 = arith.constant 0.000000e+00 : f32
    %12 = vector.broadcast %cst_9 : f32 to vector<64x1xf32>
    %13 = arith.maximumf %11, %12 : vector<64x1xf32>
    %c0_10 = arith.constant 0 : index
    %c0_11 = arith.constant 0 : index
    %14 = vector.load %arg4[%c0_10, %c0_11] : memref<64x64xf32, #tpu.memory_space<vmem>>, vector<64x64xf32>
    %cst_12 = arith.constant dense<0.000000e+00> : vector<64x1xf32>
    %15 = tpu.matmul %14, %13, %cst_12 {dimension_numbers = #tpu.dot_dimension_numbers<[1], [0], [0], [1], [0, 0, 1, 1], [], []>} : vector<64x64xf32>, vector<64x1xf32>, vector<64x1xf32> -> vector<64x1xf32>
    %16 = vector.extract_strided_slice %0 {offsets = [128, 0], sizes = [64, 1], strides = [1, 1]} : vector<288x1xf32> to vector<64x1xf32>
    %17 = arith.addf %15, %16 : vector<64x1xf32>
    %c0_13 = arith.constant 0 : index
    %c0_14 = arith.constant 0 : index
    %18 = vector.load %arg5[%c0_13, %c0_14] : memref<96x64xf32, #tpu.memory_space<vmem>>, vector<96x64xf32>
    %cst_15 = arith.constant dense<0.000000e+00> : vector<96x1xf32>
    %19 = tpu.matmul %18, %17, %cst_15 {dimension_numbers = #tpu.dot_dimension_numbers<[1], [0], [0], [1], [0, 0, 1, 1], [], []>} : vector<96x64xf32>, vector<64x1xf32>, vector<96x1xf32> -> vector<96x1xf32>
    %20 = vector.extract_strided_slice %0 {offsets = [192, 0], sizes = [96, 1], strides = [1, 1]} : vector<288x1xf32> to vector<96x1xf32>
    %21 = arith.addf %19, %20 : vector<96x1xf32>
    %22 = vector.extract_strided_slice %21 {offsets = [0, 0], sizes = [16, 1], strides = [1, 1]} : vector<96x1xf32> to vector<16x1xf32>
    %23 = vector.extract_strided_slice %21 {offsets = [16, 0], sizes = [16, 1], strides = [1, 1]} : vector<96x1xf32> to vector<16x1xf32>
    %24 = vector.extract_strided_slice %21 {offsets = [32, 0], sizes = [16, 1], strides = [1, 1]} : vector<96x1xf32> to vector<16x1xf32>
    %25 = vector.extract_strided_slice %21 {offsets = [48, 0], sizes = [16, 1], strides = [1, 1]} : vector<96x1xf32> to vector<16x1xf32>
    %26 = vector.extract_strided_slice %21 {offsets = [64, 0], sizes = [16, 1], strides = [1, 1]} : vector<96x1xf32> to vector<16x1xf32>
    %27 = vector.extract_strided_slice %21 {offsets = [80, 0], sizes = [16, 1], strides = [1, 1]} : vector<96x1xf32> to vector<16x1xf32>
    %c0_16 = arith.constant 0 : index
    %c0_17 = arith.constant 0 : index
    %28 = vector.load %arg7[%c0_16, %c0_17] : memref<16x16xf32, #tpu.memory_space<vmem>>, vector<16x16xf32>
    %c0_18 = arith.constant 0 : index
    %c0_19 = arith.constant 0 : index
    %c0_20 = arith.constant 0 : index
    %29 = vector.load %arg14[%c0_18, %c0_19, %c0_20] : memref<6x16x1xf32, #tpu.memory_space<vmem>>, vector<1x16x1xf32>
    %30 = vector.shape_cast %29 : vector<1x16x1xf32> to vector<16x1xf32>
    %c1 = arith.constant 1 : index
    %c0_21 = arith.constant 0 : index
    %c0_22 = arith.constant 0 : index
    %31 = vector.load %arg14[%c1, %c0_21, %c0_22] : memref<6x16x1xf32, #tpu.memory_space<vmem>>, vector<1x16x1xf32>
    %32 = vector.shape_cast %31 : vector<1x16x1xf32> to vector<16x1xf32>
    %c0_23 = arith.constant 0 : index
    %c0_24 = arith.constant 0 : index
    %c0_25 = arith.constant 0 : index
    %33 = vector.load %arg1[%c0_23, %c0_24, %c0_25] : memref<3x16x256xf32, #tpu.memory_space<vmem>>, vector<1x16x256xf32>
    %34 = vector.shape_cast %33 : vector<1x16x256xf32> to vector<16x256xf32>
    %35 = vector.extract_strided_slice %34 {offsets = [0, 0], sizes = [16, 16], strides = [1, 1]} : vector<16x256xf32> to vector<16x16xf32>
    %c0_26 = arith.constant 0 : index
    %c0_27 = arith.constant 0 : index
    %c0_28 = arith.constant 0 : index
    %36 = vector.load %arg8[%c0_26, %c0_27, %c0_28] : memref<9x16x16xf32, #tpu.memory_space<vmem>>, vector<1x16x16xf32>
    %37 = vector.shape_cast %36 : vector<1x16x16xf32> to vector<16x16xf32>
    %cst_29 = arith.constant dense<0.000000e+00> : vector<16x16xf32>
    %38 = tpu.matmul %28, %37, %cst_29 {dimension_numbers = #tpu.dot_dimension_numbers<[1], [0], [0], [1], [0, 0, 1, 1], [], []>} : vector<16x16xf32>, vector<16x16xf32>, vector<16x16xf32> -> vector<16x16xf32>
    %c0_30 = arith.constant 0 : index
    %c0_31 = arith.constant 0 : index
    %39 = vector.load %arg19[%c0_30, %c0_31] : memref<144x16xf32, #tpu.memory_space<vmem>>, vector<16x16xf32>
    tpu.vector_store %arg19[%c0_30, %c0_31], %38 {strides = array<i32>} : memref<144x16xf32, #tpu.memory_space<vmem>>, vector<16x16xf32>,
    %c1_32 = arith.constant 1 : index
    %c0_33 = arith.constant 0 : index
    %c0_34 = arith.constant 0 : index
    %40 = vector.load %arg8[%c1_32, %c0_33, %c0_34] : memref<9x16x16xf32, #tpu.memory_space<vmem>>, vector<1x16x16xf32>
    %41 = vector.shape_cast %40 : vector<1x16x16xf32> to vector<16x16xf32>
    %cst_35 = arith.constant dense<0.000000e+00> : vector<16x16xf32>
    %42 = tpu.matmul %28, %41, %cst_35 {dimension_numbers = #tpu.dot_dimension_numbers<[1], [0], [0], [1], [0, 0, 1, 1], [], []>} : vector<16x16xf32>, vector<16x16xf32>, vector<16x16xf32> -> vector<16x16xf32>
    %c16 = arith.constant 16 : index
    %c0_36 = arith.constant 0 : index
    %43 = vector.load %arg19[%c16, %c0_36] : memref<144x16xf32, #tpu.memory_space<vmem>>, vector<16x16xf32>
    tpu.vector_store %arg19[%c16, %c0_36], %42 {strides = array<i32>} : memref<144x16xf32, #tpu.memory_space<vmem>>, vector<16x16xf32>,
    %c2 = arith.constant 2 : index
    %c0_37 = arith.constant 0 : index
    %c0_38 = arith.constant 0 : index
    %44 = vector.load %arg8[%c2, %c0_37, %c0_38] : memref<9x16x16xf32, #tpu.memory_space<vmem>>, vector<1x16x16xf32>
    %45 = vector.shape_cast %44 : vector<1x16x16xf32> to vector<16x16xf32>
    %cst_39 = arith.constant dense<0.000000e+00> : vector<16x16xf32>
    %46 = tpu.matmul %28, %45, %cst_39 {dimension_numbers = #tpu.dot_dimension_numbers<[1], [0], [0], [1], [0, 0, 1, 1], [], []>} : vector<16x16xf32>, vector<16x16xf32>, vector<16x16xf32> -> vector<16x16xf32>
    %c32 = arith.constant 32 : index
    %c0_40 = arith.constant 0 : index
    %47 = vector.load %arg19[%c32, %c0_40] : memref<144x16xf32, #tpu.memory_space<vmem>>, vector<16x16xf32>
    tpu.vector_store %arg19[%c32, %c0_40], %46 {strides = array<i32>} : memref<144x16xf32, #tpu.memory_space<vmem>>, vector<16x16xf32>,
    %c3 = arith.constant 3 : index
    %c0_41 = arith.constant 0 : index
    %c0_42 = arith.constant 0 : index
    %48 = vector.load %arg8[%c3, %c0_41, %c0_42] : memref<9x16x16xf32, #tpu.memory_space<vmem>>, vector<1x16x16xf32>
    %49 = vector.shape_cast %48 : vector<1x16x16xf32> to vector<16x16xf32>
    %cst_43 = arith.constant dense<0.000000e+00> : vector<16x16xf32>
    %50 = tpu.matmul %28, %49, %cst_43 {dimension_numbers = #tpu.dot_dimension_numbers<[1], [0], [0], [1], [0, 0, 1, 1], [], []>} : vector<16x16xf32>, vector<16x16xf32>, vector<16x16xf32> -> vector<16x16xf32>
    %c48 = arith.constant 48 : index
    %c0_44 = arith.constant 0 : index
    %51 = vector.load %arg19[%c48, %c0_44] : memref<144x16xf32, #tpu.memory_space<vmem>>, vector<16x16xf32>
    tpu.vector_store %arg19[%c48, %c0_44], %50 {strides = array<i32>} : memref<144x16xf32, #tpu.memory_space<vmem>>, vector<16x16xf32>,
    %c4 = arith.constant 4 : index
    %c0_45 = arith.constant 0 : index
    %c0_46 = arith.constant 0 : index
    %52 = vector.load %arg8[%c4, %c0_45, %c0_46] : memref<9x16x16xf32, #tpu.memory_space<vmem>>, vector<1x16x16xf32>
    %53 = vector.shape_cast %52 : vector<1x16x16xf32> to vector<16x16xf32>
    %cst_47 = arith.constant dense<0.000000e+00> : vector<16x16xf32>
    %54 = tpu.matmul %28, %53, %cst_47 {dimension_numbers = #tpu.dot_dimension_numbers<[1], [0], [0], [1], [0, 0, 1, 1], [], []>} : vector<16x16xf32>, vector<16x16xf32>, vector<16x16xf32> -> vector<16x16xf32>
    %c64 = arith.constant 64 : index
    %c0_48 = arith.constant 0 : index
    %55 = vector.load %arg19[%c64, %c0_48] : memref<144x16xf32, #tpu.memory_space<vmem>>, vector<16x16xf32>
    tpu.vector_store %arg19[%c64, %c0_48], %54 {strides = array<i32>} : memref<144x16xf32, #tpu.memory_space<vmem>>, vector<16x16xf32>,
    %c5 = arith.constant 5 : index
    %c0_49 = arith.constant 0 : index
    %c0_50 = arith.constant 0 : index
    %56 = vector.load %arg8[%c5, %c0_49, %c0_50] : memref<9x16x16xf32, #tpu.memory_space<vmem>>, vector<1x16x16xf32>
    %57 = vector.shape_cast %56 : vector<1x16x16xf32> to vector<16x16xf32>
    %cst_51 = arith.constant dense<0.000000e+00> : vector<16x16xf32>
    %58 = tpu.matmul %28, %57, %cst_51 {dimension_numbers = #tpu.dot_dimension_numbers<[1], [0], [0], [1], [0, 0, 1, 1], [], []>} : vector<16x16xf32>, vector<16x16xf32>, vector<16x16xf32> -> vector<16x16xf32>
    %c80 = arith.constant 80 : index
    %c0_52 = arith.constant 0 : index
    %59 = vector.load %arg19[%c80, %c0_52] : memref<144x16xf32, #tpu.memory_space<vmem>>, vector<16x16xf32>
    tpu.vector_store %arg19[%c80, %c0_52], %58 {strides = array<i32>} : memref<144x16xf32, #tpu.memory_space<vmem>>, vector<16x16xf32>,
    %c6 = arith.constant 6 : index
    %c0_53 = arith.constant 0 : index
    %c0_54 = arith.constant 0 : index
    %60 = vector.load %arg8[%c6, %c0_53, %c0_54] : memref<9x16x16xf32, #tpu.memory_space<vmem>>, vector<1x16x16xf32>
    %61 = vector.shape_cast %60 : vector<1x16x16xf32> to vector<16x16xf32>
    %cst_55 = arith.constant dense<0.000000e+00> : vector<16x16xf32>
    %62 = tpu.matmul %28, %61, %cst_55 {dimension_numbers = #tpu.dot_dimension_numbers<[1], [0], [0], [1], [0, 0, 1, 1], [], []>} : vector<16x16xf32>, vector<16x16xf32>, vector<16x16xf32> -> vector<16x16xf32>
    %c96 = arith.constant 96 : index
    %c0_56 = arith.constant 0 : index
    %63 = vector.load %arg19[%c96, %c0_56] : memref<144x16xf32, #tpu.memory_space<vmem>>, vector<16x16xf32>
    tpu.vector_store %arg19[%c96, %c0_56], %62 {strides = array<i32>} : memref<144x16xf32, #tpu.memory_space<vmem>>, vector<16x16xf32>,
    %c7 = arith.constant 7 : index
    %c0_57 = arith.constant 0 : index
    %c0_58 = arith.constant 0 : index
    %64 = vector.load %arg8[%c7, %c0_57, %c0_58] : memref<9x16x16xf32, #tpu.memory_space<vmem>>, vector<1x16x16xf32>
    %65 = vector.shape_cast %64 : vector<1x16x16xf32> to vector<16x16xf32>
    %cst_59 = arith.constant dense<0.000000e+00> : vector<16x16xf32>
    %66 = tpu.matmul %28, %65, %cst_59 {dimension_numbers = #tpu.dot_dimension_numbers<[1], [0], [0], [1], [0, 0, 1, 1], [], []>} : vector<16x16xf32>, vector<16x16xf32>, vector<16x16xf32> -> vector<16x16xf32>
    %c112 = arith.constant 112 : index
    %c0_60 = arith.constant 0 : index
    %67 = vector.load %arg19[%c112, %c0_60] : memref<144x16xf32, #tpu.memory_space<vmem>>, vector<16x16xf32>
    tpu.vector_store %arg19[%c112, %c0_60], %66 {strides = array<i32>} : memref<144x16xf32, #tpu.memory_space<vmem>>, vector<16x16xf32>,
    %c8 = arith.constant 8 : index
    %c0_61 = arith.constant 0 : index
    %c0_62 = arith.constant 0 : index
    %68 = vector.load %arg8[%c8, %c0_61, %c0_62] : memref<9x16x16xf32, #tpu.memory_space<vmem>>, vector<1x16x16xf32>
    %69 = vector.shape_cast %68 : vector<1x16x16xf32> to vector<16x16xf32>
    %cst_63 = arith.constant dense<0.000000e+00> : vector<16x16xf32>
    %70 = tpu.matmul %28, %69, %cst_63 {dimension_numbers = #tpu.dot_dimension_numbers<[1], [0], [0], [1], [0, 0, 1, 1], [], []>} : vector<16x16xf32>, vector<16x16xf32>, vector<16x16xf32> -> vector<16x16xf32>
    %c128 = arith.constant 128 : index
    %c0_64 = arith.constant 0 : index
    %71 = vector.load %arg19[%c128, %c0_64] : memref<144x16xf32, #tpu.memory_space<vmem>>, vector<16x16xf32>
    tpu.vector_store %arg19[%c128, %c0_64], %70 {strides = array<i32>} : memref<144x16xf32, #tpu.memory_space<vmem>>, vector<16x16xf32>,
    %c0_65 = arith.constant 0 : index
    %c0_66 = arith.constant 0 : index
    %72 = vector.load %arg11[%c0_65, %c0_66] : memref<16x144xf32, #tpu.memory_space<vmem>>, vector<16x144xf32>
    %c0_67 = arith.constant 0 : index
    %c0_68 = arith.constant 0 : index
    %73 = vector.load %arg19[%c0_67, %c0_68] : memref<144x16xf32, #tpu.memory_space<vmem>>, vector<144x16xf32>
    %cst_69 = arith.constant dense<0.000000e+00> : vector<16x16xf32>
    %74 = tpu.matmul %72, %73, %cst_69 {dimension_numbers = #tpu.dot_dimension_numbers<[1], [0], [0], [1], [0, 0, 1, 1], [], []>} : vector<16x144xf32>, vector<144x16xf32>, vector<16x16xf32> -> vector<16x16xf32>
    %75 = vector.broadcast %30 : vector<16x1xf32> to vector<16x16xf32>
    %76 = arith.addf %74, %75 : vector<16x16xf32>
    %77 = vector.broadcast %32 : vector<16x1xf32> to vector<16x16xf32>
    %78 = arith.mulf %77, %35 : vector<16x16xf32>
    %79 = arith.addf %76, %78 : vector<16x16xf32>
    %cst_70 = arith.constant 0.000000e+00 : f32
    %80 = vector.broadcast %cst_70 : f32 to vector<16x16xf32>
    %81 = arith.cmpf ogt, %79, %80 : vector<16x16xf32>
    %cst_71 = arith.constant 2.000000e-01 : f32
    %82 = vector.broadcast %cst_71 : f32 to vector<16x16xf32>
    %83 = arith.mulf %82, %79 : vector<16x16xf32>
    %84 = arith.select %81, %79, %83 : vector<16x16xi1>, vector<16x16xf32>
    %cst_72 = arith.constant dense<0.000000e+00> : vector<16xf32>
    %85 = vector.multi_reduction <add>, %84, %cst_72 [1] : vector<16x16xf32> to vector<16xf32>
    %86 = vector.shape_cast %85 : vector<16xf32> to vector<16x1xf32>
    %cst_73 = arith.constant 1.600000e+01 : f32
    %87 = vector.broadcast %cst_73 : f32 to vector<16x1xf32>
    %88 = arith.divf %86, %87 : vector<16x1xf32>
    %89 = vector.broadcast %88 : vector<16x1xf32> to vector<16x16xf32>
    %90 = arith.subf %84, %89 : vector<16x16xf32>
    %91 = arith.mulf %90, %90 : vector<16x16xf32>
    %cst_74 = arith.constant dense<0.000000e+00> : vector<16xf32>
    %92 = vector.multi_reduction <add>, %91, %cst_74 [1] : vector<16x16xf32> to vector<16xf32>
    %93 = vector.shape_cast %92 : vector<16xf32> to vector<16x1xf32>
    %cst_75 = arith.constant 1.600000e+01 : f32
    %94 = vector.broadcast %cst_75 : f32 to vector<16x1xf32>
    %95 = arith.divf %93, %94 : vector<16x1xf32>
    %96 = vector.broadcast %88 : vector<16x1xf32> to vector<16x16xf32>
    %97 = arith.subf %84, %96 : vector<16x16xf32>
    %cst_76 = arith.constant 9.99999974E-6 : f32
    %98 = vector.broadcast %cst_76 : f32 to vector<16x1xf32>
    %99 = arith.addf %95, %98 : vector<16x1xf32>
    %100 = math.rsqrt %99 : vector<16x1xf32>
    %101 = vector.broadcast %100 : vector<16x1xf32> to vector<16x16xf32>
    %102 = arith.mulf %97, %101 : vector<16x16xf32>
    %103 = vector.broadcast %22 : vector<16x1xf32> to vector<16x16xf32>
    %104 = arith.mulf %103, %102 : vector<16x16xf32>
    %105 = vector.broadcast %23 : vector<16x1xf32> to vector<16x16xf32>
    %106 = arith.addf %104, %105 : vector<16x16xf32>
    %c2_77 = arith.constant 2 : index
    %c0_78 = arith.constant 0 : index
    %c0_79 = arith.constant 0 : index
    %107 = vector.load %arg14[%c2_77, %c0_78, %c0_79] : memref<6x16x1xf32, #tpu.memory_space<vmem>>, vector<1x16x1xf32>
    %108 = vector.shape_cast %107 : vector<1x16x1xf32> to vector<16x1xf32>
    %c3_80 = arith.constant 3 : index
    %c0_81 = arith.constant 0 : index
    %c0_82 = arith.constant 0 : index
    %109 = vector.load %arg14[%c3_80, %c0_81, %c0_82] : memref<6x16x1xf32, #tpu.memory_space<vmem>>, vector<1x16x1xf32>
    %110 = vector.shape_cast %109 : vector<1x16x1xf32> to vector<16x1xf32>
    %c1_83 = arith.constant 1 : index
    %c0_84 = arith.constant 0 : index
    %c0_85 = arith.constant 0 : index
    %111 = vector.load %arg1[%c1_83, %c0_84, %c0_85] : memref<3x16x256xf32, #tpu.memory_space<vmem>>, vector<1x16x256xf32>
    %112 = vector.shape_cast %111 : vector<1x16x256xf32> to vector<16x256xf32>
    %113 = vector.extract_strided_slice %112 {offsets = [0, 0], sizes = [16, 64], strides = [1, 1]} : vector<16x256xf32> to vector<16x64xf32>
    %c0_86 = arith.constant 0 : index
    %c0_87 = arith.constant 0 : index
    %c0_88 = arith.constant 0 : index
    %114 = vector.load %arg9[%c0_86, %c0_87, %c0_88] : memref<9x16x64xf32, #tpu.memory_space<vmem>>, vector<1x16x64xf32>
    %115 = vector.shape_cast %114 : vector<1x16x64xf32> to vector<16x64xf32>
    %cst_89 = arith.constant dense<0.000000e+00> : vector<16x64xf32>
    %116 = tpu.matmul %106, %115, %cst_89 {dimension_numbers = #tpu.dot_dimension_numbers<[1], [0], [0], [1], [0, 0, 1, 1], [], []>} : vector<16x16xf32>, vector<16x64xf32>, vector<16x64xf32> -> vector<16x64xf32>
    %c0_90 = arith.constant 0 : index
    %c0_91 = arith.constant 0 : index
    %117 = vector.load %arg20[%c0_90, %c0_91] : memref<144x64xf32, #tpu.memory_space<vmem>>, vector<16x64xf32>
    tpu.vector_store %arg20[%c0_90, %c0_91], %116 {strides = array<i32>} : memref<144x64xf32, #tpu.memory_space<vmem>>, vector<16x64xf32>,
    %c1_92 = arith.constant 1 : index
    %c0_93 = arith.constant 0 : index
    %c0_94 = arith.constant 0 : index
    %118 = vector.load %arg9[%c1_92, %c0_93, %c0_94] : memref<9x16x64xf32, #tpu.memory_space<vmem>>, vector<1x16x64xf32>
    %119 = vector.shape_cast %118 : vector<1x16x64xf32> to vector<16x64xf32>
    %cst_95 = arith.constant dense<0.000000e+00> : vector<16x64xf32>
    %120 = tpu.matmul %106, %119, %cst_95 {dimension_numbers = #tpu.dot_dimension_numbers<[1], [0], [0], [1], [0, 0, 1, 1], [], []>} : vector<16x16xf32>, vector<16x64xf32>, vector<16x64xf32> -> vector<16x64xf32>
    %c16_96 = arith.constant 16 : index
    %c0_97 = arith.constant 0 : index
    %121 = vector.load %arg20[%c16_96, %c0_97] : memref<144x64xf32, #tpu.memory_space<vmem>>, vector<16x64xf32>
    tpu.vector_store %arg20[%c16_96, %c0_97], %120 {strides = array<i32>} : memref<144x64xf32, #tpu.memory_space<vmem>>, vector<16x64xf32>,
    %c2_98 = arith.constant 2 : index
    %c0_99 = arith.constant 0 : index
    %c0_100 = arith.constant 0 : index
    %122 = vector.load %arg9[%c2_98, %c0_99, %c0_100] : memref<9x16x64xf32, #tpu.memory_space<vmem>>, vector<1x16x64xf32>
    %123 = vector.shape_cast %122 : vector<1x16x64xf32> to vector<16x64xf32>
    %cst_101 = arith.constant dense<0.000000e+00> : vector<16x64xf32>
    %124 = tpu.matmul %106, %123, %cst_101 {dimension_numbers = #tpu.dot_dimension_numbers<[1], [0], [0], [1], [0, 0, 1, 1], [], []>} : vector<16x16xf32>, vector<16x64xf32>, vector<16x64xf32> -> vector<16x64xf32>
    %c32_102 = arith.constant 32 : index
    %c0_103 = arith.constant 0 : index
    %125 = vector.load %arg20[%c32_102, %c0_103] : memref<144x64xf32, #tpu.memory_space<vmem>>, vector<16x64xf32>
    tpu.vector_store %arg20[%c32_102, %c0_103], %124 {strides = array<i32>} : memref<144x64xf32, #tpu.memory_space<vmem>>, vector<16x64xf32>,
    %c3_104 = arith.constant 3 : index
    %c0_105 = arith.constant 0 : index
    %c0_106 = arith.constant 0 : index
    %126 = vector.load %arg9[%c3_104, %c0_105, %c0_106] : memref<9x16x64xf32, #tpu.memory_space<vmem>>, vector<1x16x64xf32>
    %127 = vector.shape_cast %126 : vector<1x16x64xf32> to vector<16x64xf32>
    %cst_107 = arith.constant dense<0.000000e+00> : vector<16x64xf32>
    %128 = tpu.matmul %106, %127, %cst_107 {dimension_numbers = #tpu.dot_dimension_numbers<[1], [0], [0], [1], [0, 0, 1, 1], [], []>} : vector<16x16xf32>, vector<16x64xf32>, vector<16x64xf32> -> vector<16x64xf32>
    %c48_108 = arith.constant 48 : index
    %c0_109 = arith.constant 0 : index
    %129 = vector.load %arg20[%c48_108, %c0_109] : memref<144x64xf32, #tpu.memory_space<vmem>>, vector<16x64xf32>
    tpu.vector_store %arg20[%c48_108, %c0_109], %128 {strides = array<i32>} : memref<144x64xf32, #tpu.memory_space<vmem>>, vector<16x64xf32>,
    %c4_110 = arith.constant 4 : index
    %c0_111 = arith.constant 0 : index
    %c0_112 = arith.constant 0 : index
    %130 = vector.load %arg9[%c4_110, %c0_111, %c0_112] : memref<9x16x64xf32, #tpu.memory_space<vmem>>, vector<1x16x64xf32>
    %131 = vector.shape_cast %130 : vector<1x16x64xf32> to vector<16x64xf32>
    %cst_113 = arith.constant dense<0.000000e+00> : vector<16x64xf32>
    %132 = tpu.matmul %106, %131, %cst_113 {dimension_numbers = #tpu.dot_dimension_numbers<[1], [0], [0], [1], [0, 0, 1, 1], [], []>} : vector<16x16xf32>, vector<16x64xf32>, vector<16x64xf32> -> vector<16x64xf32>
    %c64_114 = arith.constant 64 : index
    %c0_115 = arith.constant 0 : index
    %133 = vector.load %arg20[%c64_114, %c0_115] : memref<144x64xf32, #tpu.memory_space<vmem>>, vector<16x64xf32>
    tpu.vector_store %arg20[%c64_114, %c0_115], %132 {strides = array<i32>} : memref<144x64xf32, #tpu.memory_space<vmem>>, vector<16x64xf32>,
    %c5_116 = arith.constant 5 : index
    %c0_117 = arith.constant 0 : index
    %c0_118 = arith.constant 0 : index
    %134 = vector.load %arg9[%c5_116, %c0_117, %c0_118] : memref<9x16x64xf32, #tpu.memory_space<vmem>>, vector<1x16x64xf32>
    %135 = vector.shape_cast %134 : vector<1x16x64xf32> to vector<16x64xf32>
    %cst_119 = arith.constant dense<0.000000e+00> : vector<16x64xf32>
    %136 = tpu.matmul %106, %135, %cst_119 {dimension_numbers = #tpu.dot_dimension_numbers<[1], [0], [0], [1], [0, 0, 1, 1], [], []>} : vector<16x16xf32>, vector<16x64xf32>, vector<16x64xf32> -> vector<16x64xf32>
    %c80_120 = arith.constant 80 : index
    %c0_121 = arith.constant 0 : index
    %137 = vector.load %arg20[%c80_120, %c0_121] : memref<144x64xf32, #tpu.memory_space<vmem>>, vector<16x64xf32>
    tpu.vector_store %arg20[%c80_120, %c0_121], %136 {strides = array<i32>} : memref<144x64xf32, #tpu.memory_space<vmem>>, vector<16x64xf32>,
    %c6_122 = arith.constant 6 : index
    %c0_123 = arith.constant 0 : index
    %c0_124 = arith.constant 0 : index
    %138 = vector.load %arg9[%c6_122, %c0_123, %c0_124] : memref<9x16x64xf32, #tpu.memory_space<vmem>>, vector<1x16x64xf32>
    %139 = vector.shape_cast %138 : vector<1x16x64xf32> to vector<16x64xf32>
    %cst_125 = arith.constant dense<0.000000e+00> : vector<16x64xf32>
    %140 = tpu.matmul %106, %139, %cst_125 {dimension_numbers = #tpu.dot_dimension_numbers<[1], [0], [0], [1], [0, 0, 1, 1], [], []>} : vector<16x16xf32>, vector<16x64xf32>, vector<16x64xf32> -> vector<16x64xf32>
    %c96_126 = arith.constant 96 : index
    %c0_127 = arith.constant 0 : index
    %141 = vector.load %arg20[%c96_126, %c0_127] : memref<144x64xf32, #tpu.memory_space<vmem>>, vector<16x64xf32>
    tpu.vector_store %arg20[%c96_126, %c0_127], %140 {strides = array<i32>} : memref<144x64xf32, #tpu.memory_space<vmem>>, vector<16x64xf32>,
    %c7_128 = arith.constant 7 : index
    %c0_129 = arith.constant 0 : index
    %c0_130 = arith.constant 0 : index
    %142 = vector.load %arg9[%c7_128, %c0_129, %c0_130] : memref<9x16x64xf32, #tpu.memory_space<vmem>>, vector<1x16x64xf32>
    %143 = vector.shape_cast %142 : vector<1x16x64xf32> to vector<16x64xf32>
    %cst_131 = arith.constant dense<0.000000e+00> : vector<16x64xf32>
    %144 = tpu.matmul %106, %143, %cst_131 {dimension_numbers = #tpu.dot_dimension_numbers<[1], [0], [0], [1], [0, 0, 1, 1], [], []>} : vector<16x16xf32>, vector<16x64xf32>, vector<16x64xf32> -> vector<16x64xf32>
    %c112_132 = arith.constant 112 : index
    %c0_133 = arith.constant 0 : index
    %145 = vector.load %arg20[%c112_132, %c0_133] : memref<144x64xf32, #tpu.memory_space<vmem>>, vector<16x64xf32>
    tpu.vector_store %arg20[%c112_132, %c0_133], %144 {strides = array<i32>} : memref<144x64xf32, #tpu.memory_space<vmem>>, vector<16x64xf32>,
    %c8_134 = arith.constant 8 : index
    %c0_135 = arith.constant 0 : index
    %c0_136 = arith.constant 0 : index
    %146 = vector.load %arg9[%c8_134, %c0_135, %c0_136] : memref<9x16x64xf32, #tpu.memory_space<vmem>>, vector<1x16x64xf32>
    %147 = vector.shape_cast %146 : vector<1x16x64xf32> to vector<16x64xf32>
    %cst_137 = arith.constant dense<0.000000e+00> : vector<16x64xf32>
    %148 = tpu.matmul %106, %147, %cst_137 {dimension_numbers = #tpu.dot_dimension_numbers<[1], [0], [0], [1], [0, 0, 1, 1], [], []>} : vector<16x16xf32>, vector<16x64xf32>, vector<16x64xf32> -> vector<16x64xf32>
    %c128_138 = arith.constant 128 : index
    %c0_139 = arith.constant 0 : index
    %149 = vector.load %arg20[%c128_138, %c0_139] : memref<144x64xf32, #tpu.memory_space<vmem>>, vector<16x64xf32>
    tpu.vector_store %arg20[%c128_138, %c0_139], %148 {strides = array<i32>} : memref<144x64xf32, #tpu.memory_space<vmem>>, vector<16x64xf32>,
    %c0_140 = arith.constant 0 : index
    %c0_141 = arith.constant 0 : index
    %150 = vector.load %arg12[%c0_140, %c0_141] : memref<16x144xf32, #tpu.memory_space<vmem>>, vector<16x144xf32>
    %c0_142 = arith.constant 0 : index
    %c0_143 = arith.constant 0 : index
    %151 = vector.load %arg20[%c0_142, %c0_143] : memref<144x64xf32, #tpu.memory_space<vmem>>, vector<144x64xf32>
    %cst_144 = arith.constant dense<0.000000e+00> : vector<16x64xf32>
    %152 = tpu.matmul %150, %151, %cst_144 {dimension_numbers = #tpu.dot_dimension_numbers<[1], [0], [0], [1], [0, 0, 1, 1], [], []>} : vector<16x144xf32>, vector<144x64xf32>, vector<16x64xf32> -> vector<16x64xf32>
    %153 = vector.broadcast %108 : vector<16x1xf32> to vector<16x64xf32>
    %154 = arith.addf %152, %153 : vector<16x64xf32>
    %155 = vector.broadcast %110 : vector<16x1xf32> to vector<16x64xf32>
    %156 = arith.mulf %155, %113 : vector<16x64xf32>
    %157 = arith.addf %154, %156 : vector<16x64xf32>
    %cst_145 = arith.constant 0.000000e+00 : f32
    %158 = vector.broadcast %cst_145 : f32 to vector<16x64xf32>
    %159 = arith.cmpf ogt, %157, %158 : vector<16x64xf32>
    %cst_146 = arith.constant 2.000000e-01 : f32
    %160 = vector.broadcast %cst_146 : f32 to vector<16x64xf32>
    %161 = arith.mulf %160, %157 : vector<16x64xf32>
    %162 = arith.select %159, %157, %161 : vector<16x64xi1>, vector<16x64xf32>
    %cst_147 = arith.constant dense<0.000000e+00> : vector<16xf32>
    %163 = vector.multi_reduction <add>, %162, %cst_147 [1] : vector<16x64xf32> to vector<16xf32>
    %164 = vector.shape_cast %163 : vector<16xf32> to vector<16x1xf32>
    %cst_148 = arith.constant 6.400000e+01 : f32
    %165 = vector.broadcast %cst_148 : f32 to vector<16x1xf32>
    %166 = arith.divf %164, %165 : vector<16x1xf32>
    %167 = vector.broadcast %166 : vector<16x1xf32> to vector<16x64xf32>
    %168 = arith.subf %162, %167 : vector<16x64xf32>
    %169 = arith.mulf %168, %168 : vector<16x64xf32>
    %cst_149 = arith.constant dense<0.000000e+00> : vector<16xf32>
    %170 = vector.multi_reduction <add>, %169, %cst_149 [1] : vector<16x64xf32> to vector<16xf32>
    %171 = vector.shape_cast %170 : vector<16xf32> to vector<16x1xf32>
    %cst_150 = arith.constant 6.400000e+01 : f32
    %172 = vector.broadcast %cst_150 : f32 to vector<16x1xf32>
    %173 = arith.divf %171, %172 : vector<16x1xf32>
    %174 = vector.broadcast %166 : vector<16x1xf32> to vector<16x64xf32>
    %175 = arith.subf %162, %174 : vector<16x64xf32>
    %cst_151 = arith.constant 9.99999974E-6 : f32
    %176 = vector.broadcast %cst_151 : f32 to vector<16x1xf32>
    %177 = arith.addf %173, %176 : vector<16x1xf32>
    %178 = math.rsqrt %177 : vector<16x1xf32>
    %179 = vector.broadcast %178 : vector<16x1xf32> to vector<16x64xf32>
    %180 = arith.mulf %175, %179 : vector<16x64xf32>
    %181 = vector.broadcast %24 : vector<16x1xf32> to vector<16x64xf32>
    %182 = arith.mulf %181, %180 : vector<16x64xf32>
    %183 = vector.broadcast %25 : vector<16x1xf32> to vector<16x64xf32>
    %184 = arith.addf %182, %183 : vector<16x64xf32>
    %c4_152 = arith.constant 4 : index
    %c0_153 = arith.constant 0 : index
    %c0_154 = arith.constant 0 : index
    %185 = vector.load %arg14[%c4_152, %c0_153, %c0_154] : memref<6x16x1xf32, #tpu.memory_space<vmem>>, vector<1x16x1xf32>
    %186 = vector.shape_cast %185 : vector<1x16x1xf32> to vector<16x1xf32>
    %c5_155 = arith.constant 5 : index
    %c0_156 = arith.constant 0 : index
    %c0_157 = arith.constant 0 : index
    %187 = vector.load %arg14[%c5_155, %c0_156, %c0_157] : memref<6x16x1xf32, #tpu.memory_space<vmem>>, vector<1x16x1xf32>
    %188 = vector.shape_cast %187 : vector<1x16x1xf32> to vector<16x1xf32>
    %c2_158 = arith.constant 2 : index
    %c0_159 = arith.constant 0 : index
    %c0_160 = arith.constant 0 : index
    %189 = vector.load %arg1[%c2_158, %c0_159, %c0_160] : memref<3x16x256xf32, #tpu.memory_space<vmem>>, vector<1x16x256xf32>
    %190 = vector.shape_cast %189 : vector<1x16x256xf32> to vector<16x256xf32>
    %c0_161 = arith.constant 0 : index
    %c0_162 = arith.constant 0 : index
    %c0_163 = arith.constant 0 : index
    %191 = vector.load %arg10[%c0_161, %c0_162, %c0_163] : memref<9x64x256xf32, #tpu.memory_space<vmem>>, vector<1x64x256xf32>
    %192 = vector.shape_cast %191 : vector<1x64x256xf32> to vector<64x256xf32>
    %cst_164 = arith.constant dense<0.000000e+00> : vector<16x256xf32>
    %193 = tpu.matmul %184, %192, %cst_164 {dimension_numbers = #tpu.dot_dimension_numbers<[1], [0], [0], [1], [0, 0, 1, 1], [], []>} : vector<16x64xf32>, vector<64x256xf32>, vector<16x256xf32> -> vector<16x256xf32>
    %c0_165 = arith.constant 0 : index
    %c0_166 = arith.constant 0 : index
    %194 = vector.load %arg21[%c0_165, %c0_166] : memref<144x256xf32, #tpu.memory_space<vmem>>, vector<16x256xf32>
    tpu.vector_store %arg21[%c0_165, %c0_166], %193 {strides = array<i32>} : memref<144x256xf32, #tpu.memory_space<vmem>>, vector<16x256xf32>,
    %c1_167 = arith.constant 1 : index
    %c0_168 = arith.constant 0 : index
    %c0_169 = arith.constant 0 : index
    %195 = vector.load %arg10[%c1_167, %c0_168, %c0_169] : memref<9x64x256xf32, #tpu.memory_space<vmem>>, vector<1x64x256xf32>
    %196 = vector.shape_cast %195 : vector<1x64x256xf32> to vector<64x256xf32>
    %cst_170 = arith.constant dense<0.000000e+00> : vector<16x256xf32>
    %197 = tpu.matmul %184, %196, %cst_170 {dimension_numbers = #tpu.dot_dimension_numbers<[1], [0], [0], [1], [0, 0, 1, 1], [], []>} : vector<16x64xf32>, vector<64x256xf32>, vector<16x256xf32> -> vector<16x256xf32>
    %c16_171 = arith.constant 16 : index
    %c0_172 = arith.constant 0 : index
    %198 = vector.load %arg21[%c16_171, %c0_172] : memref<144x256xf32, #tpu.memory_space<vmem>>, vector<16x256xf32>
    tpu.vector_store %arg21[%c16_171, %c0_172], %197 {strides = array<i32>} : memref<144x256xf32, #tpu.memory_space<vmem>>, vector<16x256xf32>,
    %c2_173 = arith.constant 2 : index
    %c0_174 = arith.constant 0 : index
    %c0_175 = arith.constant 0 : index
    %199 = vector.load %arg10[%c2_173, %c0_174, %c0_175] : memref<9x64x256xf32, #tpu.memory_space<vmem>>, vector<1x64x256xf32>
    %200 = vector.shape_cast %199 : vector<1x64x256xf32> to vector<64x256xf32>
    %cst_176 = arith.constant dense<0.000000e+00> : vector<16x256xf32>
    %201 = tpu.matmul %184, %200, %cst_176 {dimension_numbers = #tpu.dot_dimension_numbers<[1], [0], [0], [1], [0, 0, 1, 1], [], []>} : vector<16x64xf32>, vector<64x256xf32>, vector<16x256xf32> -> vector<16x256xf32>
    %c32_177 = arith.constant 32 : index
    %c0_178 = arith.constant 0 : index
    %202 = vector.load %arg21[%c32_177, %c0_178] : memref<144x256xf32, #tpu.memory_space<vmem>>, vector<16x256xf32>
    tpu.vector_store %arg21[%c32_177, %c0_178], %201 {strides = array<i32>} : memref<144x256xf32, #tpu.memory_space<vmem>>, vector<16x256xf32>,
    %c3_179 = arith.constant 3 : index
    %c0_180 = arith.constant 0 : index
    %c0_181 = arith.constant 0 : index
    %203 = vector.load %arg10[%c3_179, %c0_180, %c0_181] : memref<9x64x256xf32, #tpu.memory_space<vmem>>, vector<1x64x256xf32>
    %204 = vector.shape_cast %203 : vector<1x64x256xf32> to vector<64x256xf32>
    %cst_182 = arith.constant dense<0.000000e+00> : vector<16x256xf32>
    %205 = tpu.matmul %184, %204, %cst_182 {dimension_numbers = #tpu.dot_dimension_numbers<[1], [0], [0], [1], [0, 0, 1, 1], [], []>} : vector<16x64xf32>, vector<64x256xf32>, vector<16x256xf32> -> vector<16x256xf32>
    %c48_183 = arith.constant 48 : index
    %c0_184 = arith.constant 0 : index
    %206 = vector.load %arg21[%c48_183, %c0_184] : memref<144x256xf32, #tpu.memory_space<vmem>>, vector<16x256xf32>
    tpu.vector_store %arg21[%c48_183, %c0_184], %205 {strides = array<i32>} : memref<144x256xf32, #tpu.memory_space<vmem>>, vector<16x256xf32>,
    %c4_185 = arith.constant 4 : index
    %c0_186 = arith.constant 0 : index
    %c0_187 = arith.constant 0 : index
    %207 = vector.load %arg10[%c4_185, %c0_186, %c0_187] : memref<9x64x256xf32, #tpu.memory_space<vmem>>, vector<1x64x256xf32>
    %208 = vector.shape_cast %207 : vector<1x64x256xf32> to vector<64x256xf32>
    %cst_188 = arith.constant dense<0.000000e+00> : vector<16x256xf32>
    %209 = tpu.matmul %184, %208, %cst_188 {dimension_numbers = #tpu.dot_dimension_numbers<[1], [0], [0], [1], [0, 0, 1, 1], [], []>} : vector<16x64xf32>, vector<64x256xf32>, vector<16x256xf32> -> vector<16x256xf32>
    %c64_189 = arith.constant 64 : index
    %c0_190 = arith.constant 0 : index
    %210 = vector.load %arg21[%c64_189, %c0_190] : memref<144x256xf32, #tpu.memory_space<vmem>>, vector<16x256xf32>
    tpu.vector_store %arg21[%c64_189, %c0_190], %209 {strides = array<i32>} : memref<144x256xf32, #tpu.memory_space<vmem>>, vector<16x256xf32>,
    %c5_191 = arith.constant 5 : index
    %c0_192 = arith.constant 0 : index
    %c0_193 = arith.constant 0 : index
    %211 = vector.load %arg10[%c5_191, %c0_192, %c0_193] : memref<9x64x256xf32, #tpu.memory_space<vmem>>, vector<1x64x256xf32>
    %212 = vector.shape_cast %211 : vector<1x64x256xf32> to vector<64x256xf32>
    %cst_194 = arith.constant dense<0.000000e+00> : vector<16x256xf32>
    %213 = tpu.matmul %184, %212, %cst_194 {dimension_numbers = #tpu.dot_dimension_numbers<[1], [0], [0], [1], [0, 0, 1, 1], [], []>} : vector<16x64xf32>, vector<64x256xf32>, vector<16x256xf32> -> vector<16x256xf32>
    %c80_195 = arith.constant 80 : index
    %c0_196 = arith.constant 0 : index
    %214 = vector.load %arg21[%c80_195, %c0_196] : memref<144x256xf32, #tpu.memory_space<vmem>>, vector<16x256xf32>
    tpu.vector_store %arg21[%c80_195, %c0_196], %213 {strides = array<i32>} : memref<144x256xf32, #tpu.memory_space<vmem>>, vector<16x256xf32>,
    %c6_197 = arith.constant 6 : index
    %c0_198 = arith.constant 0 : index
    %c0_199 = arith.constant 0 : index
    %215 = vector.load %arg10[%c6_197, %c0_198, %c0_199] : memref<9x64x256xf32, #tpu.memory_space<vmem>>, vector<1x64x256xf32>
    %216 = vector.shape_cast %215 : vector<1x64x256xf32> to vector<64x256xf32>
    %cst_200 = arith.constant dense<0.000000e+00> : vector<16x256xf32>
    %217 = tpu.matmul %184, %216, %cst_200 {dimension_numbers = #tpu.dot_dimension_numbers<[1], [0], [0], [1], [0, 0, 1, 1], [], []>} : vector<16x64xf32>, vector<64x256xf32>, vector<16x256xf32> -> vector<16x256xf32>
    %c96_201 = arith.constant 96 : index
    %c0_202 = arith.constant 0 : index
    %218 = vector.load %arg21[%c96_201, %c0_202] : memref<144x256xf32, #tpu.memory_space<vmem>>, vector<16x256xf32>
    tpu.vector_store %arg21[%c96_201, %c0_202], %217 {strides = array<i32>} : memref<144x256xf32, #tpu.memory_space<vmem>>, vector<16x256xf32>,
    %c7_203 = arith.constant 7 : index
    %c0_204 = arith.constant 0 : index
    %c0_205 = arith.constant 0 : index
    %219 = vector.load %arg10[%c7_203, %c0_204, %c0_205] : memref<9x64x256xf32, #tpu.memory_space<vmem>>, vector<1x64x256xf32>
    %220 = vector.shape_cast %219 : vector<1x64x256xf32> to vector<64x256xf32>
    %cst_206 = arith.constant dense<0.000000e+00> : vector<16x256xf32>
    %221 = tpu.matmul %184, %220, %cst_206 {dimension_numbers = #tpu.dot_dimension_numbers<[1], [0], [0], [1], [0, 0, 1, 1], [], []>} : vector<16x64xf32>, vector<64x256xf32>, vector<16x256xf32> -> vector<16x256xf32>
    %c112_207 = arith.constant 112 : index
    %c0_208 = arith.constant 0 : index
    %222 = vector.load %arg21[%c112_207, %c0_208] : memref<144x256xf32, #tpu.memory_space<vmem>>, vector<16x256xf32>
    tpu.vector_store %arg21[%c112_207, %c0_208], %221 {strides = array<i32>} : memref<144x256xf32, #tpu.memory_space<vmem>>, vector<16x256xf32>,
    %c8_209 = arith.constant 8 : index
    %c0_210 = arith.constant 0 : index
    %c0_211 = arith.constant 0 : index
    %223 = vector.load %arg10[%c8_209, %c0_210, %c0_211] : memref<9x64x256xf32, #tpu.memory_space<vmem>>, vector<1x64x256xf32>
    %224 = vector.shape_cast %223 : vector<1x64x256xf32> to vector<64x256xf32>
    %cst_212 = arith.constant dense<0.000000e+00> : vector<16x256xf32>
    %225 = tpu.matmul %184, %224, %cst_212 {dimension_numbers = #tpu.dot_dimension_numbers<[1], [0], [0], [1], [0, 0, 1, 1], [], []>} : vector<16x64xf32>, vector<64x256xf32>, vector<16x256xf32> -> vector<16x256xf32>
    %c128_213 = arith.constant 128 : index
    %c0_214 = arith.constant 0 : index
    %226 = vector.load %arg21[%c128_213, %c0_214] : memref<144x256xf32, #tpu.memory_space<vmem>>, vector<16x256xf32>
    tpu.vector_store %arg21[%c128_213, %c0_214], %225 {strides = array<i32>} : memref<144x256xf32, #tpu.memory_space<vmem>>, vector<16x256xf32>,
    %c0_215 = arith.constant 0 : index
    %c0_216 = arith.constant 0 : index
    %227 = vector.load %arg13[%c0_215, %c0_216] : memref<16x144xf32, #tpu.memory_space<vmem>>, vector<16x144xf32>
    %c0_217 = arith.constant 0 : index
    %c0_218 = arith.constant 0 : index
    %228 = vector.load %arg21[%c0_217, %c0_218] : memref<144x256xf32, #tpu.memory_space<vmem>>, vector<144x256xf32>
    %cst_219 = arith.constant dense<0.000000e+00> : vector<16x256xf32>
    %229 = tpu.matmul %227, %228, %cst_219 {dimension_numbers = #tpu.dot_dimension_numbers<[1], [0], [0], [1], [0, 0, 1, 1], [], []>} : vector<16x144xf32>, vector<144x256xf32>, vector<16x256xf32> -> vector<16x256xf32>
    %230 = vector.broadcast %186 : vector<16x1xf32> to vector<16x256xf32>
    %231 = arith.addf %229, %230 : vector<16x256xf32>
    %232 = vector.broadcast %188 : vector<16x1xf32> to vector<16x256xf32>
    %233 = arith.mulf %232, %190 : vector<16x256xf32>
    %234 = arith.addf %231, %233 : vector<16x256xf32>
    %cst_220 = arith.constant 0.000000e+00 : f32
    %235 = vector.broadcast %cst_220 : f32 to vector<16x256xf32>
    %236 = arith.cmpf ogt, %234, %235 : vector<16x256xf32>
    %cst_221 = arith.constant 2.000000e-01 : f32
    %237 = vector.broadcast %cst_221 : f32 to vector<16x256xf32>
    %238 = arith.mulf %237, %234 : vector<16x256xf32>
    %239 = arith.select %236, %234, %238 : vector<16x256xi1>, vector<16x256xf32>
    %cst_222 = arith.constant dense<0.000000e+00> : vector<16xf32>
    %240 = vector.multi_reduction <add>, %239, %cst_222 [1] : vector<16x256xf32> to vector<16xf32>
    %241 = vector.shape_cast %240 : vector<16xf32> to vector<16x1xf32>
    %cst_223 = arith.constant 2.560000e+02 : f32
    %242 = vector.broadcast %cst_223 : f32 to vector<16x1xf32>
    %243 = arith.divf %241, %242 : vector<16x1xf32>
    %244 = vector.broadcast %243 : vector<16x1xf32> to vector<16x256xf32>
    %245 = arith.subf %239, %244 : vector<16x256xf32>
    %246 = arith.mulf %245, %245 : vector<16x256xf32>
    %cst_224 = arith.constant dense<0.000000e+00> : vector<16xf32>
    %247 = vector.multi_reduction <add>, %246, %cst_224 [1] : vector<16x256xf32> to vector<16xf32>
    %248 = vector.shape_cast %247 : vector<16xf32> to vector<16x1xf32>
    %cst_225 = arith.constant 2.560000e+02 : f32
    %249 = vector.broadcast %cst_225 : f32 to vector<16x1xf32>
    %250 = arith.divf %248, %249 : vector<16x1xf32>
    %251 = vector.broadcast %243 : vector<16x1xf32> to vector<16x256xf32>
    %252 = arith.subf %239, %251 : vector<16x256xf32>
    %cst_226 = arith.constant 9.99999974E-6 : f32
    %253 = vector.broadcast %cst_226 : f32 to vector<16x1xf32>
    %254 = arith.addf %250, %253 : vector<16x1xf32>
    %255 = math.rsqrt %254 : vector<16x1xf32>
    %256 = vector.broadcast %255 : vector<16x1xf32> to vector<16x256xf32>
    %257 = arith.mulf %252, %256 : vector<16x256xf32>
    %258 = vector.broadcast %26 : vector<16x1xf32> to vector<16x256xf32>
    %259 = arith.mulf %258, %257 : vector<16x256xf32>
    %260 = vector.broadcast %27 : vector<16x1xf32> to vector<16x256xf32>
    %261 = arith.addf %259, %260 : vector<16x256xf32>
    %c0_227 = arith.constant 0 : index
    %c0_228 = arith.constant 0 : index
    %c0_229 = arith.constant 0 : index
    %262 = vector.load %arg15[%c0_227, %c0_228, %c0_229] : memref<2x16x16xf32, #tpu.memory_space<vmem>>, vector<1x16x16xf32>
    %263 = vector.shape_cast %262 : vector<1x16x16xf32> to vector<16x16xf32>
    %cst_230 = arith.constant dense<0.000000e+00> : vector<16x64xf32>
    %264 = tpu.matmul %263, %184, %cst_230 {dimension_numbers = #tpu.dot_dimension_numbers<[1], [0], [0], [1], [0, 0, 1, 1], [], []>} : vector<16x16xf32>, vector<16x64xf32>, vector<16x64xf32> -> vector<16x64xf32>
    %c0_231 = arith.constant 0 : index
    %c0_232 = arith.constant 0 : index
    %c0_233 = arith.constant 0 : index
    %265 = vector.load %arg16[%c0_231, %c0_232, %c0_233] : memref<2x16x1xf32, #tpu.memory_space<vmem>>, vector<1x16x1xf32>
    %266 = vector.shape_cast %265 : vector<1x16x1xf32> to vector<16x1xf32>
    %267 = vector.broadcast %266 : vector<16x1xf32> to vector<16x64xf32>
    %268 = arith.addf %264, %267 : vector<16x64xf32>
    %c0_234 = arith.constant 0 : index
    %c0_235 = arith.constant 0 : index
    %269 = vector.load %arg17[%c0_234, %c0_235] : memref<64x256xf32, #tpu.memory_space<vmem>>, vector<64x256xf32>
    %cst_236 = arith.constant dense<0.000000e+00> : vector<16x256xf32>
    %270 = tpu.matmul %268, %269, %cst_236 {dimension_numbers = #tpu.dot_dimension_numbers<[1], [0], [0], [1], [0, 0, 1, 1], [], []>} : vector<16x64xf32>, vector<64x256xf32>, vector<16x256xf32> -> vector<16x256xf32>
    %c1_237 = arith.constant 1 : index
    %c0_238 = arith.constant 0 : index
    %c0_239 = arith.constant 0 : index
    %271 = vector.load %arg15[%c1_237, %c0_238, %c0_239] : memref<2x16x16xf32, #tpu.memory_space<vmem>>, vector<1x16x16xf32>
    %272 = vector.shape_cast %271 : vector<1x16x16xf32> to vector<16x16xf32>
    %cst_240 = arith.constant dense<0.000000e+00> : vector<16x256xf32>
    %273 = tpu.matmul %272, %261, %cst_240 {dimension_numbers = #tpu.dot_dimension_numbers<[1], [0], [0], [1], [0, 0, 1, 1], [], []>} : vector<16x16xf32>, vector<16x256xf32>, vector<16x256xf32> -> vector<16x256xf32>
    %c1_241 = arith.constant 1 : index
    %c0_242 = arith.constant 0 : index
    %c0_243 = arith.constant 0 : index
    %274 = vector.load %arg16[%c1_241, %c0_242, %c0_243] : memref<2x16x1xf32, #tpu.memory_space<vmem>>, vector<1x16x1xf32>
    %275 = vector.shape_cast %274 : vector<1x16x1xf32> to vector<16x1xf32>
    %276 = vector.broadcast %275 : vector<16x1xf32> to vector<16x256xf32>
    %277 = arith.addf %273, %276 : vector<16x256xf32>
    %278 = arith.addf %277, %270 : vector<16x256xf32>
    %c0_244 = arith.constant 0 : index
    %c0_245 = arith.constant 0 : index
    %279 = vector.load %arg18[%c0_244, %c0_245] : memref<16x256xf32, #tpu.memory_space<vmem>>, vector<16x256xf32>
    tpu.vector_store %arg18[%c0_244, %c0_245], %278 {strides = array<i32>} : memref<16x256xf32, #tpu.memory_space<vmem>>, vector<16x256xf32>,
    return
  }
}

</mosaic_0001>

<llo_original>
// kernel: generator_forward.3
$region0: #{generator_forward.3}
  #allocation0 [shape = 'u32[]', space=smem, size = 0x4, offset = 0x4, fixed_abs, tag = 'smem constant byte address 0x4 - core index']
  #allocation1 [shape = 'u32[144,128]{1,0:T(1,128)}', space=vmem, size = 0x12000, scoped, tag = 'internal scratch']
  #allocation2 [shape = 'f32[144,16]{1,0:T(8,128)}', space=vmem, size = 0x12000, scoped, tag = 'scratch operand']
  #allocation3 [shape = 'f32[144,64]{1,0:T(8,128)}', space=vmem, size = 0x12000, scoped, tag = 'scratch operand']
  #allocation4 [shape = 'f32[144,256]{1,0:T(8,128)}', space=vmem, size = 0x24000, scoped, tag = 'scratch operand']
  %s0 = inlined_call_operand.vmem [shape: f32[64,1], index: 0, kind: input, shape index: {}]
  %s1 = inlined_call_operand.vmem [shape: f32[3,16,256], index: 1, kind: input, shape index: {}]
  %s2 = inlined_call_operand.hbm [shape: f32[64,64], index: 2, kind: input, shape index: {}]
  %s3 = inlined_call_operand.hbm [shape: f32[64,64], index: 3, kind: input, shape index: {}]
  %s4 = inlined_call_operand.hbm [shape: f32[64,64], index: 4, kind: input, shape index: {}]
  %s5 = inlined_call_operand.vmem [shape: f32[96,64], index: 5, kind: input, shape index: {}]
  %s6 = inlined_call_operand.vmem [shape: f32[288,1], index: 6, kind: input, shape index: {}]
  %s7 = inlined_call_operand.hbm [shape: f32[16,16], index: 7, kind: input, shape index: {}]
  %s8 = inlined_call_operand.hbm [shape: f32[9,16,16], index: 8, kind: input, shape index: {}]
  %s9 = inlined_call_operand.hbm [shape: f32[9,16,64], index: 9, kind: input, shape index: {}]
  %s10 = inlined_call_operand.vmem [shape: f32[9,64,256], index: 10, kind: input, shape index: {}]
  %s11 = inlined_call_operand.hbm [shape: f32[16,144], index: 11, kind: input, shape index: {}]
  %s12 = inlined_call_operand.hbm [shape: f32[16,144], index: 12, kind: input, shape index: {}]
  %s13 = inlined_call_operand.hbm [shape: f32[16,144], index: 13, kind: input, shape index: {}]
  %s14 = inlined_call_operand.vmem [shape: f32[6,16,1], index: 14, kind: input, shape index: {}]
  %s15 = inlined_call_operand.hbm [shape: f32[2,16,16], index: 15, kind: input, shape index: {}]
  %s16 = inlined_call_operand.vmem [shape: f32[2,16,1], index: 16, kind: input, shape index: {}]
  %s17 = inlined_call_operand.vmem [shape: f32[64,256], index: 17, kind: input, shape index: {}]
  %s18 = inlined_call_operand.vmem [shape: f32[16,256], index: 18, kind: output, shape index: {}]
  %s19 = sld [smem:[#allocation0]]
  $region122: #{generator_forward.3} parent=0
    _
  %s21 = ssub.s32 1, %s19
  %s22 = scalar_select 0, %s21, %s19
  $region1: #{generator_forward.3} parent=0
    #allocation5 [shape = 'u8[32768]{0}', space=vmem, size = 0x8000, scoped, tag = 'input window, operand 2, single buffered']
    #allocation6 [shape = 's32[1]{0}', space=sflag, size = 0x4, scoped, tag = 'scoped memory for generator_forward.3']
    #allocation7 [shape = 'u8[32768]{0}', space=vmem, size = 0x8000, scoped, tag = 'input window, operand 3, single buffered']
    #allocation8 [shape = 's32[1]{0}', space=sflag, size = 0x4, scoped, tag = 'scoped memory for generator_forward.3']
    #allocation9 [shape = 'u8[32768]{0}', space=vmem, size = 0x8000, scoped, tag = 'input window, operand 4, single buffered']
    #allocation10 [shape = 'u8[8192]{0}', space=vmem, size = 0x2000, scoped, tag = 'input window, operand 7, single buffered']
    #allocation11 [shape = 's32[1]{0}', space=sflag, size = 0x4, scoped, tag = 'scoped memory for generator_forward.3']
    #allocation12 [shape = 'u8[73728]{0}', space=vmem, size = 0x12000, scoped, tag = 'input window, operand 8, single buffered']
    #allocation13 [shape = 'u8[73728]{0}', space=vmem, size = 0x12000, scoped, tag = 'input window, operand 9, single buffered']
    #allocation14 [shape = 's32[1]{0}', space=sflag, size = 0x4, scoped, tag = 'scoped memory for generator_forward.3']
    #allocation15 [shape = 'u8[16384]{0}', space=vmem, size = 0x4000, scoped, tag = 'input window, operand 11, single buffered']
    #allocation16 [shape = 'u8[16384]{0}', space=vmem, size = 0x4000, scoped, tag = 'input window, operand 12, single buffered']
    #allocation17 [shape = 's32[1]{0}', space=sflag, size = 0x4, scoped, tag = 'scoped memory for generator_forward.3']
    #allocation18 [shape = 'u8[16384]{0}', space=vmem, size = 0x4000, scoped, tag = 'input window, operand 13, single buffered']
    #allocation19 [shape = 'u8[16384]{0}', space=vmem, size = 0x4000, scoped, tag = 'input window, operand 15, single buffered']
    #allocation20 [shape = 's32[1]{0}', space=sflag, size = 0x4, scoped, tag = 'scoped memory for generator_forward.3']
    %23 = vsyncpa [#allocation6], 0
    %24 = vsyncpa [#allocation8], 0
    %25 = vsyncpa [#allocation11], 0
    %26 = vsyncpa [#allocation14], 0
    %27 = vsyncpa [#allocation17], 0
    %28 = vsyncpa [#allocation20], 0
    // Predicated region
    $region2: #{generator_forward.3} parent=1 // pred_check
      _
    $region3: #{generator_forward.3} parent=1 // pred_check_branch
      %30 = sbr.rel (0) target = $region5
    $region4: #{generator_forward.3} parent=1 // pred_region
      _
    $region5: #{generator_forward.3} parent=1 // pred_fallthru
      _
    // Predicated region
    $region6: #{generator_forward.3} parent=1 // pred_check
      _
    $region7: #{generator_forward.3} parent=1 // pred_check_branch
      %32 = sbr.rel (0) target = $region9
    $region8: #{generator_forward.3} parent=1 // pred_region
      _
    $region9: #{generator_forward.3} parent=1 // pred_fallthru
      _
    // Predicated region
    $region10: #{generator_forward.3} parent=1 // pred_check
      _
    $region11: #{generator_forward.3} parent=1 // pred_check_branch
      %34 = sbr.rel (0) target = $region13
    $region12: #{generator_forward.3} parent=1 // pred_region
      %s36 = ssub.s32 1024, 1024
      %37 = vsyncadd [#allocation6], %s36
      %s38 = sshll.u32 [#allocation5], 4
      %s39 = int_to_ptr.vmem [resolvable:$true] %s38
      %44 = dma.hbm_to_vmem [thread:$0]  %s2, 1024, %s39, [#allocation6], 128, 128, 8
    $region13: #{generator_forward.3} parent=1 // pred_fallthru
      _
    // Predicated region
    $region14: #{generator_forward.3} parent=1 // pred_check
      _
    $region15: #{generator_forward.3} parent=1 // pred_check_branch
      %46 = sbr.rel (0) target = $region17
    $region16: #{generator_forward.3} parent=1 // pred_region
      %s48 = ssub.s32 1024, 1024
      %49 = vsyncadd [#allocation8], %s48
      %s50 = sshll.u32 [#allocation7], 4
      %s51 = int_to_ptr.vmem [resolvable:$true] %s50
      %56 = dma.hbm_to_vmem [thread:$0]  %s3, 1024, %s51, [#allocation8], 128, 128, 8
    $region17: #{generator_forward.3} parent=1 // pred_fallthru
      _
    // Predicated region
    $region18: #{generator_forward.3} parent=1 // pred_check
      _
    $region19: #{generator_forward.3} parent=1 // pred_check_branch
      %58 = sbr.rel (0) target = $region21
    $region20: #{generator_forward.3} parent=1 // pred_region
      %s60 = ssub.s32 1024, 1024
      %61 = vsyncadd [#allocation8], %s60
      %s62 = sshll.u32 [#allocation9], 4
      %s63 = int_to_ptr.vmem [resolvable:$true] %s62
      %68 = dma.hbm_to_vmem [thread:$0]  %s4, 1024, %s63, [#allocation8], 128, 128, 8
    $region21: #{generator_forward.3} parent=1 // pred_fallthru
      _
    // Predicated region
    $region22: #{generator_forward.3} parent=1 // pred_check
      _
    $region23: #{generator_forward.3} parent=1 // pred_check_branch
      %70 = sbr.rel (0) target = $region25
    $region24: #{generator_forward.3} parent=1 // pred_region
      _
    $region25: #{generator_forward.3} parent=1 // pred_fallthru
      _
    // Predicated region
    $region26: #{generator_forward.3} parent=1 // pred_check
      _
    $region27: #{generator_forward.3} parent=1 // pred_check_branch
      %72 = sbr.rel (0) target = $region29
    $region28: #{generator_forward.3} parent=1 // pred_region
      _
    $region29: #{generator_forward.3} parent=1 // pred_fallthru
      _
    // Predicated region
    $region30: #{generator_forward.3} parent=1 // pred_check
      _
    $region31: #{generator_forward.3} parent=1 // pred_check_branch
      %74 = sbr.rel (0) target = $region33
    $region32: #{generator_forward.3} parent=1 // pred_region
      %s76 = ssub.s32 256, 256
      %77 = vsyncadd [#allocation11], %s76
      %s78 = sshll.u32 [#allocation10], 4
      %s79 = int_to_ptr.vmem [resolvable:$true] %s78
      %84 = dma.hbm_to_vmem [thread:$0]  %s7, 256, %s79, [#allocation11], 128, 128, 8
    $region33: #{generator_forward.3} parent=1 // pred_fallthru
      _
    // Predicated region
    $region34: #{generator_forward.3} parent=1 // pred_check
      _
    $region35: #{generator_forward.3} parent=1 // pred_check_branch
      %86 = sbr.rel (0) target = $region37
    $region36: #{generator_forward.3} parent=1 // pred_region
      %s88 = ssub.s32 2304, 2304
      %89 = vsyncadd [#allocation11], %s88
      %s90 = sshll.u32 [#allocation12], 4
      %s91 = int_to_ptr.vmem [resolvable:$true] %s90
      %96 = dma.hbm_to_vmem [thread:$0]  %s8, 2304, %s91, [#allocation11], 128, 128, 8
    $region37: #{generator_forward.3} parent=1 // pred_fallthru
      _
    // Predicated region
    $region38: #{generator_forward.3} parent=1 // pred_check
      _
    $region39: #{generator_forward.3} parent=1 // pred_check_branch
      %98 = sbr.rel (0) target = $region41
    $region40: #{generator_forward.3} parent=1 // pred_region
      %s100 = ssub.s32 2304, 2304
      %101 = vsyncadd [#allocation14], %s100
      %s102 = sshll.u32 [#allocation13], 4
      %s103 = int_to_ptr.vmem [resolvable:$true] %s102
      %108 = dma.hbm_to_vmem [thread:$0]  %s9, 2304, %s103, [#allocation14], 128, 128, 8
    $region41: #{generator_forward.3} parent=1 // pred_fallthru
      _
    // Predicated region
    $region42: #{generator_forward.3} parent=1 // pred_check
      _
    $region43: #{generator_forward.3} parent=1 // pred_check_branch
      %110 = sbr.rel (0) target = $region45
    $region44: #{generator_forward.3} parent=1 // pred_region
      _
    $region45: #{generator_forward.3} parent=1 // pred_fallthru
      _
    // Predicated region
    $region46: #{generator_forward.3} parent=1 // pred_check
      _
    $region47: #{generator_forward.3} parent=1 // pred_check_branch
      %112 = sbr.rel (0) target = $region49
    $region48: #{generator_forward.3} parent=1 // pred_region
      %s114 = ssub.s32 512, 512
      %115 = vsyncadd [#allocation14], %s114
      %s116 = sshll.u32 [#allocation15], 4
      %s117 = int_to_ptr.vmem [resolvable:$true] %s116
      %122 = dma.hbm_to_vmem [thread:$0]  %s11, 512, %s117, [#allocation14], 256, 256, 16
    $region49: #{generator_forward.3} parent=1 // pred_fallthru
      _
    // Predicated region
    $region50: #{generator_forward.3} parent=1 // pred_check
      _
    $region51: #{generator_forward.3} parent=1 // pred_check_branch
      %124 = sbr.rel (0) target = $region53
    $region52: #{generator_forward.3} parent=1 // pred_region
      %s126 = ssub.s32 512, 512
      %127 = vsyncadd [#allocation17], %s126
      %s128 = sshll.u32 [#allocation16], 4
      %s129 = int_to_ptr.vmem [resolvable:$true] %s128
      %134 = dma.hbm_to_vmem [thread:$0]  %s12, 512, %s129, [#allocation17], 256, 256, 16
    $region53: #{generator_forward.3} parent=1 // pred_fallthru
      _
    // Predicated region
    $region54: #{generator_forward.3} parent=1 // pred_check
      _
    $region55: #{generator_forward.3} parent=1 // pred_check_branch
      %136 = sbr.rel (0) target = $region57
    $region56: #{generator_forward.3} parent=1 // pred_region
      %s138 = ssub.s32 512, 512
      %139 = vsyncadd [#allocation17], %s138
      %s140 = sshll.u32 [#allocation18], 4
      %s141 = int_to_ptr.vmem [resolvable:$true] %s140
      %146 = dma.hbm_to_vmem [thread:$0]  %s13, 512, %s141, [#allocation17], 256, 256, 16
    $region57: #{generator_forward.3} parent=1 // pred_fallthru
      _
    // Predicated region
    $region58: #{generator_forward.3} parent=1 // pred_check
      _
    $region59: #{generator_forward.3} parent=1 // pred_check_branch
      %148 = sbr.rel (0) target = $region61
    $region60: #{generator_forward.3} parent=1 // pred_region
      _
    $region61: #{generator_forward.3} parent=1 // pred_fallthru
      _
    // Predicated region
    $region62: #{generator_forward.3} parent=1 // pred_check
      _
    $region63: #{generator_forward.3} parent=1 // pred_check_branch
      %150 = sbr.rel (0) target = $region65
    $region64: #{generator_forward.3} parent=1 // pred_region
      %s152 = ssub.s32 512, 512
      %153 = vsyncadd [#allocation20], %s152
      %s154 = sshll.u32 [#allocation19], 4
      %s155 = int_to_ptr.vmem [resolvable:$true] %s154
      %160 = dma.hbm_to_vmem [thread:$0]  %s15, 512, %s155, [#allocation20], 128, 128, 8
    $region65: #{generator_forward.3} parent=1 // pred_fallthru
      _
    // Predicated region
    $region66: #{generator_forward.3} parent=1 // pred_check
      _
    $region67: #{generator_forward.3} parent=1 // pred_check_branch
      %162 = sbr.rel (0) target = $region69
    $region68: #{generator_forward.3} parent=1 // pred_region
      _
    $region69: #{generator_forward.3} parent=1 // pred_fallthru
      _
    // Predicated region
    $region70: #{generator_forward.3} parent=1 // pred_check
      _
    $region71: #{generator_forward.3} parent=1 // pred_check_branch
      %164 = sbr.rel (0) target = $region73
    $region72: #{generator_forward.3} parent=1 // pred_region
      _
    $region73: #{generator_forward.3} parent=1 // pred_fallthru
      _
    // Predicated region
    $region74: #{generator_forward.3} parent=1 // pred_check
      _
    $region75: #{generator_forward.3} parent=1 // pred_check_branch
      %166 = sbr.rel (0) target = $region77
    $region76: #{generator_forward.3} parent=1 // pred_region
      %167 = dma.done [#allocation6], 1024
    $region77: #{generator_forward.3} parent=1 // pred_fallthru
      _
    // Predicated region
    $region78: #{generator_forward.3} parent=1 // pred_check
      _
    $region79: #{generator_forward.3} parent=1 // pred_check_branch
      %169 = sbr.rel (0) target = $region81
    $region80: #{generator_forward.3} parent=1 // pred_region
      %170 = dma.done [#allocation8], 1024
    $region81: #{generator_forward.3} parent=1 // pred_fallthru
      _
    // Predicated region
    $region82: #{generator_forward.3} parent=1 // pred_check
      _
    $region83: #{generator_forward.3} parent=1 // pred_check_branch
      %172 = sbr.rel (0) target = $region85
    $region84: #{generator_forward.3} parent=1 // pred_region
      %173 = dma.done [#allocation8], 1024
    $region85: #{generator_forward.3} parent=1 // pred_fallthru
      _
    // Predicated region
    $region86: #{generator_forward.3} parent=1 // pred_check
      _
    $region87: #{generator_forward.3} parent=1 // pred_check_branch
      %175 = sbr.rel (0) target = $region89
    $region88: #{generator_forward.3} parent=1 // pred_region
      %176 = dma.done [#allocation11], 256
    $region89: #{generator_forward.3} parent=1 // pred_fallthru
      _
    // Predicated region
    $region90: #{generator_forward.3} parent=1 // pred_check
      _
    $region91: #{generator_forward.3} parent=1 // pred_check_branch
      %178 = sbr.rel (0) target = $region93
    $region92: #{generator_forward.3} parent=1 // pred_region
      %179 = dma.done [#allocation11], 2304
    $region93: #{generator_forward.3} parent=1 // pred_fallthru
      _
    // Predicated region
    $region94: #{generator_forward.3} parent=1 // pred_check
      _
    $region95: #{generator_forward.3} parent=1 // pred_check_branch
      %181 = sbr.rel (0) target = $region97
    $region96: #{generator_forward.3} parent=1 // pred_region
      %182 = dma.done [#allocation14], 2304
    $region97: #{generator_forward.3} parent=1 // pred_fallthru
      _
    // Predicated region
    $region98: #{generator_forward.3} parent=1 // pred_check
      _
    $region99: #{generator_forward.3} parent=1 // pred_check_branch
      %184 = sbr.rel (0) target = $region101
    $region100: #{generator_forward.3} parent=1 // pred_region
      %185 = dma.done [#allocation14], 512
    $region101: #{generator_forward.3} parent=1 // pred_fallthru
      _
    // Predicated region
    $region102: #{generator_forward.3} parent=1 // pred_check
      _
    $region103: #{generator_forward.3} parent=1 // pred_check_branch
      %187 = sbr.rel (0) target = $region105
    $region104: #{generator_forward.3} parent=1 // pred_region
      %188 = dma.done [#allocation17], 512
    $region105: #{generator_forward.3} parent=1 // pred_fallthru
      _
    // Predicated region
    $region106: #{generator_forward.3} parent=1 // pred_check
      _
    $region107: #{generator_forward.3} parent=1 // pred_check_branch
      %190 = sbr.rel (0) target = $region109
    $region108: #{generator_forward.3} parent=1 // pred_region
      %191 = dma.done [#allocation17], 512
    $region109: #{generator_forward.3} parent=1 // pred_fallthru
      _
    // Predicated region
    $region110: #{generator_forward.3} parent=1 // pred_check
      _
    $region111: #{generator_forward.3} parent=1 // pred_check_branch
      %193 = sbr.rel (0) target = $region113
    $region112: #{generator_forward.3} parent=1 // pred_region
      %194 = dma.done [#allocation20], 512
    $region113: #{generator_forward.3} parent=1 // pred_fallthru
      _
    %v195 = vld [vmem:[%s6] sm:$0xff]
    %v196 = vld [vmem:[%s6 + $0x8] sm:$0xff]
    %v197 = vld [vmem:[%s6 + $0x10] sm:$0xff]
    %v198 = vld [vmem:[%s6 + $0x18] sm:$0xff]
    %v199 = vld [vmem:[%s6 + $0x20] sm:$0xff]
    %v200 = vld [vmem:[%s6 + $0x28] sm:$0xff]
    %v201 = vld [vmem:[%s6 + $0x30] sm:$0xff]
    %v202 = vld [vmem:[%s6 + $0x38] sm:$0xff]
    %v203 = vld [vmem:[%s6 + $0x40] sm:$0xff]
    %v204 = vld [vmem:[%s6 + $0x48] sm:$0xff]
    %v205 = vld [vmem:[%s6 + $0x50] sm:$0xff]
    %v206 = vld [vmem:[%s6 + $0x58] sm:$0xff]
    %v207 = vld [vmem:[%s6 + $0x60] sm:$0xff]
    %v208 = vld [vmem:[%s6 + $0x68] sm:$0xff]
    %v209 = vld [vmem:[%s6 + $0x70] sm:$0xff]
    %v210 = vld [vmem:[%s6 + $0x78] sm:$0xff]
    %v211 = vld [vmem:[%s6 + $0x80] sm:$0xff]
    %v212 = vld [vmem:[%s6 + $0x88] sm:$0xff]
    %v213 = vld [vmem:[%s6 + $0x90] sm:$0xff]
    %v214 = vld [vmem:[%s6 + $0x98] sm:$0xff]
    %v215 = vld [vmem:[%s6 + $0xa0] sm:$0xff]
    %v216 = vld [vmem:[%s6 + $0xa8] sm:$0xff]
    %v217 = vld [vmem:[%s6 + $0xb0] sm:$0xff]
    %v218 = vld [vmem:[%s6 + $0xb8] sm:$0xff]
    %v219 = vld [vmem:[%s6 + $0xc0] sm:$0xff]
    %v220 = vld [vmem:[%s6 + $0xc8] sm:$0xff]
    %v221 = vld [vmem:[%s6 + $0xd0] sm:$0xff]
    %v222 = vld [vmem:[%s6 + $0xd8] sm:$0xff]
    %v223 = vld [vmem:[%s6 + $0xe0] sm:$0xff]
    %v224 = vld [vmem:[%s6 + $0xe8] sm:$0xff]
    %v225 = vld [vmem:[%s6 + $0xf0] sm:$0xff]
    %v226 = vld [vmem:[%s6 + $0xf8] sm:$0xff]
    %v227 = vld [vmem:[%s6 + $0x100] sm:$0xff]
    %v228 = vld [vmem:[%s6 + $0x108] sm:$0xff]
    %v229 = vld [vmem:[%s6 + $0x110] sm:$0xff]
    %v230 = vld [vmem:[%s6 + $0x118] sm:$0xff]
    %v231 = vld [vmem:[#allocation5] sm:$0xff]
    %v232 = vld [vmem:[#allocation5 + $0x8] sm:$0xff]
    %v233 = vld [vmem:[#allocation5 + $0x10] sm:$0xff]
    %v234 = vld [vmem:[#allocation5 + $0x18] sm:$0xff]
    %v235 = vld [vmem:[#allocation5 + $0x20] sm:$0xff]
    %v236 = vld [vmem:[#allocation5 + $0x28] sm:$0xff]
    %v237 = vld [vmem:[#allocation5 + $0x30] sm:$0xff]
    %v238 = vld [vmem:[#allocation5 + $0x38] sm:$0xff]
    %v239 = vld [vmem:[%s0] sm:$0xff]
    %v240 = vld [vmem:[%s0 + $0x8] sm:$0xff]
    %v241 = vld [vmem:[%s0 + $0x10] sm:$0xff]
    %v242 = vld [vmem:[%s0 + $0x18] sm:$0xff]
    %v243 = vld [vmem:[%s0 + $0x20] sm:$0xff]
    %v244 = vld [vmem:[%s0 + $0x28] sm:$0xff]
    %v245 = vld [vmem:[%s0 + $0x30] sm:$0xff]
    %v246 = vld [vmem:[%s0 + $0x38] sm:$0xff]
    %vm247 = vcmask 523264
    %v249 = vsel %vm247, %v231, 0
    %v252 = vsel %vm247, %v232, 0
    %v255 = vsel %vm247, %v233, 0
    %v258 = vsel %vm247, %v234, 0
    %v261 = vsel %vm247, %v235, 0
    %v264 = vsel %vm247, %v236, 0
    %v267 = vsel %vm247, %v237, 0
    %v270 = vsel %vm247, %v238, 0
    %272 = vmatprep.subr.mxu0 0.0
    %273 = vmatpush1.msra.mxu0 %v239
    %274 = vmatprep.subr.mxu0 0.0
    %275 = vmatpush1.msra.mxu0 %v240
    %276 = vmatprep.subr.mxu0 0.0
    %277 = vmatpush1.msra.mxu0 %v241
    %278 = vmatprep.subr.mxu0 0.0
    %279 = vmatpush1.msra.mxu0 %v242
    %280 = vmatprep.subr.mxu0 0.0
    %281 = vmatpush1.msra.mxu0 %v243
    %282 = vmatprep.subr.mxu0 0.0
    %283 = vmatpush1.msra.mxu0 %v244
    %284 = vmatprep.subr.mxu0 0.0
    %285 = vmatpush1.msra.mxu0 %v245
    %286 = vmatprep.subr.mxu0 0.0
    %287 = vmatpush1.msra.mxu0 %v246
    %288 = vmatprep.subr.mxu0 0.0
    %289 = vmatpush1.msra.mxu0 0.0
    %290 = vmatprep.subr.mxu0 0.0
    %291 = vmatpush1.msra.mxu0 0.0
    %292 = vmatprep.subr.mxu0 0.0
    %293 = vmatpush1.msra.mxu0 0.0
    %294 = vmatprep.subr.mxu0 0.0
    %295 = vmatpush1.msra.mxu0 0.0
    %296 = vmatprep.subr.mxu0 0.0
    %297 = vmatpush1.msra.mxu0 0.0
    %298 = vmatprep.subr.mxu0 0.0
    %299 = vmatpush1.msra.mxu0 0.0
    %300 = vmatprep.subr.mxu0 0.0
    %301 = vmatpush1.msra.mxu0 0.0
    %302 = vmatprep.subr.mxu0 0.0
    %303 = vmatpush1.msra.mxu0 0.0
    %304 = vmatprep.subr.mxu0 0.0
    %305 = vmatpush1.msra.mxu0 0.0
    %306 = vmatprep.subr.mxu0 0.0
    %307 = vmatpush1.msra.mxu0 0.0
    %308 = vmatprep.subr.mxu0 0.0
    %309 = vmatpush1.msra.mxu0 0.0
    %310 = vmatprep.subr.mxu0 0.0
    %311 = vmatpush1.msra.mxu0 0.0
    %312 = vmatprep.subr.mxu0 0.0
    %313 = vmatpush1.msra.mxu0 0.0
    %314 = vmatprep.subr.mxu0 0.0
    %315 = vmatpush1.msra.mxu0 0.0
    %316 = vmatprep.subr.mxu0 0.0
    %317 = vmatpush1.msra.mxu0 0.0
    %318 = vmatprep.subr.mxu0 0.0
    %319 = vmatpush1.msra.mxu0 0.0
    %320 = vmatprep.subr.mxu0 0.0
    %321 = vmatpush1.msra.mxu0 0.0
    %322 = vmatprep.subr.mxu0 0.0
    %323 = vmatpush1.msra.mxu0 0.0
    %324 = vmatprep.subr.mxu0 0.0
    %325 = vmatpush1.msra.mxu0 0.0
    %326 = vmatprep.subr.mxu0 0.0
    %327 = vmatpush1.msra.mxu0 0.0
    %328 = vmatprep.subr.mxu0 0.0
    %329 = vmatpush1.msra.mxu0 0.0
    %330 = vmatprep.subr.mxu0 0.0
    %331 = vmatpush1.msra.mxu0 0.0
    %332 = vmatprep.subr.mxu0 0.0
    %333 = vmatpush1.msra.mxu0 0.0
    %334 = vmatprep.subr.mxu0 0.0
    %335 = vmatpush1.msra.mxu0 0.0
    %336 = vmatprep.mubr.f32.mxu0 0.0
    %337 = vmatmul.mubr.f32.gmra.mrb[0].mxu0 %v249
    %v338 = vpop.f32.mrb[0].mxu0
    %v339 = vadd.f32 %v195, %v338
    %v340 = vpop.f32.mrb[0].mxu0
    %341 = vmatprep.mubr.f32.mxu0 0.0
    %342 = vmatmul.mubr.f32.gmra.mrb[0].mxu0 %v252
    %v343 = vpop.f32.mrb[0].mxu0
    %v344 = vadd.f32 %v196, %v343
    %v345 = vpop.f32.mrb[0].mxu0
    %346 = vmatprep.mubr.f32.mxu0 0.0
    %347 = vmatmul.mubr.f32.gmra.mrb[0].mxu0 %v255
    %v348 = vpop.f32.mrb[0].mxu0
    %v349 = vadd.f32 %v197, %v348
    %v350 = vpop.f32.mrb[0].mxu0
    %351 = vmatprep.mubr.f32.mxu0 0.0
    %352 = vmatmul.mubr.f32.gmra.mrb[0].mxu0 %v258
    %v353 = vpop.f32.mrb[0].mxu0
    %v354 = vadd.f32 %v198, %v353
    %v355 = vpop.f32.mrb[0].mxu0
    %356 = vmatprep.mubr.f32.mxu0 0.0
    %357 = vmatmul.mubr.f32.gmra.mrb[0].mxu0 %v261
    %v358 = vpop.f32.mrb[0].mxu0
    %v359 = vadd.f32 %v199, %v358
    %v360 = vpop.f32.mrb[0].mxu0
    %361 = vmatprep.mubr.f32.mxu0 0.0
    %362 = vmatmul.mubr.f32.gmra.mrb[0].mxu0 %v264
    %v363 = vpop.f32.mrb[0].mxu0
    %v364 = vadd.f32 %v200, %v363
    %v365 = vpop.f32.mrb[0].mxu0
    %366 = vmatprep.mubr.f32.mxu0 0.0
    %367 = vmatmul.mubr.f32.gmra.mrb[0].mxu0 %v267
    %v368 = vpop.f32.mrb[0].mxu0
    %v369 = vadd.f32 %v201, %v368
    %v370 = vpop.f32.mrb[0].mxu0
    %371 = vmatprep.mubr.f32.mxu0 0.0
    %372 = vmatmul.mubr.f32.gmra.mrb[0].mxu0 %v270
    %v373 = vpop.f32.mrb[0].mxu0
    %v374 = vadd.f32 %v202, %v373
    %v375 = vpop.f32.mrb[0].mxu0
    %376 = vdwg.mxu0
    %v377 = vmax.f32 %v339, 0.0
    %v378 = vmax.f32 %v344, 0.0
    %v379 = vmax.f32 %v349, 0.0
    %v380 = vmax.f32 %v354, 0.0
    %v381 = vmax.f32 %v359, 0.0
    %v382 = vmax.f32 %v364, 0.0
    %v383 = vmax.f32 %v369, 0.0
    %v384 = vmax.f32 %v374, 0.0
    %v385 = vld [vmem:[#allocation7] sm:$0xff]
    %v386 = vld [vmem:[#allocation7 + $0x8] sm:$0xff]
    %v387 = vld [vmem:[#allocation7 + $0x10] sm:$0xff]
    %v388 = vld [vmem:[#allocation7 + $0x18] sm:$0xff]
    %v389 = vld [vmem:[#allocation7 + $0x20] sm:$0xff]
    %v390 = vld [vmem:[#allocation7 + $0x28] sm:$0xff]
    %v391 = vld [vmem:[#allocation7 + $0x30] sm:$0xff]
    %v392 = vld [vmem:[#allocation7 + $0x38] sm:$0xff]
    %v394 = vsel %vm247, %v385, 0
    %v397 = vsel %vm247, %v386, 0
    %v400 = vsel %vm247, %v387, 0
    %v403 = vsel %vm247, %v388, 0
    %v406 = vsel %vm247, %v389, 0
    %v409 = vsel %vm247, %v390, 0
    %v412 = vsel %vm247, %v391, 0
    %v415 = vsel %vm247, %v392, 0
    %417 = vmatprep.subr.mxu0 0.0
    %418 = vmatpush1.msra.mxu0 %v377
    %419 = vmatprep.subr.mxu0 0.0
    %420 = vmatpush1.msra.mxu0 %v378
    %421 = vmatprep.subr.mxu0 0.0
    %422 = vmatpush1.msra.mxu0 %v379
    %423 = vmatprep.subr.mxu0 0.0
    %424 = vmatpush1.msra.mxu0 %v380
    %425 = vmatprep.subr.mxu0 0.0
    %426 = vmatpush1.msra.mxu0 %v381
    %427 = vmatprep.subr.mxu0 0.0
    %428 = vmatpush1.msra.mxu0 %v382
    %429 = vmatprep.subr.mxu0 0.0
    %430 = vmatpush1.msra.mxu0 %v383
    %431 = vmatprep.subr.mxu0 0.0
    %432 = vmatpush1.msra.mxu0 %v384
    %433 = vmatprep.subr.mxu0 0.0
    %434 = vmatpush1.msra.mxu0 0.0
    %435 = vmatprep.subr.mxu0 0.0
    %436 = vmatpush1.msra.mxu0 0.0
    %437 = vmatprep.subr.mxu0 0.0
    %438 = vmatpush1.msra.mxu0 0.0
    %439 = vmatprep.subr.mxu0 0.0
    %440 = vmatpush1.msra.mxu0 0.0
    %441 = vmatprep.subr.mxu0 0.0
    %442 = vmatpush1.msra.mxu0 0.0
    %443 = vmatprep.subr.mxu0 0.0
    %444 = vmatpush1.msra.mxu0 0.0
    %445 = vmatprep.subr.mxu0 0.0
    %446 = vmatpush1.msra.mxu0 0.0
    %447 = vmatprep.subr.mxu0 0.0
    %448 = vmatpush1.msra.mxu0 0.0
    %449 = vmatprep.subr.mxu0 0.0
    %450 = vmatpush1.msra.mxu0 0.0
    %451 = vmatprep.subr.mxu0 0.0
    %452 = vmatpush1.msra.mxu0 0.0
    %453 = vmatprep.subr.mxu0 0.0
    %454 = vmatpush1.msra.mxu0 0.0
    %455 = vmatprep.subr.mxu0 0.0
    %456 = vmatpush1.msra.mxu0 0.0
    %457 = vmatprep.subr.mxu0 0.0
    %458 = vmatpush1.msra.mxu0 0.0
    %459 = vmatprep.subr.mxu0 0.0
    %460 = vmatpush1.msra.mxu0 0.0
    %461 = vmatprep.subr.mxu0 0.0
    %462 = vmatpush1.msra.mxu0 0.0
    %463 = vmatprep.subr.mxu0 0.0
    %464 = vmatpush1.msra.mxu0 0.0
    %465 = vmatprep.subr.mxu0 0.0
    %466 = vmatpush1.msra.mxu0 0.0
    %467 = vmatprep.subr.mxu0 0.0
    %468 = vmatpush1.msra.mxu0 0.0
    %469 = vmatprep.subr.mxu0 0.0
    %470 = vmatpush1.msra.mxu0 0.0
    %471 = vmatprep.subr.mxu0 0.0
    %472 = vmatpush1.msra.mxu0 0.0
    %473 = vmatprep.subr.mxu0 0.0
    %474 = vmatpush1.msra.mxu0 0.0
    %475 = vmatprep.subr.mxu0 0.0
    %476 = vmatpush1.msra.mxu0 0.0
    %477 = vmatprep.subr.mxu0 0.0
    %478 = vmatpush1.msra.mxu0 0.0
    %479 = vmatprep.subr.mxu0 0.0
    %480 = vmatpush1.msra.mxu0 0.0
    %481 = vmatprep.mubr.f32.mxu0 0.0
    %482 = vmatmul.mubr.f32.gmra.mrb[0].mxu0 %v394
    %v483 = vpop.f32.mrb[0].mxu0
    %v484 = vadd.f32 %v203, %v483
    %v485 = vpop.f32.mrb[0].mxu0
    %486 = vmatprep.mubr.f32.mxu0 0.0
    %487 = vmatmul.mubr.f32.gmra.mrb[0].mxu0 %v397
    %v488 = vpop.f32.mrb[0].mxu0
    %v489 = vadd.f32 %v204, %v488
    %v490 = vpop.f32.mrb[0].mxu0
    %491 = vmatprep.mubr.f32.mxu0 0.0
    %492 = vmatmul.mubr.f32.gmra.mrb[0].mxu0 %v400
    %v493 = vpop.f32.mrb[0].mxu0
    %v494 = vadd.f32 %v205, %v493
    %v495 = vpop.f32.mrb[0].mxu0
    %496 = vmatprep.mubr.f32.mxu0 0.0
    %497 = vmatmul.mubr.f32.gmra.mrb[0].mxu0 %v403
    %v498 = vpop.f32.mrb[0].mxu0
    %v499 = vadd.f32 %v206, %v498
    %v500 = vpop.f32.mrb[0].mxu0
    %501 = vmatprep.mubr.f32.mxu0 0.0
    %502 = vmatmul.mubr.f32.gmra.mrb[0].mxu0 %v406
    %v503 = vpop.f32.mrb[0].mxu0
    %v504 = vadd.f32 %v207, %v503
    %v505 = vpop.f32.mrb[0].mxu0
    %506 = vmatprep.mubr.f32.mxu0 0.0
    %507 = vmatmul.mubr.f32.gmra.mrb[0].mxu0 %v409
    %v508 = vpop.f32.mrb[0].mxu0
    %v509 = vadd.f32 %v208, %v508
    %v510 = vpop.f32.mrb[0].mxu0
    %511 = vmatprep.mubr.f32.mxu0 0.0
    %512 = vmatmul.mubr.f32.gmra.mrb[0].mxu0 %v412
    %v513 = vpop.f32.mrb[0].mxu0
    %v514 = vadd.f32 %v209, %v513
    %v515 = vpop.f32.mrb[0].mxu0
    %516 = vmatprep.mubr.f32.mxu0 0.0
    %517 = vmatmul.mubr.f32.gmra.mrb[0].mxu0 %v415
    %v518 = vpop.f32.mrb[0].mxu0
    %v519 = vadd.f32 %v210, %v518
    %v520 = vpop.f32.mrb[0].mxu0
    %521 = vdwg.mxu0
    %v522 = vmax.f32 %v484, 0.0
    %v523 = vmax.f32 %v489, 0.0
    %v524 = vmax.f32 %v494, 0.0
    %v525 = vmax.f32 %v499, 0.0
    %v526 = vmax.f32 %v504, 0.0
    %v527 = vmax.f32 %v509, 0.0
    %v528 = vmax.f32 %v514, 0.0
    %v529 = vmax.f32 %v519, 0.0
    %v530 = vld [vmem:[#allocation9] sm:$0xff]
    %v531 = vld [vmem:[#allocation9 + $0x8] sm:$0xff]
    %v532 = vld [vmem:[#allocation9 + $0x10] sm:$0xff]
    %v533 = vld [vmem:[#allocation9 + $0x18] sm:$0xff]
    %v534 = vld [vmem:[#allocation9 + $0x20] sm:$0xff]
    %v535 = vld [vmem:[#allocation9 + $0x28] sm:$0xff]
    %v536 = vld [vmem:[#allocation9 + $0x30] sm:$0xff]
    %v537 = vld [vmem:[#allocation9 + $0x38] sm:$0xff]
    %v539 = vsel %vm247, %v530, 0
    %v542 = vsel %vm247, %v531, 0
    %v545 = vsel %vm247, %v532, 0
    %v548 = vsel %vm247, %v533, 0
    %v551 = vsel %vm247, %v534, 0
    %v554 = vsel %vm247, %v535, 0
    %v557 = vsel %vm247, %v536, 0
    %v560 = vsel %vm247, %v537, 0
    %562 = vmatprep.subr.mxu0 0.0
    %563 = vmatpush1.msra.mxu0 %v522
    %564 = vmatprep.subr.mxu0 0.0
    %565 = vmatpush1.msra.mxu0 %v523
    %566 = vmatprep.subr.mxu0 0.0
    %567 = vmatpush1.msra.mxu0 %v524
    %568 = vmatprep.subr.mxu0 0.0
    %569 = vmatpush1.msra.mxu0 %v525
    %570 = vmatprep.subr.mxu0 0.0
    %571 = vmatpush1.msra.mxu0 %v526
    %572 = vmatprep.subr.mxu0 0.0
    %573 = vmatpush1.msra.mxu0 %v527
    %574 = vmatprep.subr.mxu0 0.0
    %575 = vmatpush1.msra.mxu0 %v528
    %576 = vmatprep.subr.mxu0 0.0
    %577 = vmatpush1.msra.mxu0 %v529
    %578 = vmatprep.subr.mxu0 0.0
    %579 = vmatpush1.msra.mxu0 0.0
    %580 = vmatprep.subr.mxu0 0.0
    %581 = vmatpush1.msra.mxu0 0.0
    %582 = vmatprep.subr.mxu0 0.0
    %583 = vmatpush1.msra.mxu0 0.0
    %584 = vmatprep.subr.mxu0 0.0
    %585 = vmatpush1.msra.mxu0 0.0
    %586 = vmatprep.subr.mxu0 0.0
    %587 = vmatpush1.msra.mxu0 0.0
    %588 = vmatprep.subr.mxu0 0.0
    %589 = vmatpush1.msra.mxu0 0.0
    %590 = vmatprep.subr.mxu0 0.0
    %591 = vmatpush1.msra.mxu0 0.0
    %592 = vmatprep.subr.mxu0 0.0
    %593 = vmatpush1.msra.mxu0 0.0
    %594 = vmatprep.subr.mxu0 0.0
    %595 = vmatpush1.msra.mxu0 0.0
    %596 = vmatprep.subr.mxu0 0.0
    %597 = vmatpush1.msra.mxu0 0.0
    %598 = vmatprep.subr.mxu0 0.0
    %599 = vmatpush1.msra.mxu0 0.0
    %600 = vmatprep.subr.mxu0 0.0
    %601 = vmatpush1.msra.mxu0 0.0
    %602 = vmatprep.subr.mxu0 0.0
    %603 = vmatpush1.msra.mxu0 0.0
    %604 = vmatprep.subr.mxu0 0.0
    %605 = vmatpush1.msra.mxu0 0.0
    %606 = vmatprep.subr.mxu0 0.0
    %607 = vmatpush1.msra.mxu0 0.0
    %608 = vmatprep.subr.mxu0 0.0
    %609 = vmatpush1.msra.mxu0 0.0
    %610 = vmatprep.subr.mxu0 0.0
    %611 = vmatpush1.msra.mxu0 0.0
    %612 = vmatprep.subr.mxu0 0.0
    %613 = vmatpush1.msra.mxu0 0.0
    %614 = vmatprep.subr.mxu0 0.0
    %615 = vmatpush1.msra.mxu0 0.0
    %616 = vmatprep.subr.mxu0 0.0
    %617 = vmatpush1.msra.mxu0 0.0
    %618 = vmatprep.subr.mxu0 0.0
    %619 = vmatpush1.msra.mxu0 0.0
    %620 = vmatprep.subr.mxu0 0.0
    %621 = vmatpush1.msra.mxu0 0.0
    %622 = vmatprep.subr.mxu0 0.0
    %623 = vmatpush1.msra.mxu0 0.0
    %624 = vmatprep.subr.mxu0 0.0
    %625 = vmatpush1.msra.mxu0 0.0
    %626 = vmatprep.mubr.f32.mxu0 0.0
    %627 = vmatmul.mubr.f32.gmra.mrb[0].mxu0 %v539
    %v628 = vpop.f32.mrb[0].mxu0
    %v629 = vadd.f32 %v211, %v628
    %v630 = vpop.f32.mrb[0].mxu0
    %631 = vmatprep.mubr.f32.mxu0 0.0
    %632 = vmatmul.mubr.f32.gmra.mrb[0].mxu0 %v542
    %v633 = vpop.f32.mrb[0].mxu0
    %v634 = vadd.f32 %v212, %v633
    %v635 = vpop.f32.mrb[0].mxu0
    %636 = vmatprep.mubr.f32.mxu0 0.0
    %637 = vmatmul.mubr.f32.gmra.mrb[0].mxu0 %v545
    %v638 = vpop.f32.mrb[0].mxu0
    %v639 = vadd.f32 %v213, %v638
    %v640 = vpop.f32.mrb[0].mxu0
    %641 = vmatprep.mubr.f32.mxu0 0.0
    %642 = vmatmul.mubr.f32.gmra.mrb[0].mxu0 %v548
    %v643 = vpop.f32.mrb[0].mxu0
    %v644 = vadd.f32 %v214, %v643
    %v645 = vpop.f32.mrb[0].mxu0
    %646 = vmatprep.mubr.f32.mxu0 0.0
    %647 = vmatmul.mubr.f32.gmra.mrb[0].mxu0 %v551
    %v648 = vpop.f32.mrb[0].mxu0
    %v649 = vadd.f32 %v215, %v648
    %v650 = vpop.f32.mrb[0].mxu0
    %651 = vmatprep.mubr.f32.mxu0 0.0
    %652 = vmatmul.mubr.f32.gmra.mrb[0].mxu0 %v554
    %v653 = vpop.f32.mrb[0].mxu0
    %v654 = vadd.f32 %v216, %v653
    %v655 = vpop.f32.mrb[0].mxu0
    %656 = vmatprep.mubr.f32.mxu0 0.0
    %657 = vmatmul.mubr.f32.gmra.mrb[0].mxu0 %v557
    %v658 = vpop.f32.mrb[0].mxu0
    %v659 = vadd.f32 %v217, %v658
    %v660 = vpop.f32.mrb[0].mxu0
    %661 = vmatprep.mubr.f32.mxu0 0.0
    %662 = vmatmul.mubr.f32.gmra.mrb[0].mxu0 %v560
    %v663 = vpop.f32.mrb[0].mxu0
    %v664 = vadd.f32 %v218, %v663
    %v665 = vpop.f32.mrb[0].mxu0
    %666 = vdwg.mxu0
    %v667 = vld [vmem:[%s5] sm:$0xff]
    %v668 = vld [vmem:[%s5 + $0x8] sm:$0xff]
    %v669 = vld [vmem:[%s5 + $0x10] sm:$0xff]
    %v670 = vld [vmem:[%s5 + $0x18] sm:$0xff]
    %v671 = vld [vmem:[%s5 + $0x20] sm:$0xff]
    %v672 = vld [vmem:[%s5 + $0x28] sm:$0xff]
    %v673 = vld [vmem:[%s5 + $0x30] sm:$0xff]
    %v674 = vld [vmem:[%s5 + $0x38] sm:$0xff]
    %v675 = vld [vmem:[%s5 + $0x40] sm:$0xff]
    %v676 = vld [vmem:[%s5 + $0x48] sm:$0xff]
    %v677 = vld [vmem:[%s5 + $0x50] sm:$0xff]
    %v678 = vld [vmem:[%s5 + $0x58] sm:$0xff]
    %v680 = vsel %vm247, %v667, 0
    %v683 = vsel %vm247, %v668, 0
    %v686 = vsel %vm247, %v669, 0
    %v689 = vsel %vm247, %v670, 0
    %v692 = vsel %vm247, %v671, 0
    %v695 = vsel %vm247, %v672, 0
    %v698 = vsel %vm247, %v673, 0
    %v701 = vsel %vm247, %v674, 0
    %v704 = vsel %vm247, %v675, 0
    %v707 = vsel %vm247, %v676, 0
    %v710 = vsel %vm247, %v677, 0
    %v713 = vsel %vm247, %v678, 0
    %715 = vmatprep.subr.mxu0 0.0
    %716 = vmatpush1.msra.mxu0 %v629
    %717 = vmatprep.subr.mxu0 0.0
    %718 = vmatpush1.msra.mxu0 %v634
    %719 = vmatprep.subr.mxu0 0.0
    %720 = vmatpush1.msra.mxu0 %v639
    %721 = vmatprep.subr.mxu0 0.0
    %722 = vmatpush1.msra.mxu0 %v644
    %723 = vmatprep.subr.mxu0 0.0
    %724 = vmatpush1.msra.mxu0 %v649
    %725 = vmatprep.subr.mxu0 0.0
    %726 = vmatpush1.msra.mxu0 %v654
    %727 = vmatprep.subr.mxu0 0.0
    %728 = vmatpush1.msra.mxu0 %v659
    %729 = vmatprep.subr.mxu0 0.0
    %730 = vmatpush1.msra.mxu0 %v664
    %731 = vmatprep.subr.mxu0 0.0
    %732 = vmatpush1.msra.mxu0 0.0
    %733 = vmatprep.subr.mxu0 0.0
    %734 = vmatpush1.msra.mxu0 0.0
    %735 = vmatprep.subr.mxu0 0.0
    %736 = vmatpush1.msra.mxu0 0.0
    %737 = vmatprep.subr.mxu0 0.0
    %738 = vmatpush1.msra.mxu0 0.0
    %739 = vmatprep.subr.mxu0 0.0
    %740 = vmatpush1.msra.mxu0 0.0
    %741 = vmatprep.subr.mxu0 0.0
    %742 = vmatpush1.msra.mxu0 0.0
    %743 = vmatprep.subr.mxu0 0.0
    %744 = vmatpush1.msra.mxu0 0.0
    %745 = vmatprep.subr.mxu0 0.0
    %746 = vmatpush1.msra.mxu0 0.0
    %747 = vmatprep.subr.mxu0 0.0
    %748 = vmatpush1.msra.mxu0 0.0
    %749 = vmatprep.subr.mxu0 0.0
    %750 = vmatpush1.msra.mxu0 0.0
    %751 = vmatprep.subr.mxu0 0.0
    %752 = vmatpush1.msra.mxu0 0.0
    %753 = vmatprep.subr.mxu0 0.0
    %754 = vmatpush1.msra.mxu0 0.0
    %755 = vmatprep.subr.mxu0 0.0
    %756 = vmatpush1.msra.mxu0 0.0
    %757 = vmatprep.subr.mxu0 0.0
    %758 = vmatpush1.msra.mxu0 0.0
    %759 = vmatprep.subr.mxu0 0.0
    %760 = vmatpush1.msra.mxu0 0.0
    %761 = vmatprep.subr.mxu0 0.0
    %762 = vmatpush1.msra.mxu0 0.0
    %763 = vmatprep.subr.mxu0 0.0
    %764 = vmatpush1.msra.mxu0 0.0
    %765 = vmatprep.subr.mxu0 0.0
    %766 = vmatpush1.msra.mxu0 0.0
    %767 = vmatprep.subr.mxu0 0.0
    %768 = vmatpush1.msra.mxu0 0.0
    %769 = vmatprep.subr.mxu0 0.0
    %770 = vmatpush1.msra.mxu0 0.0
    %771 = vmatprep.subr.mxu0 0.0
    %772 = vmatpush1.msra.mxu0 0.0
    %773 = vmatprep.subr.mxu0 0.0
    %774 = vmatpush1.msra.mxu0 0.0
    %775 = vmatprep.subr.mxu0 0.0
    %776 = vmatpush1.msra.mxu0 0.0
    %777 = vmatprep.subr.mxu0 0.0
    %778 = vmatpush1.msra.mxu0 0.0
    %779 = vmatprep.mubr.f32.mxu0 0.0
    %780 = vmatmul.mubr.f32.gmra.mrb[0].mxu0 %v680
    %v781 = vpop.f32.mrb[0].mxu0
    %v782 = vadd.f32 %v219, %v781
    %v783 = vpop.f32.mrb[0].mxu0
    %784 = vmatprep.mubr.f32.mxu0 0.0
    %785 = vmatmul.mubr.f32.gmra.mrb[0].mxu0 %v683
    %v786 = vpop.f32.mrb[0].mxu0
    %v787 = vadd.f32 %v220, %v786
    %v788 = vpop.f32.mrb[0].mxu0
    %789 = vmatprep.mubr.f32.mxu0 0.0
    %790 = vmatmul.mubr.f32.gmra.mrb[0].mxu0 %v686
    %v791 = vpop.f32.mrb[0].mxu0
    %v792 = vadd.f32 %v221, %v791
    %v793 = vpop.f32.mrb[0].mxu0
    %794 = vmatprep.mubr.f32.mxu0 0.0
    %795 = vmatmul.mubr.f32.gmra.mrb[0].mxu0 %v689
    %v796 = vpop.f32.mrb[0].mxu0
    %v797 = vadd.f32 %v222, %v796
    %v798 = vpop.f32.mrb[0].mxu0
    %799 = vmatprep.mubr.f32.mxu0 0.0
    %800 = vmatmul.mubr.f32.gmra.mrb[0].mxu0 %v692
    %v801 = vpop.f32.mrb[0].mxu0
    %v802 = vadd.f32 %v223, %v801
    %v803 = vpop.f32.mrb[0].mxu0
    %804 = vmatprep.mubr.f32.mxu0 0.0
    %805 = vmatmul.mubr.f32.gmra.mrb[0].mxu0 %v695
    %v806 = vpop.f32.mrb[0].mxu0
    %v807 = vadd.f32 %v224, %v806
    %v808 = vpop.f32.mrb[0].mxu0
    %809 = vmatprep.mubr.f32.mxu0 0.0
    %810 = vmatmul.mubr.f32.gmra.mrb[0].mxu0 %v698
    %v811 = vpop.f32.mrb[0].mxu0
    %v812 = vadd.f32 %v225, %v811
    %v813 = vpop.f32.mrb[0].mxu0
    %814 = vmatprep.mubr.f32.mxu0 0.0
    %815 = vmatmul.mubr.f32.gmra.mrb[0].mxu0 %v701
    %v816 = vpop.f32.mrb[0].mxu0
    %v817 = vadd.f32 %v226, %v816
    %v818 = vpop.f32.mrb[0].mxu0
    %819 = vmatprep.mubr.f32.mxu0 0.0
    %820 = vmatmul.mubr.f32.gmra.mrb[0].mxu0 %v704
    %v821 = vpop.f32.mrb[0].mxu0
    %v822 = vadd.f32 %v227, %v821
    %v823 = vpop.f32.mrb[0].mxu0
    %824 = vmatprep.mubr.f32.mxu0 0.0
    %825 = vmatmul.mubr.f32.gmra.mrb[0].mxu0 %v707
    %v826 = vpop.f32.mrb[0].mxu0
    %v827 = vadd.f32 %v228, %v826
    %v828 = vpop.f32.mrb[0].mxu0
    %829 = vmatprep.mubr.f32.mxu0 0.0
    %830 = vmatmul.mubr.f32.gmra.mrb[0].mxu0 %v710
    %v831 = vpop.f32.mrb[0].mxu0
    %v832 = vadd.f32 %v229, %v831
    %v833 = vpop.f32.mrb[0].mxu0
    %834 = vmatprep.mubr.f32.mxu0 0.0
    %835 = vmatmul.mubr.f32.gmra.mrb[0].mxu0 %v713
    %v836 = vpop.f32.mrb[0].mxu0
    %v837 = vadd.f32 %v230, %v836
    %v838 = vpop.f32.mrb[0].mxu0
    %839 = vdwg.mxu0
    %v840 = vld [vmem:[#allocation10] sm:$0xff]
    %v841 = vld [vmem:[#allocation10 + $0x8] sm:$0xff]
    %v842 = vld [vmem:[%s14] sm:$0xff]
    %v843 = vld [vmem:[%s14 + $0x8] sm:$0xff]
    %s844 = scalar_lea.vmem %s14, 16
    %v845 = vld [vmem:[%s844] sm:$0xff]
    %v846 = vld [vmem:[%s844 + $0x8] sm:$0xff]
    %v847 = vld [vmem:[%s1] sm:$0xff]
    %v848 = vld [vmem:[%s1 + $0x10] sm:$0xff]
    %v849 = vld [vmem:[#allocation12] sm:$0xff]
    %v850 = vld [vmem:[#allocation12 + $0x8] sm:$0xff]
    %vm851 = vcmask 130048
    %v853 = vsel %vm851, %v840, 0
    %v856 = vsel %vm851, %v841, 0
    %858 = vmatprep.subr.mxu0 0.0
    %859 = vmatpush1.msra.mxu0 %v849
    %860 = vmatprep.subr.mxu0 0.0
    %861 = vmatpush1.msra.mxu0 %v850
    %862 = vmatprep.subr.mxu0 0.0
    %863 = vmatpush1.msra.mxu0 0.0
    %864 = vmatprep.subr.mxu0 0.0
    %865 = vmatpush1.msra.mxu0 0.0
    %866 = vmatprep.subr.mxu0 0.0
    %867 = vmatpush1.msra.mxu0 0.0
    %868 = vmatprep.subr.mxu0 0.0
    %869 = vmatpush1.msra.mxu0 0.0
    %870 = vmatprep.subr.mxu0 0.0
    %871 = vmatpush1.msra.mxu0 0.0
    %872 = vmatprep.subr.mxu0 0.0
    %873 = vmatpush1.msra.mxu0 0.0
    %874 = vmatprep.subr.mxu0 0.0
    %875 = vmatpush1.msra.mxu0 0.0
    %876 = vmatprep.subr.mxu0 0.0
    %877 = vmatpush1.msra.mxu0 0.0
    %878 = vmatprep.subr.mxu0 0.0
    %879 = vmatpush1.msra.mxu0 0.0
    %880 = vmatprep.subr.mxu0 0.0
    %881 = vmatpush1.msra.mxu0 0.0
    %882 = vmatprep.subr.mxu0 0.0
    %883 = vmatpush1.msra.mxu0 0.0
    %884 = vmatprep.subr.mxu0 0.0
    %885 = vmatpush1.msra.mxu0 0.0
    %886 = vmatprep.subr.mxu0 0.0
    %887 = vmatpush1.msra.mxu0 0.0
    %888 = vmatprep.subr.mxu0 0.0
    %889 = vmatpush1.msra.mxu0 0.0
    %890 = vmatprep.subr.mxu0 0.0
    %891 = vmatpush1.msra.mxu0 0.0
    %892 = vmatprep.subr.mxu0 0.0
    %893 = vmatpush1.msra.mxu0 0.0
    %894 = vmatprep.subr.mxu0 0.0
    %895 = vmatpush1.msra.mxu0 0.0
    %896 = vmatprep.subr.mxu0 0.0
    %897 = vmatpush1.msra.mxu0 0.0
    %898 = vmatprep.subr.mxu0 0.0
    %899 = vmatpush1.msra.mxu0 0.0
    %900 = vmatprep.subr.mxu0 0.0
    %901 = vmatpush1.msra.mxu0 0.0
    %902 = vmatprep.subr.mxu0 0.0
    %903 = vmatpush1.msra.mxu0 0.0
    %904 = vmatprep.subr.mxu0 0.0
    %905 = vmatpush1.msra.mxu0 0.0
    %906 = vmatprep.subr.mxu0 0.0
    %907 = vmatpush1.msra.mxu0 0.0
    %908 = vmatprep.subr.mxu0 0.0
    %909 = vmatpush1.msra.mxu0 0.0
    %910 = vmatprep.subr.mxu0 0.0
    %911 = vmatpush1.msra.mxu0 0.0
    %912 = vmatprep.subr.mxu0 0.0
    %913 = vmatpush1.msra.mxu0 0.0
    %914 = vmatprep.subr.mxu0 0.0
    %915 = vmatpush1.msra.mxu0 0.0
    %916 = vmatprep.subr.mxu0 0.0
    %917 = vmatpush1.msra.mxu0 0.0
    %918 = vmatprep.subr.mxu0 0.0
    %919 = vmatpush1.msra.mxu0 0.0
    %920 = vmatprep.subr.mxu0 0.0
    %921 = vmatpush1.msra.mxu0 0.0
    %922 = vmatprep.mubr.f32.mxu0 0.0
    %923 = vmatmul.mubr.f32.gmra.mrb[0].mxu0 %v853
    %v924 = vpop.f32.mrb[0].mxu0
    %v925 = vadd.f32 0.0, %v924
    %v926 = vpop.f32.mrb[0].mxu0
    %927 = vmatprep.mubr.f32.mxu0 0.0
    %928 = vmatmul.mubr.f32.gmra.mrb[0].mxu0 %v856
    %v929 = vpop.f32.mrb[0].mxu0
    %v930 = vadd.f32 0.0, %v929
    %v931 = vpop.f32.mrb[0].mxu0
    %932 = vdwg.mxu0
    %933 = vst.msk [vmem:[#allocation2] sm:$0xff] %vm851, %v925
    %934 = vst.msk [vmem:[#allocation2 + $0x8] sm:$0xff] %vm851, %v930
    %s935 = scalar_lea.vmem [#allocation12], 16
    %v936 = vld [vmem:[%s935] sm:$0xff]
    %v937 = vld [vmem:[%s935 + $0x8] sm:$0xff]
    %938 = vmatprep.subr.mxu0 0.0
    %939 = vmatpush1.msra.mxu0 %v936
    %940 = vmatprep.subr.mxu0 0.0
    %941 = vmatpush1.msra.mxu0 %v937
    %942 = vmatprep.subr.mxu0 0.0
    %943 = vmatpush1.msra.mxu0 0.0
    %944 = vmatprep.subr.mxu0 0.0
    %945 = vmatpush1.msra.mxu0 0.0
    %946 = vmatprep.subr.mxu0 0.0
    %947 = vmatpush1.msra.mxu0 0.0
    %948 = vmatprep.subr.mxu0 0.0
    %949 = vmatpush1.msra.mxu0 0.0
    %950 = vmatprep.subr.mxu0 0.0
    %951 = vmatpush1.msra.mxu0 0.0
    %952 = vmatprep.subr.mxu0 0.0
    %953 = vmatpush1.msra.mxu0 0.0
    %954 = vmatprep.subr.mxu0 0.0
    %955 = vmatpush1.msra.mxu0 0.0
    %956 = vmatprep.subr.mxu0 0.0
    %957 = vmatpush1.msra.mxu0 0.0
    %958 = vmatprep.subr.mxu0 0.0
    %959 = vmatpush1.msra.mxu0 0.0
    %960 = vmatprep.subr.mxu0 0.0
    %961 = vmatpush1.msra.mxu0 0.0
    %962 = vmatprep.subr.mxu0 0.0
    %963 = vmatpush1.msra.mxu0 0.0
    %964 = vmatprep.subr.mxu0 0.0
    %965 = vmatpush1.msra.mxu0 0.0
    %966 = vmatprep.subr.mxu0 0.0
    %967 = vmatpush1.msra.mxu0 0.0
    %968 = vmatprep.subr.mxu0 0.0
    %969 = vmatpush1.msra.mxu0 0.0
    %970 = vmatprep.subr.mxu0 0.0
    %971 = vmatpush1.msra.mxu0 0.0
    %972 = vmatprep.subr.mxu0 0.0
    %973 = vmatpush1.msra.mxu0 0.0
    %974 = vmatprep.subr.mxu0 0.0
    %975 = vmatpush1.msra.mxu0 0.0
    %976 = vmatprep.subr.mxu0 0.0
    %977 = vmatpush1.msra.mxu0 0.0
    %978 = vmatprep.subr.mxu0 0.0
    %979 = vmatpush1.msra.mxu0 0.0
    %980 = vmatprep.subr.mxu0 0.0
    %981 = vmatpush1.msra.mxu0 0.0
    %982 = vmatprep.subr.mxu0 0.0
    %983 = vmatpush1.msra.mxu0 0.0
    %984 = vmatprep.subr.mxu0 0.0
    %985 = vmatpush1.msra.mxu0 0.0
    %986 = vmatprep.subr.mxu0 0.0
    %987 = vmatpush1.msra.mxu0 0.0
    %988 = vmatprep.subr.mxu0 0.0
    %989 = vmatpush1.msra.mxu0 0.0
    %990 = vmatprep.subr.mxu0 0.0
    %991 = vmatpush1.msra.mxu0 0.0
    %992 = vmatprep.subr.mxu0 0.0
    %993 = vmatpush1.msra.mxu0 0.0
    %994 = vmatprep.subr.mxu0 0.0
    %995 = vmatpush1.msra.mxu0 0.0
    %996 = vmatprep.subr.mxu0 0.0
    %997 = vmatpush1.msra.mxu0 0.0
    %998 = vmatprep.subr.mxu0 0.0
    %999 = vmatpush1.msra.mxu0 0.0
    %1000 = vmatprep.subr.mxu0 0.0
    %1001 = vmatpush1.msra.mxu0 0.0
    %1002 = vmatprep.mubr.f32.mxu0 0.0
    %1003 = vmatmul.mubr.f32.gmra.mrb[0].mxu0 %v853
    %v1004 = vpop.f32.mrb[0].mxu0
    %v1005 = vadd.f32 0.0, %v1004
    %v1006 = vpop.f32.mrb[0].mxu0
    %1007 = vmatprep.mubr.f32.mxu0 0.0
    %1008 = vmatmul.mubr.f32.gmra.mrb[0].mxu0 %v856
    %v1009 = vpop.f32.mrb[0].mxu0
    %v1010 = vadd.f32 0.0, %v1009
    %v1011 = vpop.f32.mrb[0].mxu0
    %1012 = vdwg.mxu0
    %1013 = vst.msk [vmem:[#allocation2 + $0x10] sm:$0xff] %vm851, %v1005
    %1014 = vst.msk [vmem:[#allocation2 + $0x18] sm:$0xff] %vm851, %v1010
    %s1015 = scalar_lea.vmem [#allocation12], 32
    %v1016 = vld [vmem:[%s1015] sm:$0xff]
    %v1017 = vld [vmem:[%s1015 + $0x8] sm:$0xff]
    %1018 = vmatprep.subr.mxu0 0.0
    %1019 = vmatpush1.msra.mxu0 %v1016
    %1020 = vmatprep.subr.mxu0 0.0
    %1021 = vmatpush1.msra.mxu0 %v1017
    %1022 = vmatprep.subr.mxu0 0.0
    %1023 = vmatpush1.msra.mxu0 0.0
    %1024 = vmatprep.subr.mxu0 0.0
    %1025 = vmatpush1.msra.mxu0 0.0
    %1026 = vmatprep.subr.mxu0 0.0
    %1027 = vmatpush1.msra.mxu0 0.0
    %1028 = vmatprep.subr.mxu0 0.0
    %1029 = vmatpush1.msra.mxu0 0.0
    %1030 = vmatprep.subr.mxu0 0.0
    %1031 = vmatpush1.msra.mxu0 0.0
    %1032 = vmatprep.subr.mxu0 0.0
    %1033 = vmatpush1.msra.mxu0 0.0
    %1034 = vmatprep.subr.mxu0 0.0
    %1035 = vmatpush1.msra.mxu0 0.0
    %1036 = vmatprep.subr.mxu0 0.0
    %1037 = vmatpush1.msra.mxu0 0.0
    %1038 = vmatprep.subr.mxu0 0.0
    %1039 = vmatpush1.msra.mxu0 0.0
    %1040 = vmatprep.subr.mxu0 0.0
    %1041 = vmatpush1.msra.mxu0 0.0
    %1042 = vmatprep.subr.mxu0 0.0
    %1043 = vmatpush1.msra.mxu0 0.0
    %1044 = vmatprep.subr.mxu0 0.0
    %1045 = vmatpush1.msra.mxu0 0.0
    %1046 = vmatprep.subr.mxu0 0.0
    %1047 = vmatpush1.msra.mxu0 0.0
    %1048 = vmatprep.subr.mxu0 0.0
    %1049 = vmatpush1.msra.mxu0 0.0
    %1050 = vmatprep.subr.mxu0 0.0
    %1051 = vmatpush1.msra.mxu0 0.0
    %1052 = vmatprep.subr.mxu0 0.0
    %1053 = vmatpush1.msra.mxu0 0.0
    %1054 = vmatprep.subr.mxu0 0.0
    %1055 = vmatpush1.msra.mxu0 0.0
    %1056 = vmatprep.subr.mxu0 0.0
    %1057 = vmatpush1.msra.mxu0 0.0
    %1058 = vmatprep.subr.mxu0 0.0
    %1059 = vmatpush1.msra.mxu0 0.0
    %1060 = vmatprep.subr.mxu0 0.0
    %1061 = vmatpush1.msra.mxu0 0.0
    %1062 = vmatprep.subr.mxu0 0.0
    %1063 = vmatpush1.msra.mxu0 0.0
    %1064 = vmatprep.subr.mxu0 0.0
    %1065 = vmatpush1.msra.mxu0 0.0
    %1066 = vmatprep.subr.mxu0 0.0
    %1067 = vmatpush1.msra.mxu0 0.0
    %1068 = vmatprep.subr.mxu0 0.0
    %1069 = vmatpush1.msra.mxu0 0.0
    %1070 = vmatprep.subr.mxu0 0.0
    %1071 = vmatpush1.msra.mxu0 0.0
    %1072 = vmatprep.subr.mxu0 0.0
    %1073 = vmatpush1.msra.mxu0 0.0
    %1074 = vmatprep.subr.mxu0 0.0
    %1075 = vmatpush1.msra.mxu0 0.0
    %1076 = vmatprep.subr.mxu0 0.0
    %1077 = vmatpush1.msra.mxu0 0.0
    %1078 = vmatprep.subr.mxu0 0.0
    %1079 = vmatpush1.msra.mxu0 0.0
    %1080 = vmatprep.subr.mxu0 0.0
    %1081 = vmatpush1.msra.mxu0 0.0
    %1082 = vmatprep.mubr.f32.mxu0 0.0
    %1083 = vmatmul.mubr.f32.gmra.mrb[0].mxu0 %v853
    %v1084 = vpop.f32.mrb[0].mxu0
    %v1085 = vadd.f32 0.0, %v1084
    %v1086 = vpop.f32.mrb[0].mxu0
    %1087 = vmatprep.mubr.f32.mxu0 0.0
    %1088 = vmatmul.mubr.f32.gmra.mrb[0].mxu0 %v856
    %v1089 = vpop.f32.mrb[0].mxu0
    %v1090 = vadd.f32 0.0, %v1089
    %v1091 = vpop.f32.mrb[0].mxu0
    %1092 = vdwg.mxu0
    %1093 = vst.msk [vmem:[#allocation2 + $0x20] sm:$0xff] %vm851, %v1085
    %1094 = vst.msk [vmem:[#allocation2 + $0x28] sm:$0xff] %vm851, %v1090
    %s1095 = scalar_lea.vmem [#allocation12], 48
    %v1096 = vld [vmem:[%s1095] sm:$0xff]
    %v1097 = vld [vmem:[%s1095 + $0x8] sm:$0xff]
    %1098 = vmatprep.subr.mxu0 0.0
    %1099 = vmatpush1.msra.mxu0 %v1096
    %1100 = vmatprep.subr.mxu0 0.0
    %1101 = vmatpush1.msra.mxu0 %v1097
    %1102 = vmatprep.subr.mxu0 0.0
    %1103 = vmatpush1.msra.mxu0 0.0
    %1104 = vmatprep.subr.mxu0 0.0
    %1105 = vmatpush1.msra.mxu0 0.0
    %1106 = vmatprep.subr.mxu0 0.0
    %1107 = vmatpush1.msra.mxu0 0.0
    %1108 = vmatprep.subr.mxu0 0.0
    %1109 = vmatpush1.msra.mxu0 0.0
    %1110 = vmatprep.subr.mxu0 0.0
    %1111 = vmatpush1.msra.mxu0 0.0
    %1112 = vmatprep.subr.mxu0 0.0
    %1113 = vmatpush1.msra.mxu0 0.0
    %1114 = vmatprep.subr.mxu0 0.0
    %1115 = vmatpush1.msra.mxu0 0.0
    %1116 = vmatprep.subr.mxu0 0.0
    %1117 = vmatpush1.msra.mxu0 0.0
    %1118 = vmatprep.subr.mxu0 0.0
    %1119 = vmatpush1.msra.mxu0 0.0
    %1120 = vmatprep.subr.mxu0 0.0
    %1121 = vmatpush1.msra.mxu0 0.0
    %1122 = vmatprep.subr.mxu0 0.0
    %1123 = vmatpush1.msra.mxu0 0.0
    %1124 = vmatprep.subr.mxu0 0.0
    %1125 = vmatpush1.msra.mxu0 0.0
    %1126 = vmatprep.subr.mxu0 0.0
    %1127 = vmatpush1.msra.mxu0 0.0
    %1128 = vmatprep.subr.mxu0 0.0
    %1129 = vmatpush1.msra.mxu0 0.0
    %1130 = vmatprep.subr.mxu0 0.0
    %1131 = vmatpush1.msra.mxu0 0.0
    %1132 = vmatprep.subr.mxu0 0.0
    %1133 = vmatpush1.msra.mxu0 0.0
    %1134 = vmatprep.subr.mxu0 0.0
    %1135 = vmatpush1.msra.mxu0 0.0
    %1136 = vmatprep.subr.mxu0 0.0
    %1137 = vmatpush1.msra.mxu0 0.0
    %1138 = vmatprep.subr.mxu0 0.0
    %1139 = vmatpush1.msra.mxu0 0.0
    %1140 = vmatprep.subr.mxu0 0.0
    %1141 = vmatpush1.msra.mxu0 0.0
    %1142 = vmatprep.subr.mxu0 0.0
    %1143 = vmatpush1.msra.mxu0 0.0
    %1144 = vmatprep.subr.mxu0 0.0
    %1145 = vmatpush1.msra.mxu0 0.0
    %1146 = vmatprep.subr.mxu0 0.0
    %1147 = vmatpush1.msra.mxu0 0.0
    %1148 = vmatprep.subr.mxu0 0.0
    %1149 = vmatpush1.msra.mxu0 0.0
    %1150 = vmatprep.subr.mxu0 0.0
    %1151 = vmatpush1.msra.mxu0 0.0
    %1152 = vmatprep.subr.mxu0 0.0
    %1153 = vmatpush1.msra.mxu0 0.0
    %1154 = vmatprep.subr.mxu0 0.0
    %1155 = vmatpush1.msra.mxu0 0.0
    %1156 = vmatprep.subr.mxu0 0.0
    %1157 = vmatpush1.msra.mxu0 0.0
    %1158 = vmatprep.subr.mxu0 0.0
    %1159 = vmatpush1.msra.mxu0 0.0
    %1160 = vmatprep.subr.mxu0 0.0
    %1161 = vmatpush1.msra.mxu0 0.0
    %1162 = vmatprep.mubr.f32.mxu0 0.0
    %1163 = vmatmul.mubr.f32.gmra.mrb[0].mxu0 %v853
    %v1164 = vpop.f32.mrb[0].mxu0
    %v1165 = vadd.f32 0.0, %v1164
    %v1166 = vpop.f32.mrb[0].mxu0
    %1167 = vmatprep.mubr.f32.mxu0 0.0
    %1168 = vmatmul.mubr.f32.gmra.mrb[0].mxu0 %v856
    %v1169 = vpop.f32.mrb[0].mxu0
    %v1170 = vadd.f32 0.0, %v1169
    %v1171 = vpop.f32.mrb[0].mxu0
    %1172 = vdwg.mxu0
    %1173 = vst.msk [vmem:[#allocation2 + $0x30] sm:$0xff] %vm851, %v1165
    %1174 = vst.msk [vmem:[#allocation2 + $0x38] sm:$0xff] %vm851, %v1170
    %s1175 = scalar_lea.vmem [#allocation12], 64
    %v1176 = vld [vmem:[%s1175] sm:$0xff]
    %v1177 = vld [vmem:[%s1175 + $0x8] sm:$0xff]
    %1178 = vmatprep.subr.mxu0 0.0
    %1179 = vmatpush1.msra.mxu0 %v1176
    %1180 = vmatprep.subr.mxu0 0.0
    %1181 = vmatpush1.msra.mxu0 %v1177
    %1182 = vmatprep.subr.mxu0 0.0
    %1183 = vmatpush1.msra.mxu0 0.0
    %1184 = vmatprep.subr.mxu0 0.0
    %1185 = vmatpush1.msra.mxu0 0.0
    %1186 = vmatprep.subr.mxu0 0.0
    %1187 = vmatpush1.msra.mxu0 0.0
    %1188 = vmatprep.subr.mxu0 0.0
    %1189 = vmatpush1.msra.mxu0 0.0
    %1190 = vmatprep.subr.mxu0 0.0
    %1191 = vmatpush1.msra.mxu0 0.0
    %1192 = vmatprep.subr.mxu0 0.0
    %1193 = vmatpush1.msra.mxu0 0.0
    %1194 = vmatprep.subr.mxu0 0.0
    %1195 = vmatpush1.msra.mxu0 0.0
    %1196 = vmatprep.subr.mxu0 0.0
    %1197 = vmatpush1.msra.mxu0 0.0
    %1198 = vmatprep.subr.mxu0 0.0
    %1199 = vmatpush1.msra.mxu0 0.0
    %1200 = vmatprep.subr.mxu0 0.0
    %1201 = vmatpush1.msra.mxu0 0.0
    %1202 = vmatprep.subr.mxu0 0.0
    %1203 = vmatpush1.msra.mxu0 0.0
    %1204 = vmatprep.subr.mxu0 0.0
    %1205 = vmatpush1.msra.mxu0 0.0
    %1206 = vmatprep.subr.mxu0 0.0
    %1207 = vmatpush1.msra.mxu0 0.0
    %1208 = vmatprep.subr.mxu0 0.0
    %1209 = vmatpush1.msra.mxu0 0.0
    %1210 = vmatprep.subr.mxu0 0.0
    %1211 = vmatpush1.msra.mxu0 0.0
    %1212 = vmatprep.subr.mxu0 0.0
    %1213 = vmatpush1.msra.mxu0 0.0
    %1214 = vmatprep.subr.mxu0 0.0
    %1215 = vmatpush1.msra.mxu0 0.0
    %1216 = vmatprep.subr.mxu0 0.0
    %1217 = vmatpush1.msra.mxu0 0.0
    %1218 = vmatprep.subr.mxu0 0.0
    %1219 = vmatpush1.msra.mxu0 0.0
    %1220 = vmatprep.subr.mxu0 0.0
    %1221 = vmatpush1.msra.mxu0 0.0
    %1222 = vmatprep.subr.mxu0 0.0
    %1223 = vmatpush1.msra.mxu0 0.0
    %1224 = vmatprep.subr.mxu0 0.0
    %1225 = vmatpush1.msra.mxu0 0.0
    %1226 = vmatprep.subr.mxu0 0.0
    %1227 = vmatpush1.msra.mxu0 0.0
    %1228 = vmatprep.subr.mxu0 0.0
    %1229 = vmatpush1.msra.mxu0 0.0
    %1230 = vmatprep.subr.mxu0 0.0
    %1231 = vmatpush1.msra.mxu0 0.0
    %1232 = vmatprep.subr.mxu0 0.0
    %1233 = vmatpush1.msra.mxu0 0.0
    %1234 = vmatprep.subr.mxu0 0.0
    %1235 = vmatpush1.msra.mxu0 0.0
    %1236 = vmatprep.subr.mxu0 0.0
    %1237 = vmatpush1.msra.mxu0 0.0
    %1238 = vmatprep.subr.mxu0 0.0
    %1239 = vmatpush1.msra.mxu0 0.0
    %1240 = vmatprep.subr.mxu0 0.0
    %1241 = vmatpush1.msra.mxu0 0.0
    %1242 = vmatprep.mubr.f32.mxu0 0.0
    %1243 = vmatmul.mubr.f32.gmra.mrb[0].mxu0 %v853
    %v1244 = vpop.f32.mrb[0].mxu0
    %v1245 = vadd.f32 0.0, %v1244
    %v1246 = vpop.f32.mrb[0].mxu0
    %1247 = vmatprep.mubr.f32.mxu0 0.0
    %1248 = vmatmul.mubr.f32.gmra.mrb[0].mxu0 %v856
    %v1249 = vpop.f32.mrb[0].mxu0
    %v1250 = vadd.f32 0.0, %v1249
    %v1251 = vpop.f32.mrb[0].mxu0
    %1252 = vdwg.mxu0
    %1253 = vst.msk [vmem:[#allocation2 + $0x40] sm:$0xff] %vm851, %v1245
    %1254 = vst.msk [vmem:[#allocation2 + $0x48] sm:$0xff] %vm851, %v1250
    %s1255 = scalar_lea.vmem [#allocation12], 80
    %v1256 = vld [vmem:[%s1255] sm:$0xff]
    %v1257 = vld [vmem:[%s1255 + $0x8] sm:$0xff]
    %1258 = vmatprep.subr.mxu0 0.0
    %1259 = vmatpush1.msra.mxu0 %v1256
    %1260 = vmatprep.subr.mxu0 0.0
    %1261 = vmatpush1.msra.mxu0 %v1257
    %1262 = vmatprep.subr.mxu0 0.0
    %1263 = vmatpush1.msra.mxu0 0.0
    %1264 = vmatprep.subr.mxu0 0.0
    %1265 = vmatpush1.msra.mxu0 0.0
    %1266 = vmatprep.subr.mxu0 0.0
    %1267 = vmatpush1.msra.mxu0 0.0
    %1268 = vmatprep.subr.mxu0 0.0
    %1269 = vmatpush1.msra.mxu0 0.0
    %1270 = vmatprep.subr.mxu0 0.0
    %1271 = vmatpush1.msra.mxu0 0.0
    %1272 = vmatprep.subr.mxu0 0.0
    %1273 = vmatpush1.msra.mxu0 0.0
    %1274 = vmatprep.subr.mxu0 0.0
    %1275 = vmatpush1.msra.mxu0 0.0
    %1276 = vmatprep.subr.mxu0 0.0
    %1277 = vmatpush1.msra.mxu0 0.0
    %1278 = vmatprep.subr.mxu0 0.0
    %1279 = vmatpush1.msra.mxu0 0.0
    %1280 = vmatprep.subr.mxu0 0.0
    %1281 = vmatpush1.msra.mxu0 0.0
    %1282 = vmatprep.subr.mxu0 0.0
    %1283 = vmatpush1.msra.mxu0 0.0
    %1284 = vmatprep.subr.mxu0 0.0
    %1285 = vmatpush1.msra.mxu0 0.0
    %1286 = vmatprep.subr.mxu0 0.0
    %1287 = vmatpush1.msra.mxu0 0.0
    %1288 = vmatprep.subr.mxu0 0.0
    %1289 = vmatpush1.msra.mxu0 0.0
    %1290 = vmatprep.subr.mxu0 0.0
    %1291 = vmatpush1.msra.mxu0 0.0
    %1292 = vmatprep.subr.mxu0 0.0
    %1293 = vmatpush1.msra.mxu0 0.0
    %1294 = vmatprep.subr.mxu0 0.0
    %1295 = vmatpush1.msra.mxu0 0.0
    %1296 = vmatprep.subr.mxu0 0.0
    %1297 = vmatpush1.msra.mxu0 0.0
    %1298 = vmatprep.subr.mxu0 0.0
    %1299 = vmatpush1.msra.mxu0 0.0
    %1300 = vmatprep.subr.mxu0 0.0
    %1301 = vmatpush1.msra.mxu0 0.0
    %1302 = vmatprep.subr.mxu0 0.0
    %1303 = vmatpush1.msra.mxu0 0.0
    %1304 = vmatprep.subr.mxu0 0.0
    %1305 = vmatpush1.msra.mxu0 0.0
    %1306 = vmatprep.subr.mxu0 0.0
    %1307 = vmatpush1.msra.mxu0 0.0
    %1308 = vmatprep.subr.mxu0 0.0
    %1309 = vmatpush1.msra.mxu0 0.0
    %1310 = vmatprep.subr.mxu0 0.0
    %1311 = vmatpush1.msra.mxu0 0.0
    %1312 = vmatprep.subr.mxu0 0.0
    %1313 = vmatpush1.msra.mxu0 0.0
    %1314 = vmatprep.subr.mxu0 0.0
    %1315 = vmatpush1.msra.mxu0 0.0
    %1316 = vmatprep.subr.mxu0 0.0
    %1317 = vmatpush1.msra.mxu0 0.0
    %1318 = vmatprep.subr.mxu0 0.0
    %1319 = vmatpush1.msra.mxu0 0.0
    %1320 = vmatprep.subr.mxu0 0.0
    %1321 = vmatpush1.msra.mxu0 0.0
    %1322 = vmatprep.mubr.f32.mxu0 0.0
    %1323 = vmatmul.mubr.f32.gmra.mrb[0].mxu0 %v853
    %v1324 = vpop.f32.mrb[0].mxu0
    %v1325 = vadd.f32 0.0, %v1324
    %v1326 = vpop.f32.mrb[0].mxu0
    %1327 = vmatprep.mubr.f32.mxu0 0.0
    %1328 = vmatmul.mubr.f32.gmra.mrb[0].mxu0 %v856
    %v1329 = vpop.f32.mrb[0].mxu0
    %v1330 = vadd.f32 0.0, %v1329
    %v1331 = vpop.f32.mrb[0].mxu0
    %1332 = vdwg.mxu0
    %1333 = vst.msk [vmem:[#allocation2 + $0x50] sm:$0xff] %vm851, %v1325
    %1334 = vst.msk [vmem:[#allocation2 + $0x58] sm:$0xff] %vm851, %v1330
    %s1335 = scalar_lea.vmem [#allocation12], 96
    %v1336 = vld [vmem:[%s1335] sm:$0xff]
    %v1337 = vld [vmem:[%s1335 + $0x8] sm:$0xff]
    %1338 = vmatprep.subr.mxu0 0.0
    %1339 = vmatpush1.msra.mxu0 %v1336
    %1340 = vmatprep.subr.mxu0 0.0
    %1341 = vmatpush1.msra.mxu0 %v1337
    %1342 = vmatprep.subr.mxu0 0.0
    %1343 = vmatpush1.msra.mxu0 0.0
    %1344 = vmatprep.subr.mxu0 0.0
    %1345 = vmatpush1.msra.mxu0 0.0
    %1346 = vmatprep.subr.mxu0 0.0
    %1347 = vmatpush1.msra.mxu0 0.0
    %1348 = vmatprep.subr.mxu0 0.0
    %1349 = vmatpush1.msra.mxu0 0.0
    %1350 = vmatprep.subr.mxu0 0.0
    %1351 = vmatpush1.msra.mxu0 0.0
    %1352 = vmatprep.subr.mxu0 0.0
    %1353 = vmatpush1.msra.mxu0 0.0
    %1354 = vmatprep.subr.mxu0 0.0
    %1355 = vmatpush1.msra.mxu0 0.0
    %1356 = vmatprep.subr.mxu0 0.0
    %1357 = vmatpush1.msra.mxu0 0.0
    %1358 = vmatprep.subr.mxu0 0.0
    %1359 = vmatpush1.msra.mxu0 0.0
    %1360 = vmatprep.subr.mxu0 0.0
    %1361 = vmatpush1.msra.mxu0 0.0
    %1362 = vmatprep.subr.mxu0 0.0
    %1363 = vmatpush1.msra.mxu0 0.0
    %1364 = vmatprep.subr.mxu0 0.0
    %1365 = vmatpush1.msra.mxu0 0.0
    %1366 = vmatprep.subr.mxu0 0.0
    %1367 = vmatpush1.msra.mxu0 0.0
    %1368 = vmatprep.subr.mxu0 0.0
    %1369 = vmatpush1.msra.mxu0 0.0
    %1370 = vmatprep.subr.mxu0 0.0
    %1371 = vmatpush1.msra.mxu0 0.0
    %1372 = vmatprep.subr.mxu0 0.0
    %1373 = vmatpush1.msra.mxu0 0.0
    %1374 = vmatprep.subr.mxu0 0.0
    %1375 = vmatpush1.msra.mxu0 0.0
    %1376 = vmatprep.subr.mxu0 0.0
    %1377 = vmatpush1.msra.mxu0 0.0
    %1378 = vmatprep.subr.mxu0 0.0
    %1379 = vmatpush1.msra.mxu0 0.0
    %1380 = vmatprep.subr.mxu0 0.0
    %1381 = vmatpush1.msra.mxu0 0.0
    %1382 = vmatprep.subr.mxu0 0.0
    %1383 = vmatpush1.msra.mxu0 0.0
    %1384 = vmatprep.subr.mxu0 0.0
    %1385 = vmatpush1.msra.mxu0 0.0
    %1386 = vmatprep.subr.mxu0 0.0
    %1387 = vmatpush1.msra.mxu0 0.0
    %1388 = vmatprep.subr.mxu0 0.0
    %1389 = vmatpush1.msra.mxu0 0.0
    %1390 = vmatprep.subr.mxu0 0.0
    %1391 = vmatpush1.msra.mxu0 0.0
    %1392 = vmatprep.subr.mxu0 0.0
    %1393 = vmatpush1.msra.mxu0 0.0
    %1394 = vmatprep.subr.mxu0 0.0
    %1395 = vmatpush1.msra.mxu0 0.0
    %1396 = vmatprep.subr.mxu0 0.0
    %1397 = vmatpush1.msra.mxu0 0.0
    %1398 = vmatprep.subr.mxu0 0.0
    %1399 = vmatpush1.msra.mxu0 0.0
    %1400 = vmatprep.subr.mxu0 0.0
    %1401 = vmatpush1.msra.mxu0 0.0
    %1402 = vmatprep.mubr.f32.mxu0 0.0
    %1403 = vmatmul.mubr.f32.gmra.mrb[0].mxu0 %v853
    %v1404 = vpop.f32.mrb[0].mxu0
    %v1405 = vadd.f32 0.0, %v1404
    %v1406 = vpop.f32.mrb[0].mxu0
    %1407 = vmatprep.mubr.f32.mxu0 0.0
    %1408 = vmatmul.mubr.f32.gmra.mrb[0].mxu0 %v856
    %v1409 = vpop.f32.mrb[0].mxu0
    %v1410 = vadd.f32 0.0, %v1409
    %v1411 = vpop.f32.mrb[0].mxu0
    %1412 = vdwg.mxu0
    %1413 = vst.msk [vmem:[#allocation2 + $0x60] sm:$0xff] %vm851, %v1405
    %1414 = vst.msk [vmem:[#allocation2 + $0x68] sm:$0xff] %vm851, %v1410
    %s1415 = scalar_lea.vmem [#allocation12], 112
    %v1416 = vld [vmem:[%s1415] sm:$0xff]
    %v1417 = vld [vmem:[%s1415 + $0x8] sm:$0xff]
    %1418 = vmatprep.subr.mxu0 0.0
    %1419 = vmatpush1.msra.mxu0 %v1416
    %1420 = vmatprep.subr.mxu0 0.0
    %1421 = vmatpush1.msra.mxu0 %v1417
    %1422 = vmatprep.subr.mxu0 0.0
    %1423 = vmatpush1.msra.mxu0 0.0
    %1424 = vmatprep.subr.mxu0 0.0
    %1425 = vmatpush1.msra.mxu0 0.0
    %1426 = vmatprep.subr.mxu0 0.0
    %1427 = vmatpush1.msra.mxu0 0.0
    %1428 = vmatprep.subr.mxu0 0.0
    %1429 = vmatpush1.msra.mxu0 0.0
    %1430 = vmatprep.subr.mxu0 0.0
    %1431 = vmatpush1.msra.mxu0 0.0
    %1432 = vmatprep.subr.mxu0 0.0
    %1433 = vmatpush1.msra.mxu0 0.0
    %1434 = vmatprep.subr.mxu0 0.0
    %1435 = vmatpush1.msra.mxu0 0.0
    %1436 = vmatprep.subr.mxu0 0.0
    %1437 = vmatpush1.msra.mxu0 0.0
    %1438 = vmatprep.subr.mxu0 0.0
    %1439 = vmatpush1.msra.mxu0 0.0
    %1440 = vmatprep.subr.mxu0 0.0
    %1441 = vmatpush1.msra.mxu0 0.0
    %1442 = vmatprep.subr.mxu0 0.0
    %1443 = vmatpush1.msra.mxu0 0.0
    %1444 = vmatprep.subr.mxu0 0.0
    %1445 = vmatpush1.msra.mxu0 0.0
    %1446 = vmatprep.subr.mxu0 0.0
    %1447 = vmatpush1.msra.mxu0 0.0
    %1448 = vmatprep.subr.mxu0 0.0
    %1449 = vmatpush1.msra.mxu0 0.0
    %1450 = vmatprep.subr.mxu0 0.0
    %1451 = vmatpush1.msra.mxu0 0.0
    %1452 = vmatprep.subr.mxu0 0.0
    %1453 = vmatpush1.msra.mxu0 0.0
    %1454 = vmatprep.subr.mxu0 0.0
    %1455 = vmatpush1.msra.mxu0 0.0
    %1456 = vmatprep.subr.mxu0 0.0
    %1457 = vmatpush1.msra.mxu0 0.0
    %1458 = vmatprep.subr.mxu0 0.0
    %1459 = vmatpush1.msra.mxu0 0.0
    %1460 = vmatprep.subr.mxu0 0.0
    %1461 = vmatpush1.msra.mxu0 0.0
    %1462 = vmatprep.subr.mxu0 0.0
    %1463 = vmatpush1.msra.mxu0 0.0
    %1464 = vmatprep.subr.mxu0 0.0
    %1465 = vmatpush1.msra.mxu0 0.0
    %1466 = vmatprep.subr.mxu0 0.0
    %1467 = vmatpush1.msra.mxu0 0.0
    %1468 = vmatprep.subr.mxu0 0.0
    %1469 = vmatpush1.msra.mxu0 0.0
    %1470 = vmatprep.subr.mxu0 0.0
    %1471 = vmatpush1.msra.mxu0 0.0
    %1472 = vmatprep.subr.mxu0 0.0
    %1473 = vmatpush1.msra.mxu0 0.0
    %1474 = vmatprep.subr.mxu0 0.0
    %1475 = vmatpush1.msra.mxu0 0.0
    %1476 = vmatprep.subr.mxu0 0.0
    %1477 = vmatpush1.msra.mxu0 0.0
    %1478 = vmatprep.subr.mxu0 0.0
    %1479 = vmatpush1.msra.mxu0 0.0
    %1480 = vmatprep.subr.mxu0 0.0
    %1481 = vmatpush1.msra.mxu0 0.0
    %1482 = vmatprep.mubr.f32.mxu0 0.0
    %1483 = vmatmul.mubr.f32.gmra.mrb[0].mxu0 %v853
    %v1484 = vpop.f32.mrb[0].mxu0
    %v1485 = vadd.f32 0.0, %v1484
    %v1486 = vpop.f32.mrb[0].mxu0
    %1487 = vmatprep.mubr.f32.mxu0 0.0
    %1488 = vmatmul.mubr.f32.gmra.mrb[0].mxu0 %v856
    %v1489 = vpop.f32.mrb[0].mxu0
    %v1490 = vadd.f32 0.0, %v1489
    %v1491 = vpop.f32.mrb[0].mxu0
    %1492 = vdwg.mxu0
    %1493 = vst.msk [vmem:[#allocation2 + $0x70] sm:$0xff] %vm851, %v1485
    %1494 = vst.msk [vmem:[#allocation2 + $0x78] sm:$0xff] %vm851, %v1490
    %s1495 = scalar_lea.vmem [#allocation12], 128
    %v1496 = vld [vmem:[%s1495] sm:$0xff]
    %v1497 = vld [vmem:[%s1495 + $0x8] sm:$0xff]
    %1498 = vmatprep.subr.mxu0 0.0
    %1499 = vmatpush1.msra.mxu0 %v1496
    %1500 = vmatprep.subr.mxu0 0.0
    %1501 = vmatpush1.msra.mxu0 %v1497
    %1502 = vmatprep.subr.mxu0 0.0
    %1503 = vmatpush1.msra.mxu0 0.0
    %1504 = vmatprep.subr.mxu0 0.0
    %1505 = vmatpush1.msra.mxu0 0.0
    %1506 = vmatprep.subr.mxu0 0.0
    %1507 = vmatpush1.msra.mxu0 0.0
    %1508 = vmatprep.subr.mxu0 0.0
    %1509 = vmatpush1.msra.mxu0 0.0
    %1510 = vmatprep.subr.mxu0 0.0
    %1511 = vmatpush1.msra.mxu0 0.0
    %1512 = vmatprep.subr.mxu0 0.0
    %1513 = vmatpush1.msra.mxu0 0.0
    %1514 = vmatprep.subr.mxu0 0.0
    %1515 = vmatpush1.msra.mxu0 0.0
    %1516 = vmatprep.subr.mxu0 0.0
    %1517 = vmatpush1.msra.mxu0 0.0
    %1518 = vmatprep.subr.mxu0 0.0
    %1519 = vmatpush1.msra.mxu0 0.0
    %1520 = vmatprep.subr.mxu0 0.0
    %1521 = vmatpush1.msra.mxu0 0.0
    %1522 = vmatprep.subr.mxu0 0.0
    %1523 = vmatpush1.msra.mxu0 0.0
    %1524 = vmatprep.subr.mxu0 0.0
    %1525 = vmatpush1.msra.mxu0 0.0
    %1526 = vmatprep.subr.mxu0 0.0
    %1527 = vmatpush1.msra.mxu0 0.0
    %1528 = vmatprep.subr.mxu0 0.0
    %1529 = vmatpush1.msra.mxu0 0.0
    %1530 = vmatprep.subr.mxu0 0.0
    %1531 = vmatpush1.msra.mxu0 0.0
    %1532 = vmatprep.subr.mxu0 0.0
    %1533 = vmatpush1.msra.mxu0 0.0
    %1534 = vmatprep.subr.mxu0 0.0
    %1535 = vmatpush1.msra.mxu0 0.0
    %1536 = vmatprep.subr.mxu0 0.0
    %1537 = vmatpush1.msra.mxu0 0.0
    %1538 = vmatprep.subr.mxu0 0.0
    %1539 = vmatpush1.msra.mxu0 0.0
    %1540 = vmatprep.subr.mxu0 0.0
    %1541 = vmatpush1.msra.mxu0 0.0
    %1542 = vmatprep.subr.mxu0 0.0
    %1543 = vmatpush1.msra.mxu0 0.0
    %1544 = vmatprep.subr.mxu0 0.0
    %1545 = vmatpush1.msra.mxu0 0.0
    %1546 = vmatprep.subr.mxu0 0.0
    %1547 = vmatpush1.msra.mxu0 0.0
    %1548 = vmatprep.subr.mxu0 0.0
    %1549 = vmatpush1.msra.mxu0 0.0
    %1550 = vmatprep.subr.mxu0 0.0
    %1551 = vmatpush1.msra.mxu0 0.0
    %1552 = vmatprep.subr.mxu0 0.0
    %1553 = vmatpush1.msra.mxu0 0.0
    %1554 = vmatprep.subr.mxu0 0.0
    %1555 = vmatpush1.msra.mxu0 0.0
    %1556 = vmatprep.subr.mxu0 0.0
    %1557 = vmatpush1.msra.mxu0 0.0
    %1558 = vmatprep.subr.mxu0 0.0
    %1559 = vmatpush1.msra.mxu0 0.0
    %1560 = vmatprep.subr.mxu0 0.0
    %1561 = vmatpush1.msra.mxu0 0.0
    %1562 = vmatprep.mubr.f32.mxu0 0.0
    %1563 = vmatmul.mubr.f32.gmra.mrb[0].mxu0 %v853
    %v1564 = vpop.f32.mrb[0].mxu0
    %v1565 = vadd.f32 0.0, %v1564
    %v1566 = vpop.f32.mrb[0].mxu0
    %1567 = vmatprep.mubr.f32.mxu0 0.0
    %1568 = vmatmul.mubr.f32.gmra.mrb[0].mxu0 %v856
    %v1569 = vpop.f32.mrb[0].mxu0
    %v1570 = vadd.f32 0.0, %v1569
    %v1571 = vpop.f32.mrb[0].mxu0
    %1572 = vdwg.mxu0
    %1573 = vst.msk [vmem:[#allocation2 + $0x80] sm:$0xff] %vm851, %v1565
    %1574 = vst.msk [vmem:[#allocation2 + $0x88] sm:$0xff] %vm851, %v1570
    %v1575 = vld [vmem:[#allocation15] sm:$0xff]
    %v1576 = vld [vmem:[#allocation15 + $0x8] sm:$0xff]
    %v1577 = vld [vmem:[#allocation15 + $0x10] sm:$0xff]
    %v1578 = vld [vmem:[#allocation15 + $0x18] sm:$0xff]
    %v1579 = vld [vmem:[#allocation2] sm:$0xff]
    %v1580 = vld [vmem:[#allocation2 + $0x8] sm:$0xff]
    %v1581 = vld [vmem:[#allocation2 + $0x10] sm:$0xff]
    %v1582 = vld [vmem:[#allocation2 + $0x18] sm:$0xff]
    %v1583 = vld [vmem:[#allocation2 + $0x20] sm:$0xff]
    %v1584 = vld [vmem:[#allocation2 + $0x28] sm:$0xff]
    %v1585 = vld [vmem:[#allocation2 + $0x30] sm:$0xff]
    %v1586 = vld [vmem:[#allocation2 + $0x38] sm:$0xff]
    %v1587 = vld [vmem:[#allocation2 + $0x40] sm:$0xff]
    %v1588 = vld [vmem:[#allocation2 + $0x48] sm:$0xff]
    %v1589 = vld [vmem:[#allocation2 + $0x50] sm:$0xff]
    %v1590 = vld [vmem:[#allocation2 + $0x58] sm:$0xff]
    %v1591 = vld [vmem:[#allocation2 + $0x60] sm:$0xff]
    %v1592 = vld [vmem:[#allocation2 + $0x68] sm:$0xff]
    %v1593 = vld [vmem:[#allocation2 + $0x70] sm:$0xff]
    %v1594 = vld [vmem:[#allocation2 + $0x78] sm:$0xff]
    %v1595 = vld [vmem:[#allocation2 + $0x80] sm:$0xff]
    %v1596 = vld [vmem:[#allocation2 + $0x88] sm:$0xff]
    %1598 = vset.pattern.permute.xlu0 0
    %1599 = vperm.xlu0 %1598, %v842
    %v1600 = vpop.permute.xlu0 %1599
    %1603 = vset.pattern.permute.xlu0 0
    %1604 = vperm.xlu0 %1603, %v843
    %v1605 = vpop.permute.xlu0 %1604
    %v1608 = vsel %vm851, %v1576, 0
    %v1611 = vsel %vm851, %v1578, 0
    %1613 = vmatprep.subr.mxu0 0.0
    %1614 = vmatpush1.msra.mxu0 %v1579
    %1615 = vmatprep.subr.mxu0 0.0
    %1616 = vmatpush1.msra.mxu0 %v1580
    %1617 = vmatprep.subr.mxu0 0.0
    %1618 = vmatpush1.msra.mxu0 %v1581
    %1619 = vmatprep.subr.mxu0 0.0
    %1620 = vmatpush1.msra.mxu0 %v1582
    %1621 = vmatprep.subr.mxu0 0.0
    %1622 = vmatpush1.msra.mxu0 %v1583
    %1623 = vmatprep.subr.mxu0 0.0
    %1624 = vmatpush1.msra.mxu0 %v1584
    %1625 = vmatprep.subr.mxu0 0.0
    %1626 = vmatpush1.msra.mxu0 %v1585
    %1627 = vmatprep.subr.mxu0 0.0
    %1628 = vmatpush1.msra.mxu0 %v1586
    %1629 = vmatprep.subr.mxu0 0.0
    %1630 = vmatpush1.msra.mxu0 %v1587
    %1631 = vmatprep.subr.mxu0 0.0
    %1632 = vmatpush1.msra.mxu0 %v1588
    %1633 = vmatprep.subr.mxu0 0.0
    %1634 = vmatpush1.msra.mxu0 %v1589
    %1635 = vmatprep.subr.mxu0 0.0
    %1636 = vmatpush1.msra.mxu0 %v1590
    %1637 = vmatprep.subr.mxu0 0.0
    %1638 = vmatpush1.msra.mxu0 %v1591
    %1639 = vmatprep.subr.mxu0 0.0
    %1640 = vmatpush1.msra.mxu0 %v1592
    %1641 = vmatprep.subr.mxu0 0.0
    %1642 = vmatpush1.msra.mxu0 %v1593
    %1643 = vmatprep.subr.mxu0 0.0
    %1644 = vmatpush1.msra.mxu0 %v1594
    %1645 = vmatprep.subr.mxu0 0.0
    %1646 = vmatpush1.msra.mxu0 %v1595
    %1647 = vmatprep.subr.mxu0 0.0
    %1648 = vmatpush1.msra.mxu0 %v1596
    %1649 = vmatprep.subr.mxu0 0.0
    %1650 = vmatpush1.msra.mxu0 0.0
    %1651 = vmatprep.subr.mxu0 0.0
    %1652 = vmatpush1.msra.mxu0 0.0
    %1653 = vmatprep.subr.mxu0 0.0
    %1654 = vmatpush1.msra.mxu0 0.0
    %1655 = vmatprep.subr.mxu0 0.0
    %1656 = vmatpush1.msra.mxu0 0.0
    %1657 = vmatprep.subr.mxu0 0.0
    %1658 = vmatpush1.msra.mxu0 0.0
    %1659 = vmatprep.subr.mxu0 0.0
    %1660 = vmatpush1.msra.mxu0 0.0
    %1661 = vmatprep.subr.mxu0 0.0
    %1662 = vmatpush1.msra.mxu0 0.0
    %1663 = vmatprep.subr.mxu0 0.0
    %1664 = vmatpush1.msra.mxu0 0.0
    %1665 = vmatprep.subr.mxu0 0.0
    %1666 = vmatpush1.msra.mxu0 0.0
    %1667 = vmatprep.subr.mxu0 0.0
    %1668 = vmatpush1.msra.mxu0 0.0
    %1669 = vmatprep.subr.mxu0 0.0
    %1670 = vmatpush1.msra.mxu0 0.0
    %1671 = vmatprep.subr.mxu0 0.0
    %1672 = vmatpush1.msra.mxu0 0.0
    %1673 = vmatprep.subr.mxu0 0.0
    %1674 = vmatpush1.msra.mxu0 0.0
    %1675 = vmatprep.subr.mxu0 0.0
    %1676 = vmatpush1.msra.mxu0 0.0
    %1677 = vmatprep.mubr.f32.mxu0 %v1608
    %1678 = vmatmul.mubr.f32.gmra.mrb[0].mxu0 %v1575
    %v1679 = vpop.f32.mrb[0].mxu0
    %v1680 = vadd.f32 %v1600, %v1679
    %v1681 = vpop.f32.mrb[0].mxu0
    %1682 = vmatprep.mubr.f32.mxu0 %v1611
    %1683 = vmatmul.mubr.f32.gmra.mrb[0].mxu0 %v1577
    %v1684 = vpop.f32.mrb[0].mxu0
    %v1685 = vadd.f32 %v1605, %v1684
    %v1686 = vpop.f32.mrb[0].mxu0
    %1687 = vdwg.mxu0
    %1689 = vset.pattern.permute.xlu0 0
    %1690 = vperm.xlu0 %1689, %v845
    %v1691 = vpop.permute.xlu0 %1690
    %1694 = vset.pattern.permute.xlu0 0
    %1695 = vperm.xlu0 %1694, %v846
    %v1696 = vpop.permute.xlu0 %1695
    %v1698 = vmul.f32 %v1691, %v847
    %v1699 = vmul.f32 %v1696, %v848
    %v1700 = vadd.f32 %v1680, %v1698
    %v1701 = vadd.f32 %v1685, %v1699
    %vm1702 = vcmp.gt.f32.partialorder %v1700, 0.0
    %vm1703 = vcmp.gt.f32.partialorder %v1701, 0.0
    %v1704 = vmul.f32 %v1700, 0.2
    %v1705 = vmul.f32 %v1701, 0.2
    %v1706 = vsel %vm1702, %v1700, %v1704
    %v1707 = vsel %vm1703, %v1701, %v1705
    %v1708 = vsel %vm851, %v1706, 0.0
    %1709 = vadd.xlane.f32.xlu0 %v1708
    %v1710 = vpop.xlane.xlu0 %1709
    %v1711 = vsel %vm851, %v1707, 0.0
    %1712 = vadd.xlane.f32.xlu0 %v1711
    %v1713 = vpop.xlane.xlu0 %1712
    %v1714 = vrcp.pop 16.0
    %v1715 = vmul.f32 %v1710, %v1714
    %v1716 = vmul.f32 %v1713, %v1714
    %v1717 = vsub.f32 %v1706, %v1715
    %v1718 = vsub.f32 %v1707, %v1716
    %v1719 = vmul.f32 %v1717, %v1717
    %v1720 = vmul.f32 %v1718, %v1718
    %v1721 = vsel %vm851, %v1719, 0.0
    %1722 = vadd.xlane.f32.xlu0 %v1721
    %v1723 = vpop.xlane.xlu0 %1722
    %v1724 = vsel %vm851, %v1720, 0.0
    %1725 = vadd.xlane.f32.xlu0 %v1724
    %v1726 = vpop.xlane.xlu0 %1725
    %v1727 = vmul.f32 %v1723, %v1714
    %v1728 = vmul.f32 %v1726, %v1714
    %v1729 = vadd.f32 %v1727, 1e-05
    %v1730 = vadd.f32 %v1728, 1e-05
    %v1731 = vrsqrt.pop %v1729
    %v1732 = vrsqrt.pop %v1730
    %v1733 = vmul.f32 %v1717, %v1731
    %v1734 = vmul.f32 %v1718, %v1732
    %1736 = vset.pattern.permute.xlu0 0
    %1737 = vperm.xlu0 %1736, %v782
    %v1738 = vpop.permute.xlu0 %1737
    %1741 = vset.pattern.permute.xlu0 0
    %1742 = vperm.xlu0 %1741, %v787
    %v1743 = vpop.permute.xlu0 %1742
    %v1745 = vmul.f32 %v1738, %v1733
    %v1746 = vmul.f32 %v1743, %v1734
    %1748 = vset.pattern.permute.xlu0 0
    %1749 = vperm.xlu0 %1748, %v792
    %v1750 = vpop.permute.xlu0 %1749
    %1753 = vset.pattern.permute.xlu0 0
    %1754 = vperm.xlu0 %1753, %v797
    %v1755 = vpop.permute.xlu0 %1754
    %v1757 = vadd.f32 %v1745, %v1750
    %v1758 = vadd.f32 %v1746, %v1755
    %s1759 = scalar_lea.vmem %s14, 32
    %v1760 = vld [vmem:[%s1759] sm:$0xff]
    %v1761 = vld [vmem:[%s1759 + $0x8] sm:$0xff]
    %s1762 = scalar_lea.vmem %s14, 48
    %v1763 = vld [vmem:[%s1762] sm:$0xff]
    %v1764 = vld [vmem:[%s1762 + $0x8] sm:$0xff]
    %s1765 = scalar_lea.vmem %s1, 32
    %v1766 = vld [vmem:[%s1765] sm:$0xff]
    %v1767 = vld [vmem:[%s1765 + $0x10] sm:$0xff]
    %v1768 = vld [vmem:[#allocation13] sm:$0xff]
    %v1769 = vld [vmem:[#allocation13 + $0x8] sm:$0xff]
    %v1771 = vsel %vm851, %v1757, 0
    %v1774 = vsel %vm851, %v1758, 0
    %1776 = vmatprep.subr.mxu0 0.0
    %1777 = vmatpush1.msra.mxu0 %v1768
    %1778 = vmatprep.subr.mxu0 0.0
    %1779 = vmatpush1.msra.mxu0 %v1769
    %1780 = vmatprep.subr.mxu0 0.0
    %1781 = vmatpush1.msra.mxu0 0.0
    %1782 = vmatprep.subr.mxu0 0.0
    %1783 = vmatpush1.msra.mxu0 0.0
    %1784 = vmatprep.subr.mxu0 0.0
    %1785 = vmatpush1.msra.mxu0 0.0
    %1786 = vmatprep.subr.mxu0 0.0
    %1787 = vmatpush1.msra.mxu0 0.0
    %1788 = vmatprep.subr.mxu0 0.0
    %1789 = vmatpush1.msra.mxu0 0.0
    %1790 = vmatprep.subr.mxu0 0.0
    %1791 = vmatpush1.msra.mxu0 0.0
    %1792 = vmatprep.subr.mxu0 0.0
    %1793 = vmatpush1.msra.mxu0 0.0
    %1794 = vmatprep.subr.mxu0 0.0
    %1795 = vmatpush1.msra.mxu0 0.0
    %1796 = vmatprep.subr.mxu0 0.0
    %1797 = vmatpush1.msra.mxu0 0.0
    %1798 = vmatprep.subr.mxu0 0.0
    %1799 = vmatpush1.msra.mxu0 0.0
    %1800 = vmatprep.subr.mxu0 0.0
    %1801 = vmatpush1.msra.mxu0 0.0
    %1802 = vmatprep.subr.mxu0 0.0
    %1803 = vmatpush1.msra.mxu0 0.0
    %1804 = vmatprep.subr.mxu0 0.0
    %1805 = vmatpush1.msra.mxu0 0.0
    %1806 = vmatprep.subr.mxu0 0.0
    %1807 = vmatpush1.msra.mxu0 0.0
    %1808 = vmatprep.subr.mxu0 0.0
    %1809 = vmatpush1.msra.mxu0 0.0
    %1810 = vmatprep.subr.mxu0 0.0
    %1811 = vmatpush1.msra.mxu0 0.0
    %1812 = vmatprep.subr.mxu0 0.0
    %1813 = vmatpush1.msra.mxu0 0.0
    %1814 = vmatprep.subr.mxu0 0.0
    %1815 = vmatpush1.msra.mxu0 0.0
    %1816 = vmatprep.subr.mxu0 0.0
    %1817 = vmatpush1.msra.mxu0 0.0
    %1818 = vmatprep.subr.mxu0 0.0
    %1819 = vmatpush1.msra.mxu0 0.0
    %1820 = vmatprep.subr.mxu0 0.0
    %1821 = vmatpush1.msra.mxu0 0.0
    %1822 = vmatprep.subr.mxu0 0.0
    %1823 = vmatpush1.msra.mxu0 0.0
    %1824 = vmatprep.subr.mxu0 0.0
    %1825 = vmatpush1.msra.mxu0 0.0
    %1826 = vmatprep.subr.mxu0 0.0
    %1827 = vmatpush1.msra.mxu0 0.0
    %1828 = vmatprep.subr.mxu0 0.0
    %1829 = vmatpush1.msra.mxu0 0.0
    %1830 = vmatprep.subr.mxu0 0.0
    %1831 = vmatpush1.msra.mxu0 0.0
    %1832 = vmatprep.subr.mxu0 0.0
    %1833 = vmatpush1.msra.mxu0 0.0
    %1834 = vmatprep.subr.mxu0 0.0
    %1835 = vmatpush1.msra.mxu0 0.0
    %1836 = vmatprep.subr.mxu0 0.0
    %1837 = vmatpush1.msra.mxu0 0.0
    %1838 = vmatprep.subr.mxu0 0.0
    %1839 = vmatpush1.msra.mxu0 0.0
    %1840 = vmatprep.mubr.f32.mxu0 0.0
    %1841 = vmatmul.mubr.f32.gmra.mrb[0].mxu0 %v1771
    %v1842 = vpop.f32.mrb[0].mxu0
    %v1843 = vadd.f32 0.0, %v1842
    %v1844 = vpop.f32.mrb[0].mxu0
    %1845 = vmatprep.mubr.f32.mxu0 0.0
    %1846 = vmatmul.mubr.f32.gmra.mrb[0].mxu0 %v1774
    %v1847 = vpop.f32.mrb[0].mxu0
    %v1848 = vadd.f32 0.0, %v1847
    %v1849 = vpop.f32.mrb[0].mxu0
    %1850 = vdwg.mxu0
    %1851 = vst.msk [vmem:[#allocation3] sm:$0xff] %vm247, %v1843
    %1852 = vst.msk [vmem:[#allocation3 + $0x8] sm:$0xff] %vm247, %v1848
    %s1853 = scalar_lea.vmem [#allocation13], 16
    %v1854 = vld [vmem:[%s1853] sm:$0xff]
    %v1855 = vld [vmem:[%s1853 + $0x8] sm:$0xff]
    %1856 = vmatprep.subr.mxu0 0.0
    %1857 = vmatpush1.msra.mxu0 %v1854
    %1858 = vmatprep.subr.mxu0 0.0
    %1859 = vmatpush1.msra.mxu0 %v1855
    %1860 = vmatprep.subr.mxu0 0.0
    %1861 = vmatpush1.msra.mxu0 0.0
    %1862 = vmatprep.subr.mxu0 0.0
    %1863 = vmatpush1.msra.mxu0 0.0
    %1864 = vmatprep.subr.mxu0 0.0
    %1865 = vmatpush1.msra.mxu0 0.0
    %1866 = vmatprep.subr.mxu0 0.0
    %1867 = vmatpush1.msra.mxu0 0.0
    %1868 = vmatprep.subr.mxu0 0.0
    %1869 = vmatpush1.msra.mxu0 0.0
    %1870 = vmatprep.subr.mxu0 0.0
    %1871 = vmatpush1.msra.mxu0 0.0
    %1872 = vmatprep.subr.mxu0 0.0
    %1873 = vmatpush1.msra.mxu0 0.0
    %1874 = vmatprep.subr.mxu0 0.0
    %1875 = vmatpush1.msra.mxu0 0.0
    %1876 = vmatprep.subr.mxu0 0.0
    %1877 = vmatpush1.msra.mxu0 0.0
    %1878 = vmatprep.subr.mxu0 0.0
    %1879 = vmatpush1.msra.mxu0 0.0
    %1880 = vmatprep.subr.mxu0 0.0
    %1881 = vmatpush1.msra.mxu0 0.0
    %1882 = vmatprep.subr.mxu0 0.0
    %1883 = vmatpush1.msra.mxu0 0.0
    %1884 = vmatprep.subr.mxu0 0.0
    %1885 = vmatpush1.msra.mxu0 0.0
    %1886 = vmatprep.subr.mxu0 0.0
    %1887 = vmatpush1.msra.mxu0 0.0
    %1888 = vmatprep.subr.mxu0 0.0
    %1889 = vmatpush1.msra.mxu0 0.0
    %1890 = vmatprep.subr.mxu0 0.0
    %1891 = vmatpush1.msra.mxu0 0.0
    %1892 = vmatprep.subr.mxu0 0.0
    %1893 = vmatpush1.msra.mxu0 0.0
    %1894 = vmatprep.subr.mxu0 0.0
    %1895 = vmatpush1.msra.mxu0 0.0
    %1896 = vmatprep.subr.mxu0 0.0
    %1897 = vmatpush1.msra.mxu0 0.0
    %1898 = vmatprep.subr.mxu0 0.0
    %1899 = vmatpush1.msra.mxu0 0.0
    %1900 = vmatprep.subr.mxu0 0.0
    %1901 = vmatpush1.msra.mxu0 0.0
    %1902 = vmatprep.subr.mxu0 0.0
    %1903 = vmatpush1.msra.mxu0 0.0
    %1904 = vmatprep.subr.mxu0 0.0
    %1905 = vmatpush1.msra.mxu0 0.0
    %1906 = vmatprep.subr.mxu0 0.0
    %1907 = vmatpush1.msra.mxu0 0.0
    %1908 = vmatprep.subr.mxu0 0.0
    %1909 = vmatpush1.msra.mxu0 0.0
    %1910 = vmatprep.subr.mxu0 0.0
    %1911 = vmatpush1.msra.mxu0 0.0
    %1912 = vmatprep.subr.mxu0 0.0
    %1913 = vmatpush1.msra.mxu0 0.0
    %1914 = vmatprep.subr.mxu0 0.0
    %1915 = vmatpush1.msra.mxu0 0.0
    %1916 = vmatprep.subr.mxu0 0.0
    %1917 = vmatpush1.msra.mxu0 0.0
    %1918 = vmatprep.subr.mxu0 0.0
    %1919 = vmatpush1.msra.mxu0 0.0
    %1920 = vmatprep.mubr.f32.mxu0 0.0
    %1921 = vmatmul.mubr.f32.gmra.mrb[0].mxu0 %v1771
    %v1922 = vpop.f32.mrb[0].mxu0
    %v1923 = vadd.f32 0.0, %v1922
    %v1924 = vpop.f32.mrb[0].mxu0
    %1925 = vmatprep.mubr.f32.mxu0 0.0
    %1926 = vmatmul.mubr.f32.gmra.mrb[0].mxu0 %v1774
    %v1927 = vpop.f32.mrb[0].mxu0
    %v1928 = vadd.f32 0.0, %v1927
    %v1929 = vpop.f32.mrb[0].mxu0
    %1930 = vdwg.mxu0
    %1931 = vst.msk [vmem:[#allocation3 + $0x10] sm:$0xff] %vm247, %v1923
    %1932 = vst.msk [vmem:[#allocation3 + $0x18] sm:$0xff] %vm247, %v1928
    %s1933 = scalar_lea.vmem [#allocation13], 32
    %v1934 = vld [vmem:[%s1933] sm:$0xff]
    %v1935 = vld [vmem:[%s1933 + $0x8] sm:$0xff]
    %1936 = vmatprep.subr.mxu0 0.0
    %1937 = vmatpush1.msra.mxu0 %v1934
    %1938 = vmatprep.subr.mxu0 0.0
    %1939 = vmatpush1.msra.mxu0 %v1935
    %1940 = vmatprep.subr.mxu0 0.0
    %1941 = vmatpush1.msra.mxu0 0.0
    %1942 = vmatprep.subr.mxu0 0.0
    %1943 = vmatpush1.msra.mxu0 0.0
    %1944 = vmatprep.subr.mxu0 0.0
    %1945 = vmatpush1.msra.mxu0 0.0
    %1946 = vmatprep.subr.mxu0 0.0
    %1947 = vmatpush1.msra.mxu0 0.0
    %1948 = vmatprep.subr.mxu0 0.0
    %1949 = vmatpush1.msra.mxu0 0.0
    %1950 = vmatprep.subr.mxu0 0.0
    %1951 = vmatpush1.msra.mxu0 0.0
    %1952 = vmatprep.subr.mxu0 0.0
    %1953 = vmatpush1.msra.mxu0 0.0
    %1954 = vmatprep.subr.mxu0 0.0
    %1955 = vmatpush1.msra.mxu0 0.0
    %1956 = vmatprep.subr.mxu0 0.0
    %1957 = vmatpush1.msra.mxu0 0.0
    %1958 = vmatprep.subr.mxu0 0.0
    %1959 = vmatpush1.msra.mxu0 0.0
    %1960 = vmatprep.subr.mxu0 0.0
    %1961 = vmatpush1.msra.mxu0 0.0
    %1962 = vmatprep.subr.mxu0 0.0
    %1963 = vmatpush1.msra.mxu0 0.0
    %1964 = vmatprep.subr.mxu0 0.0
    %1965 = vmatpush1.msra.mxu0 0.0
    %1966 = vmatprep.subr.mxu0 0.0
    %1967 = vmatpush1.msra.mxu0 0.0
    %1968 = vmatprep.subr.mxu0 0.0
    %1969 = vmatpush1.msra.mxu0 0.0
    %1970 = vmatprep.subr.mxu0 0.0
    %1971 = vmatpush1.msra.mxu0 0.0
    %1972 = vmatprep.subr.mxu0 0.0
    %1973 = vmatpush1.msra.mxu0 0.0
    %1974 = vmatprep.subr.mxu0 0.0
    %1975 = vmatpush1.msra.mxu0 0.0
    %1976 = vmatprep.subr.mxu0 0.0
    %1977 = vmatpush1.msra.mxu0 0.0
    %1978 = vmatprep.subr.mxu0 0.0
    %1979 = vmatpush1.msra.mxu0 0.0
    %1980 = vmatprep.subr.mxu0 0.0
    %1981 = vmatpush1.msra.mxu0 0.0
    %1982 = vmatprep.subr.mxu0 0.0
    %1983 = vmatpush1.msra.mxu0 0.0
    %1984 = vmatprep.subr.mxu0 0.0
    %1985 = vmatpush1.msra.mxu0 0.0
    %1986 = vmatprep.subr.mxu0 0.0
    %1987 = vmatpush1.msra.mxu0 0.0
    %1988 = vmatprep.subr.mxu0 0.0
    %1989 = vmatpush1.msra.mxu0 0.0
    %1990 = vmatprep.subr.mxu0 0.0
    %1991 = vmatpush1.msra.mxu0 0.0
    %1992 = vmatprep.subr.mxu0 0.0
    %1993 = vmatpush1.msra.mxu0 0.0
    %1994 = vmatprep.subr.mxu0 0.0
    %1995 = vmatpush1.msra.mxu0 0.0
    %1996 = vmatprep.subr.mxu0 0.0
    %1997 = vmatpush1.msra.mxu0 0.0
    %1998 = vmatprep.subr.mxu0 0.0
    %1999 = vmatpush1.msra.mxu0 0.0
    %2000 = vmatprep.mubr.f32.mxu0 0.0
    %2001 = vmatmul.mubr.f32.gmra.mrb[0].mxu0 %v1771
    %v2002 = vpop.f32.mrb[0].mxu0
    %v2003 = vadd.f32 0.0, %v2002
    %v2004 = vpop.f32.mrb[0].mxu0
    %2005 = vmatprep.mubr.f32.mxu0 0.0
    %2006 = vmatmul.mubr.f32.gmra.mrb[0].mxu0 %v1774
    %v2007 = vpop.f32.mrb[0].mxu0
    %v2008 = vadd.f32 0.0, %v2007
    %v2009 = vpop.f32.mrb[0].mxu0
    %2010 = vdwg.mxu0
    %2011 = vst.msk [vmem:[#allocation3 + $0x20] sm:$0xff] %vm247, %v2003
    %2012 = vst.msk [vmem:[#allocation3 + $0x28] sm:$0xff] %vm247, %v2008
    %s2013 = scalar_lea.vmem [#allocation13], 48
    %v2014 = vld [vmem:[%s2013] sm:$0xff]
    %v2015 = vld [vmem:[%s2013 + $0x8] sm:$0xff]
    %2016 = vmatprep.subr.mxu0 0.0
    %2017 = vmatpush1.msra.mxu0 %v2014
    %2018 = vmatprep.subr.mxu0 0.0
    %2019 = vmatpush1.msra.mxu0 %v2015
    %2020 = vmatprep.subr.mxu0 0.0
    %2021 = vmatpush1.msra.mxu0 0.0
    %2022 = vmatprep.subr.mxu0 0.0
    %2023 = vmatpush1.msra.mxu0 0.0
    %2024 = vmatprep.subr.mxu0 0.0
    %2025 = vmatpush1.msra.mxu0 0.0
    %2026 = vmatprep.subr.mxu0 0.0
    %2027 = vmatpush1.msra.mxu0 0.0
    %2028 = vmatprep.subr.mxu0 0.0
    %2029 = vmatpush1.msra.mxu0 0.0
    %2030 = vmatprep.subr.mxu0 0.0
    %2031 = vmatpush1.msra.mxu0 0.0
    %2032 = vmatprep.subr.mxu0 0.0
    %2033 = vmatpush1.msra.mxu0 0.0
    %2034 = vmatprep.subr.mxu0 0.0
    %2035 = vmatpush1.msra.mxu0 0.0
    %2036 = vmatprep.subr.mxu0 0.0
    %2037 = vmatpush1.msra.mxu0 0.0
    %2038 = vmatprep.subr.mxu0 0.0
    %2039 = vmatpush1.msra.mxu0 0.0
    %2040 = vmatprep.subr.mxu0 0.0
    %2041 = vmatpush1.msra.mxu0 0.0
    %2042 = vmatprep.subr.mxu0 0.0
    %2043 = vmatpush1.msra.mxu0 0.0
    %2044 = vmatprep.subr.mxu0 0.0
    %2045 = vmatpush1.msra.mxu0 0.0
    %2046 = vmatprep.subr.mxu0 0.0
    %2047 = vmatpush1.msra.mxu0 0.0
    %2048 = vmatprep.subr.mxu0 0.0
    %2049 = vmatpush1.msra.mxu0 0.0
    %2050 = vmatprep.subr.mxu0 0.0
    %2051 = vmatpush1.msra.mxu0 0.0
    %2052 = vmatprep.subr.mxu0 0.0
    %2053 = vmatpush1.msra.mxu0 0.0
    %2054 = vmatprep.subr.mxu0 0.0
    %2055 = vmatpush1.msra.mxu0 0.0
    %2056 = vmatprep.subr.mxu0 0.0
    %2057 = vmatpush1.msra.mxu0 0.0
    %2058 = vmatprep.subr.mxu0 0.0
    %2059 = vmatpush1.msra.mxu0 0.0
    %2060 = vmatprep.subr.mxu0 0.0
    %2061 = vmatpush1.msra.mxu0 0.0
    %2062 = vmatprep.subr.mxu0 0.0
    %2063 = vmatpush1.msra.mxu0 0.0
    %2064 = vmatprep.subr.mxu0 0.0
    %2065 = vmatpush1.msra.mxu0 0.0
    %2066 = vmatprep.subr.mxu0 0.0
    %2067 = vmatpush1.msra.mxu0 0.0
    %2068 = vmatprep.subr.mxu0 0.0
    %2069 = vmatpush1.msra.mxu0 0.0
    %2070 = vmatprep.subr.mxu0 0.0
    %2071 = vmatpush1.msra.mxu0 0.0
    %2072 = vmatprep.subr.mxu0 0.0
    %2073 = vmatpush1.msra.mxu0 0.0
    %2074 = vmatprep.subr.mxu0 0.0
    %2075 = vmatpush1.msra.mxu0 0.0
    %2076 = vmatprep.subr.mxu0 0.0
    %2077 = vmatpush1.msra.mxu0 0.0
    %2078 = vmatprep.subr.mxu0 0.0
    %2079 = vmatpush1.msra.mxu0 0.0
    %2080 = vmatprep.mubr.f32.mxu0 0.0
    %2081 = vmatmul.mubr.f32.gmra.mrb[0].mxu0 %v1771
    %v2082 = vpop.f32.mrb[0].mxu0
    %v2083 = vadd.f32 0.0, %v2082
    %v2084 = vpop.f32.mrb[0].mxu0
    %2085 = vmatprep.mubr.f32.mxu0 0.0
    %2086 = vmatmul.mubr.f32.gmra.mrb[0].mxu0 %v1774
    %v2087 = vpop.f32.mrb[0].mxu0
    %v2088 = vadd.f32 0.0, %v2087
    %v2089 = vpop.f32.mrb[0].mxu0
    %2090 = vdwg.mxu0
    %2091 = vst.msk [vmem:[#allocation3 + $0x30] sm:$0xff] %vm247, %v2083
    %2092 = vst.msk [vmem:[#allocation3 + $0x38] sm:$0xff] %vm247, %v2088
    %s2093 = scalar_lea.vmem [#allocation13], 64
    %v2094 = vld [vmem:[%s2093] sm:$0xff]
    %v2095 = vld [vmem:[%s2093 + $0x8] sm:$0xff]
    %2096 = vmatprep.subr.mxu0 0.0
    %2097 = vmatpush1.msra.mxu0 %v2094
    %2098 = vmatprep.subr.mxu0 0.0
    %2099 = vmatpush1.msra.mxu0 %v2095
    %2100 = vmatprep.subr.mxu0 0.0
    %2101 = vmatpush1.msra.mxu0 0.0
    %2102 = vmatprep.subr.mxu0 0.0
    %2103 = vmatpush1.msra.mxu0 0.0
    %2104 = vmatprep.subr.mxu0 0.0
    %2105 = vmatpush1.msra.mxu0 0.0
    %2106 = vmatprep.subr.mxu0 0.0
    %2107 = vmatpush1.msra.mxu0 0.0
    %2108 = vmatprep.subr.mxu0 0.0
    %2109 = vmatpush1.msra.mxu0 0.0
    %2110 = vmatprep.subr.mxu0 0.0
    %2111 = vmatpush1.msra.mxu0 0.0
    %2112 = vmatprep.subr.mxu0 0.0
    %2113 = vmatpush1.msra.mxu0 0.0
    %2114 = vmatprep.subr.mxu0 0.0
    %2115 = vmatpush1.msra.mxu0 0.0
    %2116 = vmatprep.subr.mxu0 0.0
    %2117 = vmatpush1.msra.mxu0 0.0
    %2118 = vmatprep.subr.mxu0 0.0
    %2119 = vmatpush1.msra.mxu0 0.0
    %2120 = vmatprep.subr.mxu0 0.0
    %2121 = vmatpush1.msra.mxu0 0.0
    %2122 = vmatprep.subr.mxu0 0.0
    %2123 = vmatpush1.msra.mxu0 0.0
    %2124 = vmatprep.subr.mxu0 0.0
    %2125 = vmatpush1.msra.mxu0 0.0
    %2126 = vmatprep.subr.mxu0 0.0
    %2127 = vmatpush1.msra.mxu0 0.0
    %2128 = vmatprep.subr.mxu0 0.0
    %2129 = vmatpush1.msra.mxu0 0.0
    %2130 = vmatprep.subr.mxu0 0.0
    %2131 = vmatpush1.msra.mxu0 0.0
    %2132 = vmatprep.subr.mxu0 0.0
    %2133 = vmatpush1.msra.mxu0 0.0
    %2134 = vmatprep.subr.mxu0 0.0
    %2135 = vmatpush1.msra.mxu0 0.0
    %2136 = vmatprep.subr.mxu0 0.0
    %2137 = vmatpush1.msra.mxu0 0.0
    %2138 = vmatprep.subr.mxu0 0.0
    %2139 = vmatpush1.msra.mxu0 0.0
    %2140 = vmatprep.subr.mxu0 0.0
    %2141 = vmatpush1.msra.mxu0 0.0
    %2142 = vmatprep.subr.mxu0 0.0
    %2143 = vmatpush1.msra.mxu0 0.0
    %2144 = vmatprep.subr.mxu0 0.0
    %2145 = vmatpush1.msra.mxu0 0.0
    %2146 = vmatprep.subr.mxu0 0.0
    %2147 = vmatpush1.msra.mxu0 0.0
    %2148 = vmatprep.subr.mxu0 0.0
    %2149 = vmatpush1.msra.mxu0 0.0
    %2150 = vmatprep.subr.mxu0 0.0
    %2151 = vmatpush1.msra.mxu0 0.0
    %2152 = vmatprep.subr.mxu0 0.0
    %2153 = vmatpush1.msra.mxu0 0.0
    %2154 = vmatprep.subr.mxu0 0.0
    %2155 = vmatpush1.msra.mxu0 0.0
    %2156 = vmatprep.subr.mxu0 0.0
    %2157 = vmatpush1.msra.mxu0 0.0
    %2158 = vmatprep.subr.mxu0 0.0
    %2159 = vmatpush1.msra.mxu0 0.0
    %2160 = vmatprep.mubr.f32.mxu0 0.0
    %2161 = vmatmul.mubr.f32.gmra.mrb[0].mxu0 %v1771
    %v2162 = vpop.f32.mrb[0].mxu0
    %v2163 = vadd.f32 0.0, %v2162
    %v2164 = vpop.f32.mrb[0].mxu0
    %2165 = vmatprep.mubr.f32.mxu0 0.0
    %2166 = vmatmul.mubr.f32.gmra.mrb[0].mxu0 %v1774
    %v2167 = vpop.f32.mrb[0].mxu0
    %v2168 = vadd.f32 0.0, %v2167
    %v2169 = vpop.f32.mrb[0].mxu0
    %2170 = vdwg.mxu0
    %2171 = vst.msk [vmem:[#allocation3 + $0x40] sm:$0xff] %vm247, %v2163
    %2172 = vst.msk [vmem:[#allocation3 + $0x48] sm:$0xff] %vm247, %v2168
    %s2173 = scalar_lea.vmem [#allocation13], 80
    %v2174 = vld [vmem:[%s2173] sm:$0xff]
    %v2175 = vld [vmem:[%s2173 + $0x8] sm:$0xff]
    %2176 = vmatprep.subr.mxu0 0.0
    %2177 = vmatpush1.msra.mxu0 %v2174
    %2178 = vmatprep.subr.mxu0 0.0
    %2179 = vmatpush1.msra.mxu0 %v2175
    %2180 = vmatprep.subr.mxu0 0.0
    %2181 = vmatpush1.msra.mxu0 0.0
    %2182 = vmatprep.subr.mxu0 0.0
    %2183 = vmatpush1.msra.mxu0 0.0
    %2184 = vmatprep.subr.mxu0 0.0
    %2185 = vmatpush1.msra.mxu0 0.0
    %2186 = vmatprep.subr.mxu0 0.0
    %2187 = vmatpush1.msra.mxu0 0.0
    %2188 = vmatprep.subr.mxu0 0.0
    %2189 = vmatpush1.msra.mxu0 0.0
    %2190 = vmatprep.subr.mxu0 0.0
    %2191 = vmatpush1.msra.mxu0 0.0
    %2192 = vmatprep.subr.mxu0 0.0
    %2193 = vmatpush1.msra.mxu0 0.0
    %2194 = vmatprep.subr.mxu0 0.0
    %2195 = vmatpush1.msra.mxu0 0.0
    %2196 = vmatprep.subr.mxu0 0.0
    %2197 = vmatpush1.msra.mxu0 0.0
    %2198 = vmatprep.subr.mxu0 0.0
    %2199 = vmatpush1.msra.mxu0 0.0
    %2200 = vmatprep.subr.mxu0 0.0
    %2201 = vmatpush1.msra.mxu0 0.0
    %2202 = vmatprep.subr.mxu0 0.0
    %2203 = vmatpush1.msra.mxu0 0.0
    %2204 = vmatprep.subr.mxu0 0.0
    %2205 = vmatpush1.msra.mxu0 0.0
    %2206 = vmatprep.subr.mxu0 0.0
    %2207 = vmatpush1.msra.mxu0 0.0
    %2208 = vmatprep.subr.mxu0 0.0
    %2209 = vmatpush1.msra.mxu0 0.0
    %2210 = vmatprep.subr.mxu0 0.0
    %2211 = vmatpush1.msra.mxu0 0.0
    %2212 = vmatprep.subr.mxu0 0.0
    %2213 = vmatpush1.msra.mxu0 0.0
    %2214 = vmatprep.subr.mxu0 0.0
    %2215 = vmatpush1.msra.mxu0 0.0
    %2216 = vmatprep.subr.mxu0 0.0
    %2217 = vmatpush1.msra.mxu0 0.0
    %2218 = vmatprep.subr.mxu0 0.0
    %2219 = vmatpush1.msra.mxu0 0.0
    %2220 = vmatprep.subr.mxu0 0.0
    %2221 = vmatpush1.msra.mxu0 0.0
    %2222 = vmatprep.subr.mxu0 0.0
    %2223 = vmatpush1.msra.mxu0 0.0
    %2224 = vmatprep.subr.mxu0 0.0
    %2225 = vmatpush1.msra.mxu0 0.0
    %2226 = vmatprep.subr.mxu0 0.0
    %2227 = vmatpush1.msra.mxu0 0.0
    %2228 = vmatprep.subr.mxu0 0.0
    %2229 = vmatpush1.msra.mxu0 0.0
    %2230 = vmatprep.subr.mxu0 0.0
    %2231 = vmatpush1.msra.mxu0 0.0
    %2232 = vmatprep.subr.mxu0 0.0
    %2233 = vmatpush1.msra.mxu0 0.0
    %2234 = vmatprep.subr.mxu0 0.0
    %2235 = vmatpush1.msra.mxu0 0.0
    %2236 = vmatprep.subr.mxu0 0.0
    %2237 = vmatpush1.msra.mxu0 0.0
    %2238 = vmatprep.subr.mxu0 0.0
    %2239 = vmatpush1.msra.mxu0 0.0
    %2240 = vmatprep.mubr.f32.mxu0 0.0
    %2241 = vmatmul.mubr.f32.gmra.mrb[0].mxu0 %v1771
    %v2242 = vpop.f32.mrb[0].mxu0
    %v2243 = vadd.f32 0.0, %v2242
    %v2244 = vpop.f32.mrb[0].mxu0
    %2245 = vmatprep.mubr.f32.mxu0 0.0
    %2246 = vmatmul.mubr.f32.gmra.mrb[0].mxu0 %v1774
    %v2247 = vpop.f32.mrb[0].mxu0
    %v2248 = vadd.f32 0.0, %v2247
    %v2249 = vpop.f32.mrb[0].mxu0
    %2250 = vdwg.mxu0
    %2251 = vst.msk [vmem:[#allocation3 + $0x50] sm:$0xff] %vm247, %v2243
    %2252 = vst.msk [vmem:[#allocation3 + $0x58] sm:$0xff] %vm247, %v2248
    %s2253 = scalar_lea.vmem [#allocation13], 96
    %v2254 = vld [vmem:[%s2253] sm:$0xff]
    %v2255 = vld [vmem:[%s2253 + $0x8] sm:$0xff]
    %2256 = vmatprep.subr.mxu0 0.0
    %2257 = vmatpush1.msra.mxu0 %v2254
    %2258 = vmatprep.subr.mxu0 0.0
    %2259 = vmatpush1.msra.mxu0 %v2255
    %2260 = vmatprep.subr.mxu0 0.0
    %2261 = vmatpush1.msra.mxu0 0.0
    %2262 = vmatprep.subr.mxu0 0.0
    %2263 = vmatpush1.msra.mxu0 0.0
    %2264 = vmatprep.subr.mxu0 0.0
    %2265 = vmatpush1.msra.mxu0 0.0
    %2266 = vmatprep.subr.mxu0 0.0
    %2267 = vmatpush1.msra.mxu0 0.0
    %2268 = vmatprep.subr.mxu0 0.0
    %2269 = vmatpush1.msra.mxu0 0.0
    %2270 = vmatprep.subr.mxu0 0.0
    %2271 = vmatpush1.msra.mxu0 0.0
    %2272 = vmatprep.subr.mxu0 0.0
    %2273 = vmatpush1.msra.mxu0 0.0
    %2274 = vmatprep.subr.mxu0 0.0
    %2275 = vmatpush1.msra.mxu0 0.0
    %2276 = vmatprep.subr.mxu0 0.0
    %2277 = vmatpush1.msra.mxu0 0.0
    %2278 = vmatprep.subr.mxu0 0.0
    %2279 = vmatpush1.msra.mxu0 0.0
    %2280 = vmatprep.subr.mxu0 0.0
    %2281 = vmatpush1.msra.mxu0 0.0
    %2282 = vmatprep.subr.mxu0 0.0
    %2283 = vmatpush1.msra.mxu0 0.0
    %2284 = vmatprep.subr.mxu0 0.0
    %2285 = vmatpush1.msra.mxu0 0.0
    %2286 = vmatprep.subr.mxu0 0.0
    %2287 = vmatpush1.msra.mxu0 0.0
    %2288 = vmatprep.subr.mxu0 0.0
    %2289 = vmatpush1.msra.mxu0 0.0
    %2290 = vmatprep.subr.mxu0 0.0
    %2291 = vmatpush1.msra.mxu0 0.0
    %2292 = vmatprep.subr.mxu0 0.0
    %2293 = vmatpush1.msra.mxu0 0.0
    %2294 = vmatprep.subr.mxu0 0.0
    %2295 = vmatpush1.msra.mxu0 0.0
    %2296 = vmatprep.subr.mxu0 0.0
    %2297 = vmatpush1.msra.mxu0 0.0
    %2298 = vmatprep.subr.mxu0 0.0
    %2299 = vmatpush1.msra.mxu0 0.0
    %2300 = vmatprep.subr.mxu0 0.0
    %2301 = vmatpush1.msra.mxu0 0.0
    %2302 = vmatprep.subr.mxu0 0.0
    %2303 = vmatpush1.msra.mxu0 0.0
    %2304 = vmatprep.subr.mxu0 0.0
    %2305 = vmatpush1.msra.mxu0 0.0
    %2306 = vmatprep.subr.mxu0 0.0
    %2307 = vmatpush1.msra.mxu0 0.0
    %2308 = vmatprep.subr.mxu0 0.0
    %2309 = vmatpush1.msra.mxu0 0.0
    %2310 = vmatprep.subr.mxu0 0.0
    %2311 = vmatpush1.msra.mxu0 0.0
    %2312 = vmatprep.subr.mxu0 0.0
    %2313 = vmatpush1.msra.mxu0 0.0
    %2314 = vmatprep.subr.mxu0 0.0
    %2315 = vmatpush1.msra.mxu0 0.0
    %2316 = vmatprep.subr.mxu0 0.0
    %2317 = vmatpush1.msra.mxu0 0.0
    %2318 = vmatprep.subr.mxu0 0.0
    %2319 = vmatpush1.msra.mxu0 0.0
    %2320 = vmatprep.mubr.f32.mxu0 0.0
    %2321 = vmatmul.mubr.f32.gmra.mrb[0].mxu0 %v1771
    %v2322 = vpop.f32.mrb[0].mxu0
    %v2323 = vadd.f32 0.0, %v2322
    %v2324 = vpop.f32.mrb[0].mxu0
    %2325 = vmatprep.mubr.f32.mxu0 0.0
    %2326 = vmatmul.mubr.f32.gmra.mrb[0].mxu0 %v1774
    %v2327 = vpop.f32.mrb[0].mxu0
    %v2328 = vadd.f32 0.0, %v2327
    %v2329 = vpop.f32.mrb[0].mxu0
    %2330 = vdwg.mxu0
    %2331 = vst.msk [vmem:[#allocation3 + $0x60] sm:$0xff] %vm247, %v2323
    %2332 = vst.msk [vmem:[#allocation3 + $0x68] sm:$0xff] %vm247, %v2328
    %s2333 = scalar_lea.vmem [#allocation13], 112
    %v2334 = vld [vmem:[%s2333] sm:$0xff]
    %v2335 = vld [vmem:[%s2333 + $0x8] sm:$0xff]
    %2336 = vmatprep.subr.mxu0 0.0
    %2337 = vmatpush1.msra.mxu0 %v2334
    %2338 = vmatprep.subr.mxu0 0.0
    %2339 = vmatpush1.msra.mxu0 %v2335
    %2340 = vmatprep.subr.mxu0 0.0
    %2341 = vmatpush1.msra.mxu0 0.0
    %2342 = vmatprep.subr.mxu0 0.0
    %2343 = vmatpush1.msra.mxu0 0.0
    %2344 = vmatprep.subr.mxu0 0.0
    %2345 = vmatpush1.msra.mxu0 0.0
    %2346 = vmatprep.subr.mxu0 0.0
    %2347 = vmatpush1.msra.mxu0 0.0
    %2348 = vmatprep.subr.mxu0 0.0
    %2349 = vmatpush1.msra.mxu0 0.0
    %2350 = vmatprep.subr.mxu0 0.0
    %2351 = vmatpush1.msra.mxu0 0.0
    %2352 = vmatprep.subr.mxu0 0.0
    %2353 = vmatpush1.msra.mxu0 0.0
    %2354 = vmatprep.subr.mxu0 0.0
    %2355 = vmatpush1.msra.mxu0 0.0
    %2356 = vmatprep.subr.mxu0 0.0
    %2357 = vmatpush1.msra.mxu0 0.0
    %2358 = vmatprep.subr.mxu0 0.0
    %2359 = vmatpush1.msra.mxu0 0.0
    %2360 = vmatprep.subr.mxu0 0.0
    %2361 = vmatpush1.msra.mxu0 0.0
    %2362 = vmatprep.subr.mxu0 0.0
    %2363 = vmatpush1.msra.mxu0 0.0
    %2364 = vmatprep.subr.mxu0 0.0
    %2365 = vmatpush1.msra.mxu0 0.0
    %2366 = vmatprep.subr.mxu0 0.0
    %2367 = vmatpush1.msra.mxu0 0.0
    %2368 = vmatprep.subr.mxu0 0.0
    %2369 = vmatpush1.msra.mxu0 0.0
    %2370 = vmatprep.subr.mxu0 0.0
    %2371 = vmatpush1.msra.mxu0 0.0
    %2372 = vmatprep.subr.mxu0 0.0
    %2373 = vmatpush1.msra.mxu0 0.0
    %2374 = vmatprep.subr.mxu0 0.0
    %2375 = vmatpush1.msra.mxu0 0.0
    %2376 = vmatprep.subr.mxu0 0.0
    %2377 = vmatpush1.msra.mxu0 0.0
    %2378 = vmatprep.subr.mxu0 0.0
    %2379 = vmatpush1.msra.mxu0 0.0
    %2380 = vmatprep.subr.mxu0 0.0
    %2381 = vmatpush1.msra.mxu0 0.0
    %2382 = vmatprep.subr.mxu0 0.0
    %2383 = vmatpush1.msra.mxu0 0.0
    %2384 = vmatprep.subr.mxu0 0.0
    %2385 = vmatpush1.msra.mxu0 0.0
    %2386 = vmatprep.subr.mxu0 0.0
    %2387 = vmatpush1.msra.mxu0 0.0
    %2388 = vmatprep.subr.mxu0 0.0
    %2389 = vmatpush1.msra.mxu0 0.0
    %2390 = vmatprep.subr.mxu0 0.0
    %2391 = vmatpush1.msra.mxu0 0.0
    %2392 = vmatprep.subr.mxu0 0.0
    %2393 = vmatpush1.msra.mxu0 0.0
    %2394 = vmatprep.subr.mxu0 0.0
    %2395 = vmatpush1.msra.mxu0 0.0
    %2396 = vmatprep.subr.mxu0 0.0
    %2397 = vmatpush1.msra.mxu0 0.0
    %2398 = vmatprep.subr.mxu0 0.0
    %2399 = vmatpush1.msra.mxu0 0.0
    %2400 = vmatprep.mubr.f32.mxu0 0.0
    %2401 = vmatmul.mubr.f32.gmra.mrb[0].mxu0 %v1771
    %v2402 = vpop.f32.mrb[0].mxu0
    %v2403 = vadd.f32 0.0, %v2402
    %v2404 = vpop.f32.mrb[0].mxu0
    %2405 = vmatprep.mubr.f32.mxu0 0.0
    %2406 = vmatmul.mubr.f32.gmra.mrb[0].mxu0 %v1774
    %v2407 = vpop.f32.mrb[0].mxu0
    %v2408 = vadd.f32 0.0, %v2407
    %v2409 = vpop.f32.mrb[0].mxu0
    %2410 = vdwg.mxu0
    %2411 = vst.msk [vmem:[#allocation3 + $0x70] sm:$0xff] %vm247, %v2403
    %2412 = vst.msk [vmem:[#allocation3 + $0x78] sm:$0xff] %vm247, %v2408
    %s2413 = scalar_lea.vmem [#allocation13], 128
    %v2414 = vld [vmem:[%s2413] sm:$0xff]
    %v2415 = vld [vmem:[%s2413 + $0x8] sm:$0xff]
    %2416 = vmatprep.subr.mxu0 0.0
    %2417 = vmatpush1.msra.mxu0 %v2414
    %2418 = vmatprep.subr.mxu0 0.0
    %2419 = vmatpush1.msra.mxu0 %v2415
    %2420 = vmatprep.subr.mxu0 0.0
    %2421 = vmatpush1.msra.mxu0 0.0
    %2422 = vmatprep.subr.mxu0 0.0
    %2423 = vmatpush1.msra.mxu0 0.0
    %2424 = vmatprep.subr.mxu0 0.0
    %2425 = vmatpush1.msra.mxu0 0.0
    %2426 = vmatprep.subr.mxu0 0.0
    %2427 = vmatpush1.msra.mxu0 0.0
    %2428 = vmatprep.subr.mxu0 0.0
    %2429 = vmatpush1.msra.mxu0 0.0
    %2430 = vmatprep.subr.mxu0 0.0
    %2431 = vmatpush1.msra.mxu0 0.0
    %2432 = vmatprep.subr.mxu0 0.0
    %2433 = vmatpush1.msra.mxu0 0.0
    %2434 = vmatprep.subr.mxu0 0.0
    %2435 = vmatpush1.msra.mxu0 0.0
    %2436 = vmatprep.subr.mxu0 0.0
    %2437 = vmatpush1.msra.mxu0 0.0
    %2438 = vmatprep.subr.mxu0 0.0
    %2439 = vmatpush1.msra.mxu0 0.0
    %2440 = vmatprep.subr.mxu0 0.0
    %2441 = vmatpush1.msra.mxu0 0.0
    %2442 = vmatprep.subr.mxu0 0.0
    %2443 = vmatpush1.msra.mxu0 0.0
    %2444 = vmatprep.subr.mxu0 0.0
    %2445 = vmatpush1.msra.mxu0 0.0
    %2446 = vmatprep.subr.mxu0 0.0
    %2447 = vmatpush1.msra.mxu0 0.0
    %2448 = vmatprep.subr.mxu0 0.0
    %2449 = vmatpush1.msra.mxu0 0.0
    %2450 = vmatprep.subr.mxu0 0.0
    %2451 = vmatpush1.msra.mxu0 0.0
    %2452 = vmatprep.subr.mxu0 0.0
    %2453 = vmatpush1.msra.mxu0 0.0
    %2454 = vmatprep.subr.mxu0 0.0
    %2455 = vmatpush1.msra.mxu0 0.0
    %2456 = vmatprep.subr.mxu0 0.0
    %2457 = vmatpush1.msra.mxu0 0.0
    %2458 = vmatprep.subr.mxu0 0.0
    %2459 = vmatpush1.msra.mxu0 0.0
    %2460 = vmatprep.subr.mxu0 0.0
    %2461 = vmatpush1.msra.mxu0 0.0
    %2462 = vmatprep.subr.mxu0 0.0
    %2463 = vmatpush1.msra.mxu0 0.0
    %2464 = vmatprep.subr.mxu0 0.0
    %2465 = vmatpush1.msra.mxu0 0.0
    %2466 = vmatprep.subr.mxu0 0.0
    %2467 = vmatpush1.msra.mxu0 0.0
    %2468 = vmatprep.subr.mxu0 0.0
    %2469 = vmatpush1.msra.mxu0 0.0
    %2470 = vmatprep.subr.mxu0 0.0
    %2471 = vmatpush1.msra.mxu0 0.0
    %2472 = vmatprep.subr.mxu0 0.0
    %2473 = vmatpush1.msra.mxu0 0.0
    %2474 = vmatprep.subr.mxu0 0.0
    %2475 = vmatpush1.msra.mxu0 0.0
    %2476 = vmatprep.subr.mxu0 0.0
    %2477 = vmatpush1.msra.mxu0 0.0
    %2478 = vmatprep.subr.mxu0 0.0
    %2479 = vmatpush1.msra.mxu0 0.0
    %2480 = vmatprep.mubr.f32.mxu0 0.0
    %2481 = vmatmul.mubr.f32.gmra.mrb[0].mxu0 %v1771
    %v2482 = vpop.f32.mrb[0].mxu0
    %v2483 = vadd.f32 0.0, %v2482
    %v2484 = vpop.f32.mrb[0].mxu0
    %2485 = vmatprep.mubr.f32.mxu0 0.0
    %2486 = vmatmul.mubr.f32.gmra.mrb[0].mxu0 %v1774
    %v2487 = vpop.f32.mrb[0].mxu0
    %v2488 = vadd.f32 0.0, %v2487
    %v2489 = vpop.f32.mrb[0].mxu0
    %2490 = vdwg.mxu0
    %2491 = vst.msk [vmem:[#allocation3 + $0x80] sm:$0xff] %vm247, %v2483
    %2492 = vst.msk [vmem:[#allocation3 + $0x88] sm:$0xff] %vm247, %v2488
    %v2493 = vld [vmem:[#allocation16] sm:$0xff]
    %v2494 = vld [vmem:[#allocation16 + $0x8] sm:$0xff]
    %v2495 = vld [vmem:[#allocation16 + $0x10] sm:$0xff]
    %v2496 = vld [vmem:[#allocation16 + $0x18] sm:$0xff]
    %v2497 = vld [vmem:[#allocation3] sm:$0xff]
    %v2498 = vld [vmem:[#allocation3 + $0x8] sm:$0xff]
    %v2499 = vld [vmem:[#allocation3 + $0x10] sm:$0xff]
    %v2500 = vld [vmem:[#allocation3 + $0x18] sm:$0xff]
    %v2501 = vld [vmem:[#allocation3 + $0x20] sm:$0xff]
    %v2502 = vld [vmem:[#allocation3 + $0x28] sm:$0xff]
    %v2503 = vld [vmem:[#allocation3 + $0x30] sm:$0xff]
    %v2504 = vld [vmem:[#allocation3 + $0x38] sm:$0xff]
    %v2505 = vld [vmem:[#allocation3 + $0x40] sm:$0xff]
    %v2506 = vld [vmem:[#allocation3 + $0x48] sm:$0xff]
    %v2507 = vld [vmem:[#allocation3 + $0x50] sm:$0xff]
    %v2508 = vld [vmem:[#allocation3 + $0x58] sm:$0xff]
    %v2509 = vld [vmem:[#allocation3 + $0x60] sm:$0xff]
    %v2510 = vld [vmem:[#allocation3 + $0x68] sm:$0xff]
    %v2511 = vld [vmem:[#allocation3 + $0x70] sm:$0xff]
    %v2512 = vld [vmem:[#allocation3 + $0x78] sm:$0xff]
    %v2513 = vld [vmem:[#allocation3 + $0x80] sm:$0xff]
    %v2514 = vld [vmem:[#allocation3 + $0x88] sm:$0xff]
    %2516 = vset.pattern.permute.xlu0 0
    %2517 = vperm.xlu0 %2516, %v1760
    %v2518 = vpop.permute.xlu0 %2517
    %2521 = vset.pattern.permute.xlu0 0
    %2522 = vperm.xlu0 %2521, %v1761
    %v2523 = vpop.permute.xlu0 %2522
    %v2526 = vsel %vm851, %v2494, 0
    %v2529 = vsel %vm851, %v2496, 0
    %2531 = vmatprep.subr.mxu0 0.0
    %2532 = vmatpush1.msra.mxu0 %v2497
    %2533 = vmatprep.subr.mxu0 0.0
    %2534 = vmatpush1.msra.mxu0 %v2498
    %2535 = vmatprep.subr.mxu0 0.0
    %2536 = vmatpush1.msra.mxu0 %v2499
    %2537 = vmatprep.subr.mxu0 0.0
    %2538 = vmatpush1.msra.mxu0 %v2500
    %2539 = vmatprep.subr.mxu0 0.0
    %2540 = vmatpush1.msra.mxu0 %v2501
    %2541 = vmatprep.subr.mxu0 0.0
    %2542 = vmatpush1.msra.mxu0 %v2502
    %2543 = vmatprep.subr.mxu0 0.0
    %2544 = vmatpush1.msra.mxu0 %v2503
    %2545 = vmatprep.subr.mxu0 0.0
    %2546 = vmatpush1.msra.mxu0 %v2504
    %2547 = vmatprep.subr.mxu0 0.0
    %2548 = vmatpush1.msra.mxu0 %v2505
    %2549 = vmatprep.subr.mxu0 0.0
    %2550 = vmatpush1.msra.mxu0 %v2506
    %2551 = vmatprep.subr.mxu0 0.0
    %2552 = vmatpush1.msra.mxu0 %v2507
    %2553 = vmatprep.subr.mxu0 0.0
    %2554 = vmatpush1.msra.mxu0 %v2508
    %2555 = vmatprep.subr.mxu0 0.0
    %2556 = vmatpush1.msra.mxu0 %v2509
    %2557 = vmatprep.subr.mxu0 0.0
    %2558 = vmatpush1.msra.mxu0 %v2510
    %2559 = vmatprep.subr.mxu0 0.0
    %2560 = vmatpush1.msra.mxu0 %v2511
    %2561 = vmatprep.subr.mxu0 0.0
    %2562 = vmatpush1.msra.mxu0 %v2512
    %2563 = vmatprep.subr.mxu0 0.0
    %2564 = vmatpush1.msra.mxu0 %v2513
    %2565 = vmatprep.subr.mxu0 0.0
    %2566 = vmatpush1.msra.mxu0 %v2514
    %2567 = vmatprep.subr.mxu0 0.0
    %2568 = vmatpush1.msra.mxu0 0.0
    %2569 = vmatprep.subr.mxu0 0.0
    %2570 = vmatpush1.msra.mxu0 0.0
    %2571 = vmatprep.subr.mxu0 0.0
    %2572 = vmatpush1.msra.mxu0 0.0
    %2573 = vmatprep.subr.mxu0 0.0
    %2574 = vmatpush1.msra.mxu0 0.0
    %2575 = vmatprep.subr.mxu0 0.0
    %2576 = vmatpush1.msra.mxu0 0.0
    %2577 = vmatprep.subr.mxu0 0.0
    %2578 = vmatpush1.msra.mxu0 0.0
    %2579 = vmatprep.subr.mxu0 0.0
    %2580 = vmatpush1.msra.mxu0 0.0
    %2581 = vmatprep.subr.mxu0 0.0
    %2582 = vmatpush1.msra.mxu0 0.0
    %2583 = vmatprep.subr.mxu0 0.0
    %2584 = vmatpush1.msra.mxu0 0.0
    %2585 = vmatprep.subr.mxu0 0.0
    %2586 = vmatpush1.msra.mxu0 0.0
    %2587 = vmatprep.subr.mxu0 0.0
    %2588 = vmatpush1.msra.mxu0 0.0
    %2589 = vmatprep.subr.mxu0 0.0
    %2590 = vmatpush1.msra.mxu0 0.0
    %2591 = vmatprep.subr.mxu0 0.0
    %2592 = vmatpush1.msra.mxu0 0.0
    %2593 = vmatprep.subr.mxu0 0.0
    %2594 = vmatpush1.msra.mxu0 0.0
    %2595 = vmatprep.mubr.f32.mxu0 %v2526
    %2596 = vmatmul.mubr.f32.gmra.mrb[0].mxu0 %v2493
    %v2597 = vpop.f32.mrb[0].mxu0
    %v2598 = vadd.f32 %v2518, %v2597
    %v2599 = vpop.f32.mrb[0].mxu0
    %2600 = vmatprep.mubr.f32.mxu0 %v2529
    %2601 = vmatmul.mubr.f32.gmra.mrb[0].mxu0 %v2495
    %v2602 = vpop.f32.mrb[0].mxu0
    %v2603 = vadd.f32 %v2523, %v2602
    %v2604 = vpop.f32.mrb[0].mxu0
    %2605 = vdwg.mxu0
    %2607 = vset.pattern.permute.xlu0 0
    %2608 = vperm.xlu0 %2607, %v1763
    %v2609 = vpop.permute.xlu0 %2608
    %2612 = vset.pattern.permute.xlu0 0
    %2613 = vperm.xlu0 %2612, %v1764
    %v2614 = vpop.permute.xlu0 %2613
    %v2616 = vmul.f32 %v2609, %v1766
    %v2617 = vmul.f32 %v2614, %v1767
    %v2618 = vadd.f32 %v2598, %v2616
    %v2619 = vadd.f32 %v2603, %v2617
    %vm2620 = vcmp.gt.f32.partialorder %v2618, 0.0
    %vm2621 = vcmp.gt.f32.partialorder %v2619, 0.0
    %v2622 = vmul.f32 %v2618, 0.2
    %v2623 = vmul.f32 %v2619, 0.2
    %v2624 = vsel %vm2620, %v2618, %v2622
    %v2625 = vsel %vm2621, %v2619, %v2623
    %v2626 = vsel %vm247, %v2624, 0.0
    %2627 = vadd.xlane.f32.xlu0 %v2626
    %v2628 = vpop.xlane.xlu0 %2627
    %v2629 = vsel %vm247, %v2625, 0.0
    %2630 = vadd.xlane.f32.xlu0 %v2629
    %v2631 = vpop.xlane.xlu0 %2630
    %v2632 = vrcp.pop 64.0
    %v2633 = vmul.f32 %v2628, %v2632
    %v2634 = vmul.f32 %v2631, %v2632
    %v2635 = vsub.f32 %v2624, %v2633
    %v2636 = vsub.f32 %v2625, %v2634
    %v2637 = vmul.f32 %v2635, %v2635
    %v2638 = vmul.f32 %v2636, %v2636
    %v2639 = vsel %vm247, %v2637, 0.0
    %2640 = vadd.xlane.f32.xlu0 %v2639
    %v2641 = vpop.xlane.xlu0 %2640
    %v2642 = vsel %vm247, %v2638, 0.0
    %2643 = vadd.xlane.f32.xlu0 %v2642
    %v2644 = vpop.xlane.xlu0 %2643
    %v2645 = vmul.f32 %v2641, %v2632
    %v2646 = vmul.f32 %v2644, %v2632
    %v2647 = vadd.f32 %v2645, 1e-05
    %v2648 = vadd.f32 %v2646, 1e-05
    %v2649 = vrsqrt.pop %v2647
    %v2650 = vrsqrt.pop %v2648
    %v2651 = vmul.f32 %v2635, %v2649
    %v2652 = vmul.f32 %v2636, %v2650
    %2654 = vset.pattern.permute.xlu0 0
    %2655 = vperm.xlu0 %2654, %v802
    %v2656 = vpop.permute.xlu0 %2655
    %2659 = vset.pattern.permute.xlu0 0
    %2660 = vperm.xlu0 %2659, %v807
    %v2661 = vpop.permute.xlu0 %2660
    %v2663 = vmul.f32 %v2656, %v2651
    %v2664 = vmul.f32 %v2661, %v2652
    %2666 = vset.pattern.permute.xlu0 0
    %2667 = vperm.xlu0 %2666, %v812
    %v2668 = vpop.permute.xlu0 %2667
    %2671 = vset.pattern.permute.xlu0 0
    %2672 = vperm.xlu0 %2671, %v817
    %v2673 = vpop.permute.xlu0 %2672
    %v2675 = vadd.f32 %v2663, %v2668
    %v2676 = vadd.f32 %v2664, %v2673
    %s2677 = scalar_lea.vmem %s14, 64
    %v2678 = vld [vmem:[%s2677] sm:$0xff]
    %v2679 = vld [vmem:[%s2677 + $0x8] sm:$0xff]
    %s2680 = scalar_lea.vmem %s14, 80
    %v2681 = vld [vmem:[%s2680] sm:$0xff]
    %v2682 = vld [vmem:[%s2680 + $0x8] sm:$0xff]
    %s2683 = scalar_lea.vmem %s1, 64
    %v2684 = vld [vmem:[%s2683] sm:$0xff]
    %v2685 = vld [vmem:[%s2683 + $0x8] sm:$0xff]
    %v2686 = vld [vmem:[%s2683 + $0x10] sm:$0xff]
    %v2687 = vld [vmem:[%s2683 + $0x18] sm:$0xff]
    %v2688 = vld [vmem:[%s10] sm:$0xff]
    %v2689 = vld [vmem:[%s10 + $0x8] sm:$0xff]
    %v2690 = vld [vmem:[%s10 + $0x10] sm:$0xff]
    %v2691 = vld [vmem:[%s10 + $0x18] sm:$0xff]
    %v2692 = vld [vmem:[%s10 + $0x20] sm:$0xff]
    %v2693 = vld [vmem:[%s10 + $0x28] sm:$0xff]
    %v2694 = vld [vmem:[%s10 + $0x30] sm:$0xff]
    %v2695 = vld [vmem:[%s10 + $0x38] sm:$0xff]
    %v2696 = vld [vmem:[%s10 + $0x40] sm:$0xff]
    %v2697 = vld [vmem:[%s10 + $0x48] sm:$0xff]
    %v2698 = vld [vmem:[%s10 + $0x50] sm:$0xff]
    %v2699 = vld [vmem:[%s10 + $0x58] sm:$0xff]
    %v2700 = vld [vmem:[%s10 + $0x60] sm:$0xff]
    %v2701 = vld [vmem:[%s10 + $0x68] sm:$0xff]
    %v2702 = vld [vmem:[%s10 + $0x70] sm:$0xff]
    %v2703 = vld [vmem:[%s10 + $0x78] sm:$0xff]
    %v2705 = vsel %vm247, %v2675, 0
    %v2708 = vsel %vm247, %v2676, 0
    %2710 = vmatprep.subr.mxu0 %v2689
    %2711 = vmatpush1.msra.mxu0 %v2688
    %2712 = vmatprep.subr.mxu0 %v2691
    %2713 = vmatpush1.msra.mxu0 %v2690
    %2714 = vmatprep.subr.mxu0 %v2693
    %2715 = vmatpush1.msra.mxu0 %v2692
    %2716 = vmatprep.subr.mxu0 %v2695
    %2717 = vmatpush1.msra.mxu0 %v2694
    %2718 = vmatprep.subr.mxu0 %v2697
    %2719 = vmatpush1.msra.mxu0 %v2696
    %2720 = vmatprep.subr.mxu0 %v2699
    %2721 = vmatpush1.msra.mxu0 %v2698
    %2722 = vmatprep.subr.mxu0 %v2701
    %2723 = vmatpush1.msra.mxu0 %v2700
    %2724 = vmatprep.subr.mxu0 %v2703
    %2725 = vmatpush1.msra.mxu0 %v2702
    %2726 = vmatprep.subr.mxu0 0.0
    %2727 = vmatpush1.msra.mxu0 0.0
    %2728 = vmatprep.subr.mxu0 0.0
    %2729 = vmatpush1.msra.mxu0 0.0
    %2730 = vmatprep.subr.mxu0 0.0
    %2731 = vmatpush1.msra.mxu0 0.0
    %2732 = vmatprep.subr.mxu0 0.0
    %2733 = vmatpush1.msra.mxu0 0.0
    %2734 = vmatprep.subr.mxu0 0.0
    %2735 = vmatpush1.msra.mxu0 0.0
    %2736 = vmatprep.subr.mxu0 0.0
    %2737 = vmatpush1.msra.mxu0 0.0
    %2738 = vmatprep.subr.mxu0 0.0
    %2739 = vmatpush1.msra.mxu0 0.0
    %2740 = vmatprep.subr.mxu0 0.0
    %2741 = vmatpush1.msra.mxu0 0.0
    %2742 = vmatprep.subr.mxu0 0.0
    %2743 = vmatpush1.msra.mxu0 0.0
    %2744 = vmatprep.subr.mxu0 0.0
    %2745 = vmatpush1.msra.mxu0 0.0
    %2746 = vmatprep.subr.mxu0 0.0
    %2747 = vmatpush1.msra.mxu0 0.0
    %2748 = vmatprep.subr.mxu0 0.0
    %2749 = vmatpush1.msra.mxu0 0.0
    %2750 = vmatprep.subr.mxu0 0.0
    %2751 = vmatpush1.msra.mxu0 0.0
    %2752 = vmatprep.subr.mxu0 0.0
    %2753 = vmatpush1.msra.mxu0 0.0
    %2754 = vmatprep.subr.mxu0 0.0
    %2755 = vmatpush1.msra.mxu0 0.0
    %2756 = vmatprep.subr.mxu0 0.0
    %2757 = vmatpush1.msra.mxu0 0.0
    %2758 = vmatprep.subr.mxu0 0.0
    %2759 = vmatpush1.msra.mxu0 0.0
    %2760 = vmatprep.subr.mxu0 0.0
    %2761 = vmatpush1.msra.mxu0 0.0
    %2762 = vmatprep.subr.mxu0 0.0
    %2763 = vmatpush1.msra.mxu0 0.0
    %2764 = vmatprep.subr.mxu0 0.0
    %2765 = vmatpush1.msra.mxu0 0.0
    %2766 = vmatprep.subr.mxu0 0.0
    %2767 = vmatpush1.msra.mxu0 0.0
    %2768 = vmatprep.subr.mxu0 0.0
    %2769 = vmatpush1.msra.mxu0 0.0
    %2770 = vmatprep.subr.mxu0 0.0
    %2771 = vmatpush1.msra.mxu0 0.0
    %2772 = vmatprep.subr.mxu0 0.0
    %2773 = vmatpush1.msra.mxu0 0.0
    %2774 = vmatprep.mubr.f32.mxu0 0.0
    %2775 = vmatmul.mubr.f32.gmra.mrb[0].mxu0 %v2705
    %v2776 = vpop.f32.mrb[0].mxu0
    %v2777 = vadd.f32 0.0, %v2776
    %v2778 = vpop.f32.mrb[0].mxu0
    %v2779 = vadd.f32 0.0, %v2778
    %2780 = vmatprep.mubr.f32.mxu0 0.0
    %2781 = vmatmul.mubr.f32.gmra.mrb[0].mxu0 %v2708
    %v2782 = vpop.f32.mrb[0].mxu0
    %v2783 = vadd.f32 0.0, %v2782
    %v2784 = vpop.f32.mrb[0].mxu0
    %v2785 = vadd.f32 0.0, %v2784
    %2786 = vdwg.mxu0
    %2787 = vst [vmem:[#allocation4] sm:$0xff] %v2777
    %2788 = vst [vmem:[#allocation4 + $0x8] sm:$0xff] %v2779
    %2789 = vst [vmem:[#allocation4 + $0x10] sm:$0xff] %v2783
    %2790 = vst [vmem:[#allocation4 + $0x18] sm:$0xff] %v2785
    %s2791 = scalar_lea.vmem %s10, 128
    %v2792 = vld [vmem:[%s2791] sm:$0xff]
    %v2793 = vld [vmem:[%s2791 + $0x8] sm:$0xff]
    %v2794 = vld [vmem:[%s2791 + $0x10] sm:$0xff]
    %v2795 = vld [vmem:[%s2791 + $0x18] sm:$0xff]
    %v2796 = vld [vmem:[%s2791 + $0x20] sm:$0xff]
    %v2797 = vld [vmem:[%s2791 + $0x28] sm:$0xff]
    %v2798 = vld [vmem:[%s2791 + $0x30] sm:$0xff]
    %v2799 = vld [vmem:[%s2791 + $0x38] sm:$0xff]
    %v2800 = vld [vmem:[%s2791 + $0x40] sm:$0xff]
    %v2801 = vld [vmem:[%s2791 + $0x48] sm:$0xff]
    %v2802 = vld [vmem:[%s2791 + $0x50] sm:$0xff]
    %v2803 = vld [vmem:[%s2791 + $0x58] sm:$0xff]
    %v2804 = vld [vmem:[%s2791 + $0x60] sm:$0xff]
    %v2805 = vld [vmem:[%s2791 + $0x68] sm:$0xff]
    %v2806 = vld [vmem:[%s2791 + $0x70] sm:$0xff]
    %v2807 = vld [vmem:[%s2791 + $0x78] sm:$0xff]
    %2808 = vmatprep.subr.mxu0 %v2793
    %2809 = vmatpush1.msra.mxu0 %v2792
    %2810 = vmatprep.subr.mxu0 %v2795
    %2811 = vmatpush1.msra.mxu0 %v2794
    %2812 = vmatprep.subr.mxu0 %v2797
    %2813 = vmatpush1.msra.mxu0 %v2796
    %2814 = vmatprep.subr.mxu0 %v2799
    %2815 = vmatpush1.msra.mxu0 %v2798
    %2816 = vmatprep.subr.mxu0 %v2801
    %2817 = vmatpush1.msra.mxu0 %v2800
    %2818 = vmatprep.subr.mxu0 %v2803
    %2819 = vmatpush1.msra.mxu0 %v2802
    %2820 = vmatprep.subr.mxu0 %v2805
    %2821 = vmatpush1.msra.mxu0 %v2804
    %2822 = vmatprep.subr.mxu0 %v2807
    %2823 = vmatpush1.msra.mxu0 %v2806
    %2824 = vmatprep.subr.mxu0 0.0
    %2825 = vmatpush1.msra.mxu0 0.0
    %2826 = vmatprep.subr.mxu0 0.0
    %2827 = vmatpush1.msra.mxu0 0.0
    %2828 = vmatprep.subr.mxu0 0.0
    %2829 = vmatpush1.msra.mxu0 0.0
    %2830 = vmatprep.subr.mxu0 0.0
    %2831 = vmatpush1.msra.mxu0 0.0
    %2832 = vmatprep.subr.mxu0 0.0
    %2833 = vmatpush1.msra.mxu0 0.0
    %2834 = vmatprep.subr.mxu0 0.0
    %2835 = vmatpush1.msra.mxu0 0.0
    %2836 = vmatprep.subr.mxu0 0.0
    %2837 = vmatpush1.msra.mxu0 0.0
    %2838 = vmatprep.subr.mxu0 0.0
    %2839 = vmatpush1.msra.mxu0 0.0
    %2840 = vmatprep.subr.mxu0 0.0
    %2841 = vmatpush1.msra.mxu0 0.0
    %2842 = vmatprep.subr.mxu0 0.0
    %2843 = vmatpush1.msra.mxu0 0.0
    %2844 = vmatprep.subr.mxu0 0.0
    %2845 = vmatpush1.msra.mxu0 0.0
    %2846 = vmatprep.subr.mxu0 0.0
    %2847 = vmatpush1.msra.mxu0 0.0
    %2848 = vmatprep.subr.mxu0 0.0
    %2849 = vmatpush1.msra.mxu0 0.0
    %2850 = vmatprep.subr.mxu0 0.0
    %2851 = vmatpush1.msra.mxu0 0.0
    %2852 = vmatprep.subr.mxu0 0.0
    %2853 = vmatpush1.msra.mxu0 0.0
    %2854 = vmatprep.subr.mxu0 0.0
    %2855 = vmatpush1.msra.mxu0 0.0
    %2856 = vmatprep.subr.mxu0 0.0
    %2857 = vmatpush1.msra.mxu0 0.0
    %2858 = vmatprep.subr.mxu0 0.0
    %2859 = vmatpush1.msra.mxu0 0.0
    %2860 = vmatprep.subr.mxu0 0.0
    %2861 = vmatpush1.msra.mxu0 0.0
    %2862 = vmatprep.subr.mxu0 0.0
    %2863 = vmatpush1.msra.mxu0 0.0
    %2864 = vmatprep.subr.mxu0 0.0
    %2865 = vmatpush1.msra.mxu0 0.0
    %2866 = vmatprep.subr.mxu0 0.0
    %2867 = vmatpush1.msra.mxu0 0.0
    %2868 = vmatprep.subr.mxu0 0.0
    %2869 = vmatpush1.msra.mxu0 0.0
    %2870 = vmatprep.subr.mxu0 0.0
    %2871 = vmatpush1.msra.mxu0 0.0
    %2872 = vmatprep.mubr.f32.mxu0 0.0
    %2873 = vmatmul.mubr.f32.gmra.mrb[0].mxu0 %v2705
    %v2874 = vpop.f32.mrb[0].mxu0
    %v2875 = vadd.f32 0.0, %v2874
    %v2876 = vpop.f32.mrb[0].mxu0
    %v2877 = vadd.f32 0.0, %v2876
    %2878 = vmatprep.mubr.f32.mxu0 0.0
    %2879 = vmatmul.mubr.f32.gmra.mrb[0].mxu0 %v2708
    %v2880 = vpop.f32.mrb[0].mxu0
    %v2881 = vadd.f32 0.0, %v2880
    %v2882 = vpop.f32.mrb[0].mxu0
    %v2883 = vadd.f32 0.0, %v2882
    %2884 = vdwg.mxu0
    %2885 = vst [vmem:[#allocation4 + $0x20] sm:$0xff] %v2875
    %2886 = vst [vmem:[#allocation4 + $0x28] sm:$0xff] %v2877
    %2887 = vst [vmem:[#allocation4 + $0x30] sm:$0xff] %v2881
    %2888 = vst [vmem:[#allocation4 + $0x38] sm:$0xff] %v2883
    %s2889 = scalar_lea.vmem %s10, 256
    %v2890 = vld [vmem:[%s2889] sm:$0xff]
    %v2891 = vld [vmem:[%s2889 + $0x8] sm:$0xff]
    %v2892 = vld [vmem:[%s2889 + $0x10] sm:$0xff]
    %v2893 = vld [vmem:[%s2889 + $0x18] sm:$0xff]
    %v2894 = vld [vmem:[%s2889 + $0x20] sm:$0xff]
    %v2895 = vld [vmem:[%s2889 + $0x28] sm:$0xff]
    %v2896 = vld [vmem:[%s2889 + $0x30] sm:$0xff]
    %v2897 = vld [vmem:[%s2889 + $0x38] sm:$0xff]
    %v2898 = vld [vmem:[%s2889 + $0x40] sm:$0xff]
    %v2899 = vld [vmem:[%s2889 + $0x48] sm:$0xff]
    %v2900 = vld [vmem:[%s2889 + $0x50] sm:$0xff]
    %v2901 = vld [vmem:[%s2889 + $0x58] sm:$0xff]
    %v2902 = vld [vmem:[%s2889 + $0x60] sm:$0xff]
    %v2903 = vld [vmem:[%s2889 + $0x68] sm:$0xff]
    %v2904 = vld [vmem:[%s2889 + $0x70] sm:$0xff]
    %v2905 = vld [vmem:[%s2889 + $0x78] sm:$0xff]
    %2906 = vmatprep.subr.mxu0 %v2891
    %2907 = vmatpush1.msra.mxu0 %v2890
    %2908 = vmatprep.subr.mxu0 %v2893
    %2909 = vmatpush1.msra.mxu0 %v2892
    %2910 = vmatprep.subr.mxu0 %v2895
    %2911 = vmatpush1.msra.mxu0 %v2894
    %2912 = vmatprep.subr.mxu0 %v2897
    %2913 = vmatpush1.msra.mxu0 %v2896
    %2914 = vmatprep.subr.mxu0 %v2899
    %2915 = vmatpush1.msra.mxu0 %v2898
    %2916 = vmatprep.subr.mxu0 %v2901
    %2917 = vmatpush1.msra.mxu0 %v2900
    %2918 = vmatprep.subr.mxu0 %v2903
    %2919 = vmatpush1.msra.mxu0 %v2902
    %2920 = vmatprep.subr.mxu0 %v2905
    %2921 = vmatpush1.msra.mxu0 %v2904
    %2922 = vmatprep.subr.mxu0 0.0
    %2923 = vmatpush1.msra.mxu0 0.0
    %2924 = vmatprep.subr.mxu0 0.0
    %2925 = vmatpush1.msra.mxu0 0.0
    %2926 = vmatprep.subr.mxu0 0.0
    %2927 = vmatpush1.msra.mxu0 0.0
    %2928 = vmatprep.subr.mxu0 0.0
    %2929 = vmatpush1.msra.mxu0 0.0
    %2930 = vmatprep.subr.mxu0 0.0
    %2931 = vmatpush1.msra.mxu0 0.0
    %2932 = vmatprep.subr.mxu0 0.0
    %2933 = vmatpush1.msra.mxu0 0.0
    %2934 = vmatprep.subr.mxu0 0.0
    %2935 = vmatpush1.msra.mxu0 0.0
    %2936 = vmatprep.subr.mxu0 0.0
    %2937 = vmatpush1.msra.mxu0 0.0
    %2938 = vmatprep.subr.mxu0 0.0
    %2939 = vmatpush1.msra.mxu0 0.0
    %2940 = vmatprep.subr.mxu0 0.0
    %2941 = vmatpush1.msra.mxu0 0.0
    %2942 = vmatprep.subr.mxu0 0.0
    %2943 = vmatpush1.msra.mxu0 0.0
    %2944 = vmatprep.subr.mxu0 0.0
    %2945 = vmatpush1.msra.mxu0 0.0
    %2946 = vmatprep.subr.mxu0 0.0
    %2947 = vmatpush1.msra.mxu0 0.0
    %2948 = vmatprep.subr.mxu0 0.0
    %2949 = vmatpush1.msra.mxu0 0.0
    %2950 = vmatprep.subr.mxu0 0.0
    %2951 = vmatpush1.msra.mxu0 0.0
    %2952 = vmatprep.subr.mxu0 0.0
    %2953 = vmatpush1.msra.mxu0 0.0
    %2954 = vmatprep.subr.mxu0 0.0
    %2955 = vmatpush1.msra.mxu0 0.0
    %2956 = vmatprep.subr.mxu0 0.0
    %2957 = vmatpush1.msra.mxu0 0.0
    %2958 = vmatprep.subr.mxu0 0.0
    %2959 = vmatpush1.msra.mxu0 0.0
    %2960 = vmatprep.subr.mxu0 0.0
    %2961 = vmatpush1.msra.mxu0 0.0
    %2962 = vmatprep.subr.mxu0 0.0
    %2963 = vmatpush1.msra.mxu0 0.0
    %2964 = vmatprep.subr.mxu0 0.0
    %2965 = vmatpush1.msra.mxu0 0.0
    %2966 = vmatprep.subr.mxu0 0.0
    %2967 = vmatpush1.msra.mxu0 0.0
    %2968 = vmatprep.subr.mxu0 0.0
    %2969 = vmatpush1.msra.mxu0 0.0
    %2970 = vmatprep.mubr.f32.mxu0 0.0
    %2971 = vmatmul.mubr.f32.gmra.mrb[0].mxu0 %v2705
    %v2972 = vpop.f32.mrb[0].mxu0
    %v2973 = vadd.f32 0.0, %v2972
    %v2974 = vpop.f32.mrb[0].mxu0
    %v2975 = vadd.f32 0.0, %v2974
    %2976 = vmatprep.mubr.f32.mxu0 0.0
    %2977 = vmatmul.mubr.f32.gmra.mrb[0].mxu0 %v2708
    %v2978 = vpop.f32.mrb[0].mxu0
    %v2979 = vadd.f32 0.0, %v2978
    %v2980 = vpop.f32.mrb[0].mxu0
    %v2981 = vadd.f32 0.0, %v2980
    %2982 = vdwg.mxu0
    %2983 = vst [vmem:[#allocation4 + $0x40] sm:$0xff] %v2973
    %2984 = vst [vmem:[#allocation4 + $0x48] sm:$0xff] %v2975
    %2985 = vst [vmem:[#allocation4 + $0x50] sm:$0xff] %v2979
    %2986 = vst [vmem:[#allocation4 + $0x58] sm:$0xff] %v2981
    %s2987 = scalar_lea.vmem %s10, 384
    %v2988 = vld [vmem:[%s2987] sm:$0xff]
    %v2989 = vld [vmem:[%s2987 + $0x8] sm:$0xff]
    %v2990 = vld [vmem:[%s2987 + $0x10] sm:$0xff]
    %v2991 = vld [vmem:[%s2987 + $0x18] sm:$0xff]
    %v2992 = vld [vmem:[%s2987 + $0x20] sm:$0xff]
    %v2993 = vld [vmem:[%s2987 + $0x28] sm:$0xff]
    %v2994 = vld [vmem:[%s2987 + $0x30] sm:$0xff]
    %v2995 = vld [vmem:[%s2987 + $0x38] sm:$0xff]
    %v2996 = vld [vmem:[%s2987 + $0x40] sm:$0xff]
    %v2997 = vld [vmem:[%s2987 + $0x48] sm:$0xff]
    %v2998 = vld [vmem:[%s2987 + $0x50] sm:$0xff]
    %v2999 = vld [vmem:[%s2987 + $0x58] sm:$0xff]
    %v3000 = vld [vmem:[%s2987 + $0x60] sm:$0xff]
    %v3001 = vld [vmem:[%s2987 + $0x68] sm:$0xff]
    %v3002 = vld [vmem:[%s2987 + $0x70] sm:$0xff]
    %v3003 = vld [vmem:[%s2987 + $0x78] sm:$0xff]
    %3004 = vmatprep.subr.mxu0 %v2989
    %3005 = vmatpush1.msra.mxu0 %v2988
    %3006 = vmatprep.subr.mxu0 %v2991
    %3007 = vmatpush1.msra.mxu0 %v2990
    %3008 = vmatprep.subr.mxu0 %v2993
    %3009 = vmatpush1.msra.mxu0 %v2992
    %3010 = vmatprep.subr.mxu0 %v2995
    %3011 = vmatpush1.msra.mxu0 %v2994
    %3012 = vmatprep.subr.mxu0 %v2997
    %3013 = vmatpush1.msra.mxu0 %v2996
    %3014 = vmatprep.subr.mxu0 %v2999
    %3015 = vmatpush1.msra.mxu0 %v2998
    %3016 = vmatprep.subr.mxu0 %v3001
    %3017 = vmatpush1.msra.mxu0 %v3000
    %3018 = vmatprep.subr.mxu0 %v3003
    %3019 = vmatpush1.msra.mxu0 %v3002
    %3020 = vmatprep.subr.mxu0 0.0
    %3021 = vmatpush1.msra.mxu0 0.0
    %3022 = vmatprep.subr.mxu0 0.0
    %3023 = vmatpush1.msra.mxu0 0.0
    %3024 = vmatprep.subr.mxu0 0.0
    %3025 = vmatpush1.msra.mxu0 0.0
    %3026 = vmatprep.subr.mxu0 0.0
    %3027 = vmatpush1.msra.mxu0 0.0
    %3028 = vmatprep.subr.mxu0 0.0
    %3029 = vmatpush1.msra.mxu0 0.0
    %3030 = vmatprep.subr.mxu0 0.0
    %3031 = vmatpush1.msra.mxu0 0.0
    %3032 = vmatprep.subr.mxu0 0.0
    %3033 = vmatpush1.msra.mxu0 0.0
    %3034 = vmatprep.subr.mxu0 0.0
    %3035 = vmatpush1.msra.mxu0 0.0
    %3036 = vmatprep.subr.mxu0 0.0
    %3037 = vmatpush1.msra.mxu0 0.0
    %3038 = vmatprep.subr.mxu0 0.0
    %3039 = vmatpush1.msra.mxu0 0.0
    %3040 = vmatprep.subr.mxu0 0.0
    %3041 = vmatpush1.msra.mxu0 0.0
    %3042 = vmatprep.subr.mxu0 0.0
    %3043 = vmatpush1.msra.mxu0 0.0
    %3044 = vmatprep.subr.mxu0 0.0
    %3045 = vmatpush1.msra.mxu0 0.0
    %3046 = vmatprep.subr.mxu0 0.0
    %3047 = vmatpush1.msra.mxu0 0.0
    %3048 = vmatprep.subr.mxu0 0.0
    %3049 = vmatpush1.msra.mxu0 0.0
    %3050 = vmatprep.subr.mxu0 0.0
    %3051 = vmatpush1.msra.mxu0 0.0
    %3052 = vmatprep.subr.mxu0 0.0
    %3053 = vmatpush1.msra.mxu0 0.0
    %3054 = vmatprep.subr.mxu0 0.0
    %3055 = vmatpush1.msra.mxu0 0.0
    %3056 = vmatprep.subr.mxu0 0.0
    %3057 = vmatpush1.msra.mxu0 0.0
    %3058 = vmatprep.subr.mxu0 0.0
    %3059 = vmatpush1.msra.mxu0 0.0
    %3060 = vmatprep.subr.mxu0 0.0
    %3061 = vmatpush1.msra.mxu0 0.0
    %3062 = vmatprep.subr.mxu0 0.0
    %3063 = vmatpush1.msra.mxu0 0.0
    %3064 = vmatprep.subr.mxu0 0.0
    %3065 = vmatpush1.msra.mxu0 0.0
    %3066 = vmatprep.subr.mxu0 0.0
    %3067 = vmatpush1.msra.mxu0 0.0
    %3068 = vmatprep.mubr.f32.mxu0 0.0
    %3069 = vmatmul.mubr.f32.gmra.mrb[0].mxu0 %v2705
    %v3070 = vpop.f32.mrb[0].mxu0
    %v3071 = vadd.f32 0.0, %v3070
    %v3072 = vpop.f32.mrb[0].mxu0
    %v3073 = vadd.f32 0.0, %v3072
    %3074 = vmatprep.mubr.f32.mxu0 0.0
    %3075 = vmatmul.mubr.f32.gmra.mrb[0].mxu0 %v2708
    %v3076 = vpop.f32.mrb[0].mxu0
    %v3077 = vadd.f32 0.0, %v3076
    %v3078 = vpop.f32.mrb[0].mxu0
    %v3079 = vadd.f32 0.0, %v3078
    %3080 = vdwg.mxu0
    %3081 = vst [vmem:[#allocation4 + $0x60] sm:$0xff] %v3071
    %3082 = vst [vmem:[#allocation4 + $0x68] sm:$0xff] %v3073
    %3083 = vst [vmem:[#allocation4 + $0x70] sm:$0xff] %v3077
    %3084 = vst [vmem:[#allocation4 + $0x78] sm:$0xff] %v3079
    %s3085 = scalar_lea.vmem %s10, 512
    %v3086 = vld [vmem:[%s3085] sm:$0xff]
    %v3087 = vld [vmem:[%s3085 + $0x8] sm:$0xff]
    %v3088 = vld [vmem:[%s3085 + $0x10] sm:$0xff]
    %v3089 = vld [vmem:[%s3085 + $0x18] sm:$0xff]
    %v3090 = vld [vmem:[%s3085 + $0x20] sm:$0xff]
    %v3091 = vld [vmem:[%s3085 + $0x28] sm:$0xff]
    %v3092 = vld [vmem:[%s3085 + $0x30] sm:$0xff]
    %v3093 = vld [vmem:[%s3085 + $0x38] sm:$0xff]
    %v3094 = vld [vmem:[%s3085 + $0x40] sm:$0xff]
    %v3095 = vld [vmem:[%s3085 + $0x48] sm:$0xff]
    %v3096 = vld [vmem:[%s3085 + $0x50] sm:$0xff]
    %v3097 = vld [vmem:[%s3085 + $0x58] sm:$0xff]
    %v3098 = vld [vmem:[%s3085 + $0x60] sm:$0xff]
    %v3099 = vld [vmem:[%s3085 + $0x68] sm:$0xff]
    %v3100 = vld [vmem:[%s3085 + $0x70] sm:$0xff]
    %v3101 = vld [vmem:[%s3085 + $0x78] sm:$0xff]
    %3102 = vmatprep.subr.mxu0 %v3087
    %3103 = vmatpush1.msra.mxu0 %v3086
    %3104 = vmatprep.subr.mxu0 %v3089
    %3105 = vmatpush1.msra.mxu0 %v3088
    %3106 = vmatprep.subr.mxu0 %v3091
    %3107 = vmatpush1.msra.mxu0 %v3090
    %3108 = vmatprep.subr.mxu0 %v3093
    %3109 = vmatpush1.msra.mxu0 %v3092
    %3110 = vmatprep.subr.mxu0 %v3095
    %3111 = vmatpush1.msra.mxu0 %v3094
    %3112 = vmatprep.subr.mxu0 %v3097
    %3113 = vmatpush1.msra.mxu0 %v3096
    %3114 = vmatprep.subr.mxu0 %v3099
    %3115 = vmatpush1.msra.mxu0 %v3098
    %3116 = vmatprep.subr.mxu0 %v3101
    %3117 = vmatpush1.msra.mxu0 %v3100
    %3118 = vmatprep.subr.mxu0 0.0
    %3119 = vmatpush1.msra.mxu0 0.0
    %3120 = vmatprep.subr.mxu0 0.0
    %3121 = vmatpush1.msra.mxu0 0.0
    %3122 = vmatprep.subr.mxu0 0.0
    %3123 = vmatpush1.msra.mxu0 0.0
    %3124 = vmatprep.subr.mxu0 0.0
    %3125 = vmatpush1.msra.mxu0 0.0
    %3126 = vmatprep.subr.mxu0 0.0
    %3127 = vmatpush1.msra.mxu0 0.0
    %3128 = vmatprep.subr.mxu0 0.0
    %3129 = vmatpush1.msra.mxu0 0.0
    %3130 = vmatprep.subr.mxu0 0.0
    %3131 = vmatpush1.msra.mxu0 0.0
    %3132 = vmatprep.subr.mxu0 0.0
    %3133 = vmatpush1.msra.mxu0 0.0
    %3134 = vmatprep.subr.mxu0 0.0
    %3135 = vmatpush1.msra.mxu0 0.0
    %3136 = vmatprep.subr.mxu0 0.0
    %3137 = vmatpush1.msra.mxu0 0.0
    %3138 = vmatprep.subr.mxu0 0.0
    %3139 = vmatpush1.msra.mxu0 0.0
    %3140 = vmatprep.subr.mxu0 0.0
    %3141 = vmatpush1.msra.mxu0 0.0
    %3142 = vmatprep.subr.mxu0 0.0
    %3143 = vmatpush1.msra.mxu0 0.0
    %3144 = vmatprep.subr.mxu0 0.0
    %3145 = vmatpush1.msra.mxu0 0.0
    %3146 = vmatprep.subr.mxu0 0.0
    %3147 = vmatpush1.msra.mxu0 0.0
    %3148 = vmatprep.subr.mxu0 0.0
    %3149 = vmatpush1.msra.mxu0 0.0
    %3150 = vmatprep.subr.mxu0 0.0
    %3151 = vmatpush1.msra.mxu0 0.0
    %3152 = vmatprep.subr.mxu0 0.0
    %3153 = vmatpush1.msra.mxu0 0.0
    %3154 = vmatprep.subr.mxu0 0.0
    %3155 = vmatpush1.msra.mxu0 0.0
    %3156 = vmatprep.subr.mxu0 0.0
    %3157 = vmatpush1.msra.mxu0 0.0
    %3158 = vmatprep.subr.mxu0 0.0
    %3159 = vmatpush1.msra.mxu0 0.0
    %3160 = vmatprep.subr.mxu0 0.0
    %3161 = vmatpush1.msra.mxu0 0.0
    %3162 = vmatprep.subr.mxu0 0.0
    %3163 = vmatpush1.msra.mxu0 0.0
    %3164 = vmatprep.subr.mxu0 0.0
    %3165 = vmatpush1.msra.mxu0 0.0
    %3166 = vmatprep.mubr.f32.mxu0 0.0
    %3167 = vmatmul.mubr.f32.gmra.mrb[0].mxu0 %v2705
    %v3168 = vpop.f32.mrb[0].mxu0
    %v3169 = vadd.f32 0.0, %v3168
    %v3170 = vpop.f32.mrb[0].mxu0
    %v3171 = vadd.f32 0.0, %v3170
    %3172 = vmatprep.mubr.f32.mxu0 0.0
    %3173 = vmatmul.mubr.f32.gmra.mrb[0].mxu0 %v2708
    %v3174 = vpop.f32.mrb[0].mxu0
    %v3175 = vadd.f32 0.0, %v3174
    %v3176 = vpop.f32.mrb[0].mxu0
    %v3177 = vadd.f32 0.0, %v3176
    %3178 = vdwg.mxu0
    %3179 = vst [vmem:[#allocation4 + $0x80] sm:$0xff] %v3169
    %3180 = vst [vmem:[#allocation4 + $0x88] sm:$0xff] %v3171
    %3181 = vst [vmem:[#allocation4 + $0x90] sm:$0xff] %v3175
    %3182 = vst [vmem:[#allocation4 + $0x98] sm:$0xff] %v3177
    %s3183 = scalar_lea.vmem %s10, 640
    %v3184 = vld [vmem:[%s3183] sm:$0xff]
    %v3185 = vld [vmem:[%s3183 + $0x8] sm:$0xff]
    %v3186 = vld [vmem:[%s3183 + $0x10] sm:$0xff]
    %v3187 = vld [vmem:[%s3183 + $0x18] sm:$0xff]
    %v3188 = vld [vmem:[%s3183 + $0x20] sm:$0xff]
    %v3189 = vld [vmem:[%s3183 + $0x28] sm:$0xff]
    %v3190 = vld [vmem:[%s3183 + $0x30] sm:$0xff]
    %v3191 = vld [vmem:[%s3183 + $0x38] sm:$0xff]
    %v3192 = vld [vmem:[%s3183 + $0x40] sm:$0xff]
    %v3193 = vld [vmem:[%s3183 + $0x48] sm:$0xff]
    %v3194 = vld [vmem:[%s3183 + $0x50] sm:$0xff]
    %v3195 = vld [vmem:[%s3183 + $0x58] sm:$0xff]
    %v3196 = vld [vmem:[%s3183 + $0x60] sm:$0xff]
    %v3197 = vld [vmem:[%s3183 + $0x68] sm:$0xff]
    %v3198 = vld [vmem:[%s3183 + $0x70] sm:$0xff]
    %v3199 = vld [vmem:[%s3183 + $0x78] sm:$0xff]
    %3200 = vmatprep.subr.mxu0 %v3185
    %3201 = vmatpush1.msra.mxu0 %v3184
    %3202 = vmatprep.subr.mxu0 %v3187
    %3203 = vmatpush1.msra.mxu0 %v3186
    %3204 = vmatprep.subr.mxu0 %v3189
    %3205 = vmatpush1.msra.mxu0 %v3188
    %3206 = vmatprep.subr.mxu0 %v3191
    %3207 = vmatpush1.msra.mxu0 %v3190
    %3208 = vmatprep.subr.mxu0 %v3193
    %3209 = vmatpush1.msra.mxu0 %v3192
    %3210 = vmatprep.subr.mxu0 %v3195
    %3211 = vmatpush1.msra.mxu0 %v3194
    %3212 = vmatprep.subr.mxu0 %v3197
    %3213 = vmatpush1.msra.mxu0 %v3196
    %3214 = vmatprep.subr.mxu0 %v3199
    %3215 = vmatpush1.msra.mxu0 %v3198
    %3216 = vmatprep.subr.mxu0 0.0
    %3217 = vmatpush1.msra.mxu0 0.0
    %3218 = vmatprep.subr.mxu0 0.0
    %3219 = vmatpush1.msra.mxu0 0.0
    %3220 = vmatprep.subr.mxu0 0.0
    %3221 = vmatpush1.msra.mxu0 0.0
    %3222 = vmatprep.subr.mxu0 0.0
    %3223 = vmatpush1.msra.mxu0 0.0
    %3224 = vmatprep.subr.mxu0 0.0
    %3225 = vmatpush1.msra.mxu0 0.0
    %3226 = vmatprep.subr.mxu0 0.0
    %3227 = vmatpush1.msra.mxu0 0.0
    %3228 = vmatprep.subr.mxu0 0.0
    %3229 = vmatpush1.msra.mxu0 0.0
    %3230 = vmatprep.subr.mxu0 0.0
    %3231 = vmatpush1.msra.mxu0 0.0
    %3232 = vmatprep.subr.mxu0 0.0
    %3233 = vmatpush1.msra.mxu0 0.0
    %3234 = vmatprep.subr.mxu0 0.0
    %3235 = vmatpush1.msra.mxu0 0.0
    %3236 = vmatprep.subr.mxu0 0.0
    %3237 = vmatpush1.msra.mxu0 0.0
    %3238 = vmatprep.subr.mxu0 0.0
    %3239 = vmatpush1.msra.mxu0 0.0
    %3240 = vmatprep.subr.mxu0 0.0
    %3241 = vmatpush1.msra.mxu0 0.0
    %3242 = vmatprep.subr.mxu0 0.0
    %3243 = vmatpush1.msra.mxu0 0.0
    %3244 = vmatprep.subr.mxu0 0.0
    %3245 = vmatpush1.msra.mxu0 0.0
    %3246 = vmatprep.subr.mxu0 0.0
    %3247 = vmatpush1.msra.mxu0 0.0
    %3248 = vmatprep.subr.mxu0 0.0
    %3249 = vmatpush1.msra.mxu0 0.0
    %3250 = vmatprep.subr.mxu0 0.0
    %3251 = vmatpush1.msra.mxu0 0.0
    %3252 = vmatprep.subr.mxu0 0.0
    %3253 = vmatpush1.msra.mxu0 0.0
    %3254 = vmatprep.subr.mxu0 0.0
    %3255 = vmatpush1.msra.mxu0 0.0
    %3256 = vmatprep.subr.mxu0 0.0
    %3257 = vmatpush1.msra.mxu0 0.0
    %3258 = vmatprep.subr.mxu0 0.0
    %3259 = vmatpush1.msra.mxu0 0.0
    %3260 = vmatprep.subr.mxu0 0.0
    %3261 = vmatpush1.msra.mxu0 0.0
    %3262 = vmatprep.subr.mxu0 0.0
    %3263 = vmatpush1.msra.mxu0 0.0
    %3264 = vmatprep.mubr.f32.mxu0 0.0
    %3265 = vmatmul.mubr.f32.gmra.mrb[0].mxu0 %v2705
    %v3266 = vpop.f32.mrb[0].mxu0
    %v3267 = vadd.f32 0.0, %v3266
    %v3268 = vpop.f32.mrb[0].mxu0
    %v3269 = vadd.f32 0.0, %v3268
    %3270 = vmatprep.mubr.f32.mxu0 0.0
    %3271 = vmatmul.mubr.f32.gmra.mrb[0].mxu0 %v2708
    %v3272 = vpop.f32.mrb[0].mxu0
    %v3273 = vadd.f32 0.0, %v3272
    %v3274 = vpop.f32.mrb[0].mxu0
    %v3275 = vadd.f32 0.0, %v3274
    %3276 = vdwg.mxu0
    %3277 = vst [vmem:[#allocation4 + $0xa0] sm:$0xff] %v3267
    %3278 = vst [vmem:[#allocation4 + $0xa8] sm:$0xff] %v3269
    %3279 = vst [vmem:[#allocation4 + $0xb0] sm:$0xff] %v3273
    %3280 = vst [vmem:[#allocation4 + $0xb8] sm:$0xff] %v3275
    %s3281 = scalar_lea.vmem %s10, 768
    %v3282 = vld [vmem:[%s3281] sm:$0xff]
    %v3283 = vld [vmem:[%s3281 + $0x8] sm:$0xff]
    %v3284 = vld [vmem:[%s3281 + $0x10] sm:$0xff]
    %v3285 = vld [vmem:[%s3281 + $0x18] sm:$0xff]
    %v3286 = vld [vmem:[%s3281 + $0x20] sm:$0xff]
    %v3287 = vld [vmem:[%s3281 + $0x28] sm:$0xff]
    %v3288 = vld [vmem:[%s3281 + $0x30] sm:$0xff]
    %v3289 = vld [vmem:[%s3281 + $0x38] sm:$0xff]
    %v3290 = vld [vmem:[%s3281 + $0x40] sm:$0xff]
    %v3291 = vld [vmem:[%s3281 + $0x48] sm:$0xff]
    %v3292 = vld [vmem:[%s3281 + $0x50] sm:$0xff]
    %v3293 = vld [vmem:[%s3281 + $0x58] sm:$0xff]
    %v3294 = vld [vmem:[%s3281 + $0x60] sm:$0xff]
    %v3295 = vld [vmem:[%s3281 + $0x68] sm:$0xff]
    %v3296 = vld [vmem:[%s3281 + $0x70] sm:$0xff]
    %v3297 = vld [vmem:[%s3281 + $0x78] sm:$0xff]
    %3298 = vmatprep.subr.mxu0 %v3283
    %3299 = vmatpush1.msra.mxu0 %v3282
    %3300 = vmatprep.subr.mxu0 %v3285
    %3301 = vmatpush1.msra.mxu0 %v3284
    %3302 = vmatprep.subr.mxu0 %v3287
    %3303 = vmatpush1.msra.mxu0 %v3286
    %3304 = vmatprep.subr.mxu0 %v3289
    %3305 = vmatpush1.msra.mxu0 %v3288
    %3306 = vmatprep.subr.mxu0 %v3291
    %3307 = vmatpush1.msra.mxu0 %v3290
    %3308 = vmatprep.subr.mxu0 %v3293
    %3309 = vmatpush1.msra.mxu0 %v3292
    %3310 = vmatprep.subr.mxu0 %v3295
    %3311 = vmatpush1.msra.mxu0 %v3294
    %3312 = vmatprep.subr.mxu0 %v3297
    %3313 = vmatpush1.msra.mxu0 %v3296
    %3314 = vmatprep.subr.mxu0 0.0
    %3315 = vmatpush1.msra.mxu0 0.0
    %3316 = vmatprep.subr.mxu0 0.0
    %3317 = vmatpush1.msra.mxu0 0.0
    %3318 = vmatprep.subr.mxu0 0.0
    %3319 = vmatpush1.msra.mxu0 0.0
    %3320 = vmatprep.subr.mxu0 0.0
    %3321 = vmatpush1.msra.mxu0 0.0
    %3322 = vmatprep.subr.mxu0 0.0
    %3323 = vmatpush1.msra.mxu0 0.0
    %3324 = vmatprep.subr.mxu0 0.0
    %3325 = vmatpush1.msra.mxu0 0.0
    %3326 = vmatprep.subr.mxu0 0.0
    %3327 = vmatpush1.msra.mxu0 0.0
    %3328 = vmatprep.subr.mxu0 0.0
    %3329 = vmatpush1.msra.mxu0 0.0
    %3330 = vmatprep.subr.mxu0 0.0
    %3331 = vmatpush1.msra.mxu0 0.0
    %3332 = vmatprep.subr.mxu0 0.0
    %3333 = vmatpush1.msra.mxu0 0.0
    %3334 = vmatprep.subr.mxu0 0.0
    %3335 = vmatpush1.msra.mxu0 0.0
    %3336 = vmatprep.subr.mxu0 0.0
    %3337 = vmatpush1.msra.mxu0 0.0
    %3338 = vmatprep.subr.mxu0 0.0
    %3339 = vmatpush1.msra.mxu0 0.0
    %3340 = vmatprep.subr.mxu0 0.0
    %3341 = vmatpush1.msra.mxu0 0.0
    %3342 = vmatprep.subr.mxu0 0.0
    %3343 = vmatpush1.msra.mxu0 0.0
    %3344 = vmatprep.subr.mxu0 0.0
    %3345 = vmatpush1.msra.mxu0 0.0
    %3346 = vmatprep.subr.mxu0 0.0
    %3347 = vmatpush1.msra.mxu0 0.0
    %3348 = vmatprep.subr.mxu0 0.0
    %3349 = vmatpush1.msra.mxu0 0.0
    %3350 = vmatprep.subr.mxu0 0.0
    %3351 = vmatpush1.msra.mxu0 0.0
    %3352 = vmatprep.subr.mxu0 0.0
    %3353 = vmatpush1.msra.mxu0 0.0
    %3354 = vmatprep.subr.mxu0 0.0
    %3355 = vmatpush1.msra.mxu0 0.0
    %3356 = vmatprep.subr.mxu0 0.0
    %3357 = vmatpush1.msra.mxu0 0.0
    %3358 = vmatprep.subr.mxu0 0.0
    %3359 = vmatpush1.msra.mxu0 0.0
    %3360 = vmatprep.subr.mxu0 0.0
    %3361 = vmatpush1.msra.mxu0 0.0
    %3362 = vmatprep.mubr.f32.mxu0 0.0
    %3363 = vmatmul.mubr.f32.gmra.mrb[0].mxu0 %v2705
    %v3364 = vpop.f32.mrb[0].mxu0
    %v3365 = vadd.f32 0.0, %v3364
    %v3366 = vpop.f32.mrb[0].mxu0
    %v3367 = vadd.f32 0.0, %v3366
    %3368 = vmatprep.mubr.f32.mxu0 0.0
    %3369 = vmatmul.mubr.f32.gmra.mrb[0].mxu0 %v2708
    %v3370 = vpop.f32.mrb[0].mxu0
    %v3371 = vadd.f32 0.0, %v3370
    %v3372 = vpop.f32.mrb[0].mxu0
    %v3373 = vadd.f32 0.0, %v3372
    %3374 = vdwg.mxu0
    %3375 = vst [vmem:[#allocation4 + $0xc0] sm:$0xff] %v3365
    %3376 = vst [vmem:[#allocation4 + $0xc8] sm:$0xff] %v3367
    %3377 = vst [vmem:[#allocation4 + $0xd0] sm:$0xff] %v3371
    %3378 = vst [vmem:[#allocation4 + $0xd8] sm:$0xff] %v3373
    %s3379 = scalar_lea.vmem %s10, 896
    %v3380 = vld [vmem:[%s3379] sm:$0xff]
    %v3381 = vld [vmem:[%s3379 + $0x8] sm:$0xff]
    %v3382 = vld [vmem:[%s3379 + $0x10] sm:$0xff]
    %v3383 = vld [vmem:[%s3379 + $0x18] sm:$0xff]
    %v3384 = vld [vmem:[%s3379 + $0x20] sm:$0xff]
    %v3385 = vld [vmem:[%s3379 + $0x28] sm:$0xff]
    %v3386 = vld [vmem:[%s3379 + $0x30] sm:$0xff]
    %v3387 = vld [vmem:[%s3379 + $0x38] sm:$0xff]
    %v3388 = vld [vmem:[%s3379 + $0x40] sm:$0xff]
    %v3389 = vld [vmem:[%s3379 + $0x48] sm:$0xff]
    %v3390 = vld [vmem:[%s3379 + $0x50] sm:$0xff]
    %v3391 = vld [vmem:[%s3379 + $0x58] sm:$0xff]
    %v3392 = vld [vmem:[%s3379 + $0x60] sm:$0xff]
    %v3393 = vld [vmem:[%s3379 + $0x68] sm:$0xff]
    %v3394 = vld [vmem:[%s3379 + $0x70] sm:$0xff]
    %v3395 = vld [vmem:[%s3379 + $0x78] sm:$0xff]
    %3396 = vmatprep.subr.mxu0 %v3381
    %3397 = vmatpush1.msra.mxu0 %v3380
    %3398 = vmatprep.subr.mxu0 %v3383
    %3399 = vmatpush1.msra.mxu0 %v3382
    %3400 = vmatprep.subr.mxu0 %v3385
    %3401 = vmatpush1.msra.mxu0 %v3384
    %3402 = vmatprep.subr.mxu0 %v3387
    %3403 = vmatpush1.msra.mxu0 %v3386
    %3404 = vmatprep.subr.mxu0 %v3389
    %3405 = vmatpush1.msra.mxu0 %v3388
    %3406 = vmatprep.subr.mxu0 %v3391
    %3407 = vmatpush1.msra.mxu0 %v3390
    %3408 = vmatprep.subr.mxu0 %v3393
    %3409 = vmatpush1.msra.mxu0 %v3392
    %3410 = vmatprep.subr.mxu0 %v3395
    %3411 = vmatpush1.msra.mxu0 %v3394
    %3412 = vmatprep.subr.mxu0 0.0
    %3413 = vmatpush1.msra.mxu0 0.0
    %3414 = vmatprep.subr.mxu0 0.0
    %3415 = vmatpush1.msra.mxu0 0.0
    %3416 = vmatprep.subr.mxu0 0.0
    %3417 = vmatpush1.msra.mxu0 0.0
    %3418 = vmatprep.subr.mxu0 0.0
    %3419 = vmatpush1.msra.mxu0 0.0
    %3420 = vmatprep.subr.mxu0 0.0
    %3421 = vmatpush1.msra.mxu0 0.0
    %3422 = vmatprep.subr.mxu0 0.0
    %3423 = vmatpush1.msra.mxu0 0.0
    %3424 = vmatprep.subr.mxu0 0.0
    %3425 = vmatpush1.msra.mxu0 0.0
    %3426 = vmatprep.subr.mxu0 0.0
    %3427 = vmatpush1.msra.mxu0 0.0
    %3428 = vmatprep.subr.mxu0 0.0
    %3429 = vmatpush1.msra.mxu0 0.0
    %3430 = vmatprep.subr.mxu0 0.0
    %3431 = vmatpush1.msra.mxu0 0.0
    %3432 = vmatprep.subr.mxu0 0.0
    %3433 = vmatpush1.msra.mxu0 0.0
    %3434 = vmatprep.subr.mxu0 0.0
    %3435 = vmatpush1.msra.mxu0 0.0
    %3436 = vmatprep.subr.mxu0 0.0
    %3437 = vmatpush1.msra.mxu0 0.0
    %3438 = vmatprep.subr.mxu0 0.0
    %3439 = vmatpush1.msra.mxu0 0.0
    %3440 = vmatprep.subr.mxu0 0.0
    %3441 = vmatpush1.msra.mxu0 0.0
    %3442 = vmatprep.subr.mxu0 0.0
    %3443 = vmatpush1.msra.mxu0 0.0
    %3444 = vmatprep.subr.mxu0 0.0
    %3445 = vmatpush1.msra.mxu0 0.0
    %3446 = vmatprep.subr.mxu0 0.0
    %3447 = vmatpush1.msra.mxu0 0.0
    %3448 = vmatprep.subr.mxu0 0.0
    %3449 = vmatpush1.msra.mxu0 0.0
    %3450 = vmatprep.subr.mxu0 0.0
    %3451 = vmatpush1.msra.mxu0 0.0
    %3452 = vmatprep.subr.mxu0 0.0
    %3453 = vmatpush1.msra.mxu0 0.0
    %3454 = vmatprep.subr.mxu0 0.0
    %3455 = vmatpush1.msra.mxu0 0.0
    %3456 = vmatprep.subr.mxu0 0.0
    %3457 = vmatpush1.msra.mxu0 0.0
    %3458 = vmatprep.subr.mxu0 0.0
    %3459 = vmatpush1.msra.mxu0 0.0
    %3460 = vmatprep.mubr.f32.mxu0 0.0
    %3461 = vmatmul.mubr.f32.gmra.mrb[0].mxu0 %v2705
    %v3462 = vpop.f32.mrb[0].mxu0
    %v3463 = vadd.f32 0.0, %v3462
    %v3464 = vpop.f32.mrb[0].mxu0
    %v3465 = vadd.f32 0.0, %v3464
    %3466 = vmatprep.mubr.f32.mxu0 0.0
    %3467 = vmatmul.mubr.f32.gmra.mrb[0].mxu0 %v2708
    %v3468 = vpop.f32.mrb[0].mxu0
    %v3469 = vadd.f32 0.0, %v3468
    %v3470 = vpop.f32.mrb[0].mxu0
    %v3471 = vadd.f32 0.0, %v3470
    %3472 = vdwg.mxu0
    %3473 = vst [vmem:[#allocation4 + $0xe0] sm:$0xff] %v3463
    %3474 = vst [vmem:[#allocation4 + $0xe8] sm:$0xff] %v3465
    %3475 = vst [vmem:[#allocation4 + $0xf0] sm:$0xff] %v3469
    %3476 = vst [vmem:[#allocation4 + $0xf8] sm:$0xff] %v3471
    %s3477 = scalar_lea.vmem %s10, 1024
    %v3478 = vld [vmem:[%s3477] sm:$0xff]
    %v3479 = vld [vmem:[%s3477 + $0x8] sm:$0xff]
    %v3480 = vld [vmem:[%s3477 + $0x10] sm:$0xff]
    %v3481 = vld [vmem:[%s3477 + $0x18] sm:$0xff]
    %v3482 = vld [vmem:[%s3477 + $0x20] sm:$0xff]
    %v3483 = vld [vmem:[%s3477 + $0x28] sm:$0xff]
    %v3484 = vld [vmem:[%s3477 + $0x30] sm:$0xff]
    %v3485 = vld [vmem:[%s3477 + $0x38] sm:$0xff]
    %v3486 = vld [vmem:[%s3477 + $0x40] sm:$0xff]
    %v3487 = vld [vmem:[%s3477 + $0x48] sm:$0xff]
    %v3488 = vld [vmem:[%s3477 + $0x50] sm:$0xff]
    %v3489 = vld [vmem:[%s3477 + $0x58] sm:$0xff]
    %v3490 = vld [vmem:[%s3477 + $0x60] sm:$0xff]
    %v3491 = vld [vmem:[%s3477 + $0x68] sm:$0xff]
    %v3492 = vld [vmem:[%s3477 + $0x70] sm:$0xff]
    %v3493 = vld [vmem:[%s3477 + $0x78] sm:$0xff]
    %3494 = vmatprep.subr.mxu0 %v3479
    %3495 = vmatpush1.msra.mxu0 %v3478
    %3496 = vmatprep.subr.mxu0 %v3481
    %3497 = vmatpush1.msra.mxu0 %v3480
    %3498 = vmatprep.subr.mxu0 %v3483
    %3499 = vmatpush1.msra.mxu0 %v3482
    %3500 = vmatprep.subr.mxu0 %v3485
    %3501 = vmatpush1.msra.mxu0 %v3484
    %3502 = vmatprep.subr.mxu0 %v3487
    %3503 = vmatpush1.msra.mxu0 %v3486
    %3504 = vmatprep.subr.mxu0 %v3489
    %3505 = vmatpush1.msra.mxu0 %v3488
    %3506 = vmatprep.subr.mxu0 %v3491
    %3507 = vmatpush1.msra.mxu0 %v3490
    %3508 = vmatprep.subr.mxu0 %v3493
    %3509 = vmatpush1.msra.mxu0 %v3492
    %3510 = vmatprep.subr.mxu0 0.0
    %3511 = vmatpush1.msra.mxu0 0.0
    %3512 = vmatprep.subr.mxu0 0.0
    %3513 = vmatpush1.msra.mxu0 0.0
    %3514 = vmatprep.subr.mxu0 0.0
    %3515 = vmatpush1.msra.mxu0 0.0
    %3516 = vmatprep.subr.mxu0 0.0
    %3517 = vmatpush1.msra.mxu0 0.0
    %3518 = vmatprep.subr.mxu0 0.0
    %3519 = vmatpush1.msra.mxu0 0.0
    %3520 = vmatprep.subr.mxu0 0.0
    %3521 = vmatpush1.msra.mxu0 0.0
    %3522 = vmatprep.subr.mxu0 0.0
    %3523 = vmatpush1.msra.mxu0 0.0
    %3524 = vmatprep.subr.mxu0 0.0
    %3525 = vmatpush1.msra.mxu0 0.0
    %3526 = vmatprep.subr.mxu0 0.0
    %3527 = vmatpush1.msra.mxu0 0.0
    %3528 = vmatprep.subr.mxu0 0.0
    %3529 = vmatpush1.msra.mxu0 0.0
    %3530 = vmatprep.subr.mxu0 0.0
    %3531 = vmatpush1.msra.mxu0 0.0
    %3532 = vmatprep.subr.mxu0 0.0
    %3533 = vmatpush1.msra.mxu0 0.0
    %3534 = vmatprep.subr.mxu0 0.0
    %3535 = vmatpush1.msra.mxu0 0.0
    %3536 = vmatprep.subr.mxu0 0.0
    %3537 = vmatpush1.msra.mxu0 0.0
    %3538 = vmatprep.subr.mxu0 0.0
    %3539 = vmatpush1.msra.mxu0 0.0
    %3540 = vmatprep.subr.mxu0 0.0
    %3541 = vmatpush1.msra.mxu0 0.0
    %3542 = vmatprep.subr.mxu0 0.0
    %3543 = vmatpush1.msra.mxu0 0.0
    %3544 = vmatprep.subr.mxu0 0.0
    %3545 = vmatpush1.msra.mxu0 0.0
    %3546 = vmatprep.subr.mxu0 0.0
    %3547 = vmatpush1.msra.mxu0 0.0
    %3548 = vmatprep.subr.mxu0 0.0
    %3549 = vmatpush1.msra.mxu0 0.0
    %3550 = vmatprep.subr.mxu0 0.0
    %3551 = vmatpush1.msra.mxu0 0.0
    %3552 = vmatprep.subr.mxu0 0.0
    %3553 = vmatpush1.msra.mxu0 0.0
    %3554 = vmatprep.subr.mxu0 0.0
    %3555 = vmatpush1.msra.mxu0 0.0
    %3556 = vmatprep.subr.mxu0 0.0
    %3557 = vmatpush1.msra.mxu0 0.0
    %3558 = vmatprep.mubr.f32.mxu0 0.0
    %3559 = vmatmul.mubr.f32.gmra.mrb[0].mxu0 %v2705
    %v3560 = vpop.f32.mrb[0].mxu0
    %v3561 = vadd.f32 0.0, %v3560
    %v3562 = vpop.f32.mrb[0].mxu0
    %v3563 = vadd.f32 0.0, %v3562
    %3564 = vmatprep.mubr.f32.mxu0 0.0
    %3565 = vmatmul.mubr.f32.gmra.mrb[0].mxu0 %v2708
    %v3566 = vpop.f32.mrb[0].mxu0
    %v3567 = vadd.f32 0.0, %v3566
    %v3568 = vpop.f32.mrb[0].mxu0
    %v3569 = vadd.f32 0.0, %v3568
    %3570 = vdwg.mxu0
    %3571 = vst [vmem:[#allocation4 + $0x100] sm:$0xff] %v3561
    %3572 = vst [vmem:[#allocation4 + $0x108] sm:$0xff] %v3563
    %3573 = vst [vmem:[#allocation4 + $0x110] sm:$0xff] %v3567
    %3574 = vst [vmem:[#allocation4 + $0x118] sm:$0xff] %v3569
    %v3575 = vld [vmem:[#allocation18] sm:$0xff]
    %v3576 = vld [vmem:[#allocation18 + $0x8] sm:$0xff]
    %v3577 = vld [vmem:[#allocation18 + $0x10] sm:$0xff]
    %v3578 = vld [vmem:[#allocation18 + $0x18] sm:$0xff]
    %v3579 = vld [vmem:[#allocation4] sm:$0xff]
    %v3580 = vld [vmem:[#allocation4 + $0x8] sm:$0xff]
    %v3581 = vld [vmem:[#allocation4 + $0x10] sm:$0xff]
    %v3582 = vld [vmem:[#allocation4 + $0x18] sm:$0xff]
    %v3583 = vld [vmem:[#allocation4 + $0x20] sm:$0xff]
    %v3584 = vld [vmem:[#allocation4 + $0x28] sm:$0xff]
    %v3585 = vld [vmem:[#allocation4 + $0x30] sm:$0xff]
    %v3586 = vld [vmem:[#allocation4 + $0x38] sm:$0xff]
    %v3587 = vld [vmem:[#allocation4 + $0x40] sm:$0xff]
    %v3588 = vld [vmem:[#allocation4 + $0x48] sm:$0xff]
    %v3589 = vld [vmem:[#allocation4 + $0x50] sm:$0xff]
    %v3590 = vld [vmem:[#allocation4 + $0x58] sm:$0xff]
    %v3591 = vld [vmem:[#allocation4 + $0x60] sm:$0xff]
    %v3592 = vld [vmem:[#allocation4 + $0x68] sm:$0xff]
    %v3593 = vld [vmem:[#allocation4 + $0x70] sm:$0xff]
    %v3594 = vld [vmem:[#allocation4 + $0x78] sm:$0xff]
    %v3595 = vld [vmem:[#allocation4 + $0x80] sm:$0xff]
    %v3596 = vld [vmem:[#allocation4 + $0x88] sm:$0xff]
    %v3597 = vld [vmem:[#allocation4 + $0x90] sm:$0xff]
    %v3598 = vld [vmem:[#allocation4 + $0x98] sm:$0xff]
    %v3599 = vld [vmem:[#allocation4 + $0xa0] sm:$0xff]
    %v3600 = vld [vmem:[#allocation4 + $0xa8] sm:$0xff]
    %v3601 = vld [vmem:[#allocation4 + $0xb0] sm:$0xff]
    %v3602 = vld [vmem:[#allocation4 + $0xb8] sm:$0xff]
    %v3603 = vld [vmem:[#allocation4 + $0xc0] sm:$0xff]
    %v3604 = vld [vmem:[#allocation4 + $0xc8] sm:$0xff]
    %v3605 = vld [vmem:[#allocation4 + $0xd0] sm:$0xff]
    %v3606 = vld [vmem:[#allocation4 + $0xd8] sm:$0xff]
    %v3607 = vld [vmem:[#allocation4 + $0xe0] sm:$0xff]
    %v3608 = vld [vmem:[#allocation4 + $0xe8] sm:$0xff]
    %v3609 = vld [vmem:[#allocation4 + $0xf0] sm:$0xff]
    %v3610 = vld [vmem:[#allocation4 + $0xf8] sm:$0xff]
    %v3611 = vld [vmem:[#allocation4 + $0x100] sm:$0xff]
    %v3612 = vld [vmem:[#allocation4 + $0x108] sm:$0xff]
    %v3613 = vld [vmem:[#allocation4 + $0x110] sm:$0xff]
    %v3614 = vld [vmem:[#allocation4 + $0x118] sm:$0xff]
    %3616 = vset.pattern.permute.xlu0 0
    %3617 = vperm.xlu0 %3616, %v2678
    %v3618 = vpop.permute.xlu0 %3617
    %3621 = vset.pattern.permute.xlu0 0
    %3622 = vperm.xlu0 %3621, %v2679
    %v3623 = vpop.permute.xlu0 %3622
    %v3626 = vsel %vm851, %v3576, 0
    %v3629 = vsel %vm851, %v3578, 0
    %3631 = vmatprep.subr.mxu0 %v3580
    %3632 = vmatpush1.msra.mxu0 %v3579
    %3633 = vmatprep.subr.mxu0 %v3582
    %3634 = vmatpush1.msra.mxu0 %v3581
    %3635 = vmatprep.subr.mxu0 %v3584
    %3636 = vmatpush1.msra.mxu0 %v3583
    %3637 = vmatprep.subr.mxu0 %v3586
    %3638 = vmatpush1.msra.mxu0 %v3585
    %3639 = vmatprep.subr.mxu0 %v3588
    %3640 = vmatpush1.msra.mxu0 %v3587
    %3641 = vmatprep.subr.mxu0 %v3590
    %3642 = vmatpush1.msra.mxu0 %v3589
    %3643 = vmatprep.subr.mxu0 %v3592
    %3644 = vmatpush1.msra.mxu0 %v3591
    %3645 = vmatprep.subr.mxu0 %v3594
    %3646 = vmatpush1.msra.mxu0 %v3593
    %3647 = vmatprep.subr.mxu0 %v3596
    %3648 = vmatpush1.msra.mxu0 %v3595
    %3649 = vmatprep.subr.mxu0 %v3598
    %3650 = vmatpush1.msra.mxu0 %v3597
    %3651 = vmatprep.subr.mxu0 %v3600
    %3652 = vmatpush1.msra.mxu0 %v3599
    %3653 = vmatprep.subr.mxu0 %v3602
    %3654 = vmatpush1.msra.mxu0 %v3601
    %3655 = vmatprep.subr.mxu0 %v3604
    %3656 = vmatpush1.msra.mxu0 %v3603
    %3657 = vmatprep.subr.mxu0 %v3606
    %3658 = vmatpush1.msra.mxu0 %v3605
    %3659 = vmatprep.subr.mxu0 %v3608
    %3660 = vmatpush1.msra.mxu0 %v3607
    %3661 = vmatprep.subr.mxu0 %v3610
    %3662 = vmatpush1.msra.mxu0 %v3609
    %3663 = vmatprep.subr.mxu0 %v3612
    %3664 = vmatpush1.msra.mxu0 %v3611
    %3665 = vmatprep.subr.mxu0 %v3614
    %3666 = vmatpush1.msra.mxu0 %v3613
    %3667 = vmatprep.subr.mxu0 0.0
    %3668 = vmatpush1.msra.mxu0 0.0
    %3669 = vmatprep.subr.mxu0 0.0
    %3670 = vmatpush1.msra.mxu0 0.0
    %3671 = vmatprep.subr.mxu0 0.0
    %3672 = vmatpush1.msra.mxu0 0.0
    %3673 = vmatprep.subr.mxu0 0.0
    %3674 = vmatpush1.msra.mxu0 0.0
    %3675 = vmatprep.subr.mxu0 0.0
    %3676 = vmatpush1.msra.mxu0 0.0
    %3677 = vmatprep.subr.mxu0 0.0
    %3678 = vmatpush1.msra.mxu0 0.0
    %3679 = vmatprep.subr.mxu0 0.0
    %3680 = vmatpush1.msra.mxu0 0.0
    %3681 = vmatprep.subr.mxu0 0.0
    %3682 = vmatpush1.msra.mxu0 0.0
    %3683 = vmatprep.subr.mxu0 0.0
    %3684 = vmatpush1.msra.mxu0 0.0
    %3685 = vmatprep.subr.mxu0 0.0
    %3686 = vmatpush1.msra.mxu0 0.0
    %3687 = vmatprep.subr.mxu0 0.0
    %3688 = vmatpush1.msra.mxu0 0.0
    %3689 = vmatprep.subr.mxu0 0.0
    %3690 = vmatpush1.msra.mxu0 0.0
    %3691 = vmatprep.subr.mxu0 0.0
    %3692 = vmatpush1.msra.mxu0 0.0
    %3693 = vmatprep.subr.mxu0 0.0
    %3694 = vmatpush1.msra.mxu0 0.0
    %3695 = vmatprep.mubr.f32.mxu0 %v3626
    %3696 = vmatmul.mubr.f32.gmra.mrb[0].mxu0 %v3575
    %v3697 = vpop.f32.mrb[0].mxu0
    %v3698 = vadd.f32 %v3618, %v3697
    %v3699 = vpop.f32.mrb[0].mxu0
    %v3700 = vadd.f32 %v3618, %v3699
    %3701 = vmatprep.mubr.f32.mxu0 %v3629
    %3702 = vmatmul.mubr.f32.gmra.mrb[0].mxu0 %v3577
    %v3703 = vpop.f32.mrb[0].mxu0
    %v3704 = vadd.f32 %v3623, %v3703
    %v3705 = vpop.f32.mrb[0].mxu0
    %v3706 = vadd.f32 %v3623, %v3705
    %3707 = vdwg.mxu0
    %3709 = vset.pattern.permute.xlu0 0
    %3710 = vperm.xlu0 %3709, %v2681
    %v3711 = vpop.permute.xlu0 %3710
    %3714 = vset.pattern.permute.xlu0 0
    %3715 = vperm.xlu0 %3714, %v2682
    %v3716 = vpop.permute.xlu0 %3715
    %v3718 = vmul.f32 %v3711, %v2684
    %v3719 = vmul.f32 %v3711, %v2685
    %v3720 = vmul.f32 %v3716, %v2686
    %v3721 = vmul.f32 %v3716, %v2687
    %v3722 = vadd.f32 %v3698, %v3718
    %v3723 = vadd.f32 %v3700, %v3719
    %v3724 = vadd.f32 %v3704, %v3720
    %v3725 = vadd.f32 %v3706, %v3721
    %vm3726 = vcmp.gt.f32.partialorder %v3722, 0.0
    %vm3727 = vcmp.gt.f32.partialorder %v3723, 0.0
    %vm3728 = vcmp.gt.f32.partialorder %v3724, 0.0
    %vm3729 = vcmp.gt.f32.partialorder %v3725, 0.0
    %v3730 = vmul.f32 %v3722, 0.2
    %v3731 = vmul.f32 %v3723, 0.2
    %v3732 = vmul.f32 %v3724, 0.2
    %v3733 = vmul.f32 %v3725, 0.2
    %v3734 = vsel %vm3726, %v3722, %v3730
    %v3735 = vsel %vm3727, %v3723, %v3731
    %v3736 = vsel %vm3728, %v3724, %v3732
    %v3737 = vsel %vm3729, %v3725, %v3733
    %v3738 = vadd.f32 %v3734, %v3735
    %3739 = vadd.xlane.f32.xlu0 %v3738
    %v3740 = vpop.xlane.xlu0 %3739
    %v3741 = vadd.f32 %v3736, %v3737
    %3742 = vadd.xlane.f32.xlu0 %v3741
    %v3743 = vpop.xlane.xlu0 %3742
    %v3744 = vrcp.pop 256.0
    %v3745 = vmul.f32 %v3740, %v3744
    %v3746 = vmul.f32 %v3743, %v3744
    %v3747 = vsub.f32 %v3734, %v3745
    %v3748 = vsub.f32 %v3735, %v3745
    %v3749 = vsub.f32 %v3736, %v3746
    %v3750 = vsub.f32 %v3737, %v3746
    %v3751 = vmul.f32 %v3747, %v3747
    %v3752 = vmul.f32 %v3748, %v3748
    %v3753 = vmul.f32 %v3749, %v3749
    %v3754 = vmul.f32 %v3750, %v3750
    %v3755 = vadd.f32 %v3751, %v3752
    %3756 = vadd.xlane.f32.xlu0 %v3755
    %v3757 = vpop.xlane.xlu0 %3756
    %v3758 = vadd.f32 %v3753, %v3754
    %3759 = vadd.xlane.f32.xlu0 %v3758
    %v3760 = vpop.xlane.xlu0 %3759
    %v3761 = vmul.f32 %v3757, %v3744
    %v3762 = vmul.f32 %v3760, %v3744
    %v3763 = vadd.f32 %v3761, 1e-05
    %v3764 = vadd.f32 %v3762, 1e-05
    %v3765 = vrsqrt.pop %v3763
    %v3766 = vrsqrt.pop %v3764
    %v3767 = vmul.f32 %v3747, %v3765
    %v3768 = vmul.f32 %v3748, %v3765
    %v3769 = vmul.f32 %v3749, %v3766
    %v3770 = vmul.f32 %v3750, %v3766
    %3772 = vset.pattern.permute.xlu0 0
    %3773 = vperm.xlu0 %3772, %v822
    %v3774 = vpop.permute.xlu0 %3773
    %3777 = vset.pattern.permute.xlu0 0
    %3778 = vperm.xlu0 %3777, %v827
    %v3779 = vpop.permute.xlu0 %3778
    %v3781 = vmul.f32 %v3774, %v3767
    %v3782 = vmul.f32 %v3774, %v3768
    %v3783 = vmul.f32 %v3779, %v3769
    %v3784 = vmul.f32 %v3779, %v3770
    %3786 = vset.pattern.permute.xlu0 0
    %3787 = vperm.xlu0 %3786, %v832
    %v3788 = vpop.permute.xlu0 %3787
    %3791 = vset.pattern.permute.xlu0 0
    %3792 = vperm.xlu0 %3791, %v837
    %v3793 = vpop.permute.xlu0 %3792
    %v3795 = vadd.f32 %v3781, %v3788
    %v3796 = vadd.f32 %v3782, %v3788
    %v3797 = vadd.f32 %v3783, %v3793
    %v3798 = vadd.f32 %v3784, %v3793
    %v3799 = vld [vmem:[#allocation19] sm:$0xff]
    %v3800 = vld [vmem:[#allocation19 + $0x8] sm:$0xff]
    %v3801 = vld [vmem:[%s16] sm:$0xff]
    %v3802 = vld [vmem:[%s16 + $0x8] sm:$0xff]
    %3804 = vset.pattern.permute.xlu0 0
    %3805 = vperm.xlu0 %3804, %v3801
    %v3806 = vpop.permute.xlu0 %3805
    %3809 = vset.pattern.permute.xlu0 0
    %3810 = vperm.xlu0 %3809, %v3802
    %v3811 = vpop.permute.xlu0 %3810
    %v3814 = vsel %vm851, %v3799, 0
    %v3817 = vsel %vm851, %v3800, 0
    %3819 = vmatprep.subr.mxu0 0.0
    %3820 = vmatpush1.msra.mxu0 %v2675
    %3821 = vmatprep.subr.mxu0 0.0
    %3822 = vmatpush1.msra.mxu0 %v2676
    %3823 = vmatprep.subr.mxu0 0.0
    %3824 = vmatpush1.msra.mxu0 0.0
    %3825 = vmatprep.subr.mxu0 0.0
    %3826 = vmatpush1.msra.mxu0 0.0
    %3827 = vmatprep.subr.mxu0 0.0
    %3828 = vmatpush1.msra.mxu0 0.0
    %3829 = vmatprep.subr.mxu0 0.0
    %3830 = vmatpush1.msra.mxu0 0.0
    %3831 = vmatprep.subr.mxu0 0.0
    %3832 = vmatpush1.msra.mxu0 0.0
    %3833 = vmatprep.subr.mxu0 0.0
    %3834 = vmatpush1.msra.mxu0 0.0
    %3835 = vmatprep.subr.mxu0 0.0
    %3836 = vmatpush1.msra.mxu0 0.0
    %3837 = vmatprep.subr.mxu0 0.0
    %3838 = vmatpush1.msra.mxu0 0.0
    %3839 = vmatprep.subr.mxu0 0.0
    %3840 = vmatpush1.msra.mxu0 0.0
    %3841 = vmatprep.subr.mxu0 0.0
    %3842 = vmatpush1.msra.mxu0 0.0
    %3843 = vmatprep.subr.mxu0 0.0
    %3844 = vmatpush1.msra.mxu0 0.0
    %3845 = vmatprep.subr.mxu0 0.0
    %3846 = vmatpush1.msra.mxu0 0.0
    %3847 = vmatprep.subr.mxu0 0.0
    %3848 = vmatpush1.msra.mxu0 0.0
    %3849 = vmatprep.subr.mxu0 0.0
    %3850 = vmatpush1.msra.mxu0 0.0
    %3851 = vmatprep.subr.mxu0 0.0
    %3852 = vmatpush1.msra.mxu0 0.0
    %3853 = vmatprep.subr.mxu0 0.0
    %3854 = vmatpush1.msra.mxu0 0.0
    %3855 = vmatprep.subr.mxu0 0.0
    %3856 = vmatpush1.msra.mxu0 0.0
    %3857 = vmatprep.subr.mxu0 0.0
    %3858 = vmatpush1.msra.mxu0 0.0
    %3859 = vmatprep.subr.mxu0 0.0
    %3860 = vmatpush1.msra.mxu0 0.0
    %3861 = vmatprep.subr.mxu0 0.0
    %3862 = vmatpush1.msra.mxu0 0.0
    %3863 = vmatprep.subr.mxu0 0.0
    %3864 = vmatpush1.msra.mxu0 0.0
    %3865 = vmatprep.subr.mxu0 0.0
    %3866 = vmatpush1.msra.mxu0 0.0
    %3867 = vmatprep.subr.mxu0 0.0
    %3868 = vmatpush1.msra.mxu0 0.0
    %3869 = vmatprep.subr.mxu0 0.0
    %3870 = vmatpush1.msra.mxu0 0.0
    %3871 = vmatprep.subr.mxu0 0.0
    %3872 = vmatpush1.msra.mxu0 0.0
    %3873 = vmatprep.subr.mxu0 0.0
    %3874 = vmatpush1.msra.mxu0 0.0
    %3875 = vmatprep.subr.mxu0 0.0
    %3876 = vmatpush1.msra.mxu0 0.0
    %3877 = vmatprep.subr.mxu0 0.0
    %3878 = vmatpush1.msra.mxu0 0.0
    %3879 = vmatprep.subr.mxu0 0.0
    %3880 = vmatpush1.msra.mxu0 0.0
    %3881 = vmatprep.subr.mxu0 0.0
    %3882 = vmatpush1.msra.mxu0 0.0
    %3883 = vmatprep.mubr.f32.mxu0 0.0
    %3884 = vmatmul.mubr.f32.gmra.mrb[0].mxu0 %v3814
    %v3885 = vpop.f32.mrb[0].mxu0
    %v3886 = vadd.f32 %v3806, %v3885
    %v3887 = vpop.f32.mrb[0].mxu0
    %3888 = vmatprep.mubr.f32.mxu0 0.0
    %3889 = vmatmul.mubr.f32.gmra.mrb[0].mxu0 %v3817
    %v3890 = vpop.f32.mrb[0].mxu0
    %v3891 = vadd.f32 %v3811, %v3890
    %v3892 = vpop.f32.mrb[0].mxu0
    %3893 = vdwg.mxu0
    %v3894 = vld [vmem:[%s17] sm:$0xff]
    %v3895 = vld [vmem:[%s17 + $0x8] sm:$0xff]
    %v3896 = vld [vmem:[%s17 + $0x10] sm:$0xff]
    %v3897 = vld [vmem:[%s17 + $0x18] sm:$0xff]
    %v3898 = vld [vmem:[%s17 + $0x20] sm:$0xff]
    %v3899 = vld [vmem:[%s17 + $0x28] sm:$0xff]
    %v3900 = vld [vmem:[%s17 + $0x30] sm:$0xff]
    %v3901 = vld [vmem:[%s17 + $0x38] sm:$0xff]
    %v3902 = vld [vmem:[%s17 + $0x40] sm:$0xff]
    %v3903 = vld [vmem:[%s17 + $0x48] sm:$0xff]
    %v3904 = vld [vmem:[%s17 + $0x50] sm:$0xff]
    %v3905 = vld [vmem:[%s17 + $0x58] sm:$0xff]
    %v3906 = vld [vmem:[%s17 + $0x60] sm:$0xff]
    %v3907 = vld [vmem:[%s17 + $0x68] sm:$0xff]
    %v3908 = vld [vmem:[%s17 + $0x70] sm:$0xff]
    %v3909 = vld [vmem:[%s17 + $0x78] sm:$0xff]
    %v3911 = vsel %vm247, %v3886, 0
    %v3914 = vsel %vm247, %v3891, 0
    %3916 = vmatprep.subr.mxu0 %v3895
    %3917 = vmatpush1.msra.mxu0 %v3894
    %3918 = vmatprep.subr.mxu0 %v3897
    %3919 = vmatpush1.msra.mxu0 %v3896
    %3920 = vmatprep.subr.mxu0 %v3899
    %3921 = vmatpush1.msra.mxu0 %v3898
    %3922 = vmatprep.subr.mxu0 %v3901
    %3923 = vmatpush1.msra.mxu0 %v3900
    %3924 = vmatprep.subr.mxu0 %v3903
    %3925 = vmatpush1.msra.mxu0 %v3902
    %3926 = vmatprep.subr.mxu0 %v3905
    %3927 = vmatpush1.msra.mxu0 %v3904
    %3928 = vmatprep.subr.mxu0 %v3907
    %3929 = vmatpush1.msra.mxu0 %v3906
    %3930 = vmatprep.subr.mxu0 %v3909
    %3931 = vmatpush1.msra.mxu0 %v3908
    %3932 = vmatprep.subr.mxu0 0.0
    %3933 = vmatpush1.msra.mxu0 0.0
    %3934 = vmatprep.subr.mxu0 0.0
    %3935 = vmatpush1.msra.mxu0 0.0
    %3936 = vmatprep.subr.mxu0 0.0
    %3937 = vmatpush1.msra.mxu0 0.0
    %3938 = vmatprep.subr.mxu0 0.0
    %3939 = vmatpush1.msra.mxu0 0.0
    %3940 = vmatprep.subr.mxu0 0.0
    %3941 = vmatpush1.msra.mxu0 0.0
    %3942 = vmatprep.subr.mxu0 0.0
    %3943 = vmatpush1.msra.mxu0 0.0
    %3944 = vmatprep.subr.mxu0 0.0
    %3945 = vmatpush1.msra.mxu0 0.0
    %3946 = vmatprep.subr.mxu0 0.0
    %3947 = vmatpush1.msra.mxu0 0.0
    %3948 = vmatprep.subr.mxu0 0.0
    %3949 = vmatpush1.msra.mxu0 0.0
    %3950 = vmatprep.subr.mxu0 0.0
    %3951 = vmatpush1.msra.mxu0 0.0
    %3952 = vmatprep.subr.mxu0 0.0
    %3953 = vmatpush1.msra.mxu0 0.0
    %3954 = vmatprep.subr.mxu0 0.0
    %3955 = vmatpush1.msra.mxu0 0.0
    %3956 = vmatprep.subr.mxu0 0.0
    %3957 = vmatpush1.msra.mxu0 0.0
    %3958 = vmatprep.subr.mxu0 0.0
    %3959 = vmatpush1.msra.mxu0 0.0
    %3960 = vmatprep.subr.mxu0 0.0
    %3961 = vmatpush1.msra.mxu0 0.0
    %3962 = vmatprep.subr.mxu0 0.0
    %3963 = vmatpush1.msra.mxu0 0.0
    %3964 = vmatprep.subr.mxu0 0.0
    %3965 = vmatpush1.msra.mxu0 0.0
    %3966 = vmatprep.subr.mxu0 0.0
    %3967 = vmatpush1.msra.mxu0 0.0
    %3968 = vmatprep.subr.mxu0 0.0
    %3969 = vmatpush1.msra.mxu0 0.0
    %3970 = vmatprep.subr.mxu0 0.0
    %3971 = vmatpush1.msra.mxu0 0.0
    %3972 = vmatprep.subr.mxu0 0.0
    %3973 = vmatpush1.msra.mxu0 0.0
    %3974 = vmatprep.subr.mxu0 0.0
    %3975 = vmatpush1.msra.mxu0 0.0
    %3976 = vmatprep.subr.mxu0 0.0
    %3977 = vmatpush1.msra.mxu0 0.0
    %3978 = vmatprep.subr.mxu0 0.0
    %3979 = vmatpush1.msra.mxu0 0.0
    %3980 = vmatprep.mubr.f32.mxu0 0.0
    %3981 = vmatmul.mubr.f32.gmra.mrb[0].mxu0 %v3911
    %v3982 = vpop.f32.mrb[0].mxu0
    %v3983 = vadd.f32 0.0, %v3982
    %v3984 = vpop.f32.mrb[0].mxu0
    %v3985 = vadd.f32 0.0, %v3984
    %3986 = vmatprep.mubr.f32.mxu0 0.0
    %3987 = vmatmul.mubr.f32.gmra.mrb[0].mxu0 %v3914
    %v3988 = vpop.f32.mrb[0].mxu0
    %v3989 = vadd.f32 0.0, %v3988
    %v3990 = vpop.f32.mrb[0].mxu0
    %v3991 = vadd.f32 0.0, %v3990
    %3992 = vdwg.mxu0
    %s3993 = scalar_lea.vmem [#allocation19], 16
    %v3994 = vld [vmem:[%s3993] sm:$0xff]
    %v3995 = vld [vmem:[%s3993 + $0x8] sm:$0xff]
    %s3996 = scalar_lea.vmem %s16, 16
    %v3997 = vld [vmem:[%s3996] sm:$0xff]
    %v3998 = vld [vmem:[%s3996 + $0x8] sm:$0xff]
    %4000 = vset.pattern.permute.xlu0 0
    %4001 = vperm.xlu0 %4000, %v3997
    %v4002 = vpop.permute.xlu0 %4001
    %4005 = vset.pattern.permute.xlu0 0
    %4006 = vperm.xlu0 %4005, %v3998
    %v4007 = vpop.permute.xlu0 %4006
    %v4010 = vsel %vm851, %v3994, 0
    %v4013 = vsel %vm851, %v3995, 0
    %4015 = vmatprep.subr.mxu0 %v3796
    %4016 = vmatpush1.msra.mxu0 %v3795
    %4017 = vmatprep.subr.mxu0 %v3798
    %4018 = vmatpush1.msra.mxu0 %v3797
    %4019 = vmatprep.subr.mxu0 0.0
    %4020 = vmatpush1.msra.mxu0 0.0
    %4021 = vmatprep.subr.mxu0 0.0
    %4022 = vmatpush1.msra.mxu0 0.0
    %4023 = vmatprep.subr.mxu0 0.0
    %4024 = vmatpush1.msra.mxu0 0.0
    %4025 = vmatprep.subr.mxu0 0.0
    %4026 = vmatpush1.msra.mxu0 0.0
    %4027 = vmatprep.subr.mxu0 0.0
    %4028 = vmatpush1.msra.mxu0 0.0
    %4029 = vmatprep.subr.mxu0 0.0
    %4030 = vmatpush1.msra.mxu0 0.0
    %4031 = vmatprep.subr.mxu0 0.0
    %4032 = vmatpush1.msra.mxu0 0.0
    %4033 = vmatprep.subr.mxu0 0.0
    %4034 = vmatpush1.msra.mxu0 0.0
    %4035 = vmatprep.subr.mxu0 0.0
    %4036 = vmatpush1.msra.mxu0 0.0
    %4037 = vmatprep.subr.mxu0 0.0
    %4038 = vmatpush1.msra.mxu0 0.0
    %4039 = vmatprep.subr.mxu0 0.0
    %4040 = vmatpush1.msra.mxu0 0.0
    %4041 = vmatprep.subr.mxu0 0.0
    %4042 = vmatpush1.msra.mxu0 0.0
    %4043 = vmatprep.subr.mxu0 0.0
    %4044 = vmatpush1.msra.mxu0 0.0
    %4045 = vmatprep.subr.mxu0 0.0
    %4046 = vmatpush1.msra.mxu0 0.0
    %4047 = vmatprep.subr.mxu0 0.0
    %4048 = vmatpush1.msra.mxu0 0.0
    %4049 = vmatprep.subr.mxu0 0.0
    %4050 = vmatpush1.msra.mxu0 0.0
    %4051 = vmatprep.subr.mxu0 0.0
    %4052 = vmatpush1.msra.mxu0 0.0
    %4053 = vmatprep.subr.mxu0 0.0
    %4054 = vmatpush1.msra.mxu0 0.0
    %4055 = vmatprep.subr.mxu0 0.0
    %4056 = vmatpush1.msra.mxu0 0.0
    %4057 = vmatprep.subr.mxu0 0.0
    %4058 = vmatpush1.msra.mxu0 0.0
    %4059 = vmatprep.subr.mxu0 0.0
    %4060 = vmatpush1.msra.mxu0 0.0
    %4061 = vmatprep.subr.mxu0 0.0
    %4062 = vmatpush1.msra.mxu0 0.0
    %4063 = vmatprep.subr.mxu0 0.0
    %4064 = vmatpush1.msra.mxu0 0.0
    %4065 = vmatprep.subr.mxu0 0.0
    %4066 = vmatpush1.msra.mxu0 0.0
    %4067 = vmatprep.subr.mxu0 0.0
    %4068 = vmatpush1.msra.mxu0 0.0
    %4069 = vmatprep.subr.mxu0 0.0
    %4070 = vmatpush1.msra.mxu0 0.0
    %4071 = vmatprep.subr.mxu0 0.0
    %4072 = vmatpush1.msra.mxu0 0.0
    %4073 = vmatprep.subr.mxu0 0.0
    %4074 = vmatpush1.msra.mxu0 0.0
    %4075 = vmatprep.subr.mxu0 0.0
    %4076 = vmatpush1.msra.mxu0 0.0
    %4077 = vmatprep.subr.mxu0 0.0
    %4078 = vmatpush1.msra.mxu0 0.0
    %4079 = vmatprep.mubr.f32.mxu0 0.0
    %4080 = vmatmul.mubr.f32.gmra.mrb[0].mxu0 %v4010
    %v4081 = vpop.f32.mrb[0].mxu0
    %v4082 = vadd.f32 %v4002, %v4081
    %v4083 = vpop.f32.mrb[0].mxu0
    %v4084 = vadd.f32 %v4002, %v4083
    %4085 = vmatprep.mubr.f32.mxu0 0.0
    %4086 = vmatmul.mubr.f32.gmra.mrb[0].mxu0 %v4013
    %v4087 = vpop.f32.mrb[0].mxu0
    %v4088 = vadd.f32 %v4007, %v4087
    %v4089 = vpop.f32.mrb[0].mxu0
    %v4090 = vadd.f32 %v4007, %v4089
    %4091 = vdwg.mxu0
    %v4092 = vadd.f32 %v4082, %v3983
    %v4093 = vadd.f32 %v4084, %v3985
    %v4094 = vadd.f32 %v4088, %v3989
    %v4095 = vadd.f32 %v4090, %v3991
    %4096 = vst [vmem:[%s18] sm:$0xff] %v4092
    %4097 = vst [vmem:[%s18 + $0x8] sm:$0xff] %v4093
    %4098 = vst [vmem:[%s18 + $0x10] sm:$0xff] %v4094
    %4099 = vst [vmem:[%s18 + $0x18] sm:$0xff] %v4095
    // Predicated region
    $region114: #{generator_forward.3} parent=1 // pred_check
      _
    $region115: #{generator_forward.3} parent=1 // pred_check_branch
      %4101 = sbr.rel (0) target = $region117
    $region116: #{generator_forward.3} parent=1 // pred_region
      _
    $region117: #{generator_forward.3} parent=1 // pred_fallthru
      _
    // Predicated region
    $region118: #{generator_forward.3} parent=1 // pred_check
      _
    $region119: #{generator_forward.3} parent=1 // pred_check_branch
      %4103 = sbr.rel (0) target = $region121
    $region120: #{generator_forward.3} parent=1 // pred_region
      _
    $region121: #{generator_forward.3} parent=1 // pred_fallthru
      _
    %4104 = vsyncpa [#allocation6], 1
    %4105 = vsyncpa [#allocation8], 1
    %4106 = vsyncpa [#allocation11], 1
    %4107 = vsyncpa [#allocation14], 1
    %4108 = vsyncpa [#allocation17], 1
    %4109 = vsyncpa [#allocation20], 1

</llo_original>
